<compile_context>
chip_gen: v5e
topology: v5e:2x2
jax: 0.10.0
libtpu: 0.0.40
codegen_flags: <defaults>
</compile_context>

<pallas_src>
import functools
import math

import jax
import jax.numpy as jnp
import numpy as np
from jax.experimental import pallas as pl
from jax.experimental.pallas import tpu as pltpu

NEG_SLOPE = 0.1
BN_EPS = 1e-5
MXU_DTYPE = jnp.bfloat16      # MXU operand dtype; accumulation is always f32.


# -----------------------------------------------------------------------------
# Fused kernel: 4 x (conv-as-matmul + LeakyReLU + BN affine) + FC1 + FC2.
# refs = [x2d, (R, M, aff) * num_conv, S, fc1_w, fc1_b, fc2_w, fc2_b, out]
# -----------------------------------------------------------------------------
def _dqn_fused_kernel(*refs, num_conv, neg_slope):
    out_ref = refs[-1]
    x_ref = refs[0]

    a = x_ref[...]                                # (N*H, W*C) float32
    idx = 1
    for _ in range(num_conv):
        r_ref, m_ref, aff_ref = refs[idx], refs[idx + 1], refs[idx + 2]
        idx += 3
        taps = r_ref.shape[0]                     # = kernel height (3)
        a_mx = a.astype(MXU_DTYPE)
        y = None
        for i in range(taps):
            # Row gather (0/1 matrix -> exact in bf16), then folded conv matmul.
            g = jnp.dot(r_ref[i], a_mx, preferred_element_type=jnp.float32)
            t = jnp.dot(g.astype(MXU_DTYPE), m_ref[i],
                        preferred_element_type=jnp.float32)
            y = t if y is None else y + t
        y = y + aff_ref[0]                        # conv bias          (f32, VPU)
        y = jnp.where(y >= 0.0, y, neg_slope * y) # LeakyReLU          (f32, VPU)
        a = y * aff_ref[1] + aff_ref[2]           # BatchNorm affine   (f32, VPU)

    s_ref, w1_ref, b1_ref, w2_ref, b2_ref = refs[idx:idx + 5]
    a_mx = a.astype(MXU_DTYPE)
    h = None
    for r in range(s_ref.shape[0]):               # spatial rows of the last conv
        g = jnp.dot(s_ref[r], a_mx, preferred_element_type=jnp.float32)
        t = jnp.dot(g.astype(MXU_DTYPE), w1_ref[r],
                    preferred_element_type=jnp.float32)
        h = t if h is None else h + t
    h = h + b1_ref[...]
    h = jnp.where(h >= 0.0, h, neg_slope * h)
    out = jnp.dot(h.astype(MXU_DTYPE), w2_ref[...],
                  preferred_element_type=jnp.float32) + b2_ref[...]
    out_ref[...] = out.astype(out_ref.dtype)


# -----------------------------------------------------------------------------
# One-time weight folding: build the gather / folded-conv matmul operands.
# -----------------------------------------------------------------------------
def fold_params(params, input_shape, batch, *, eps=BN_EPS, stride=2):
    C, H, W = input_shape
    N = batch
    folded = {"convs": []}
    h_dim, w_dim, c_dim = H, W, C
    for conv, bn in zip(params["convs"], params["bns"]):
        w = conv["w"]                              # (OC, IC, KH, KW)
        OC, IC, KH, KW = w.shape
        assert IC == c_dim
        oh = (h_dim - KH) // stride + 1
        ow = (w_dim - KW) // stride + 1

        # Row-gather: R[i][n*oh+oy, n*H + stride*oy + i] = 1
        P = jax.nn.one_hot(
            stride * jnp.arange(oh)[None, :] + jnp.arange(KH)[:, None],
            h_dim, dtype=jnp.float32)              # (KH, oh, H)
        R = jnp.stack([jnp.kron(jnp.eye(N, dtype=jnp.float32), P[i])
                       for i in range(KH)])        # (KH, N*oh, N*H)

        # Column gather folded with the weights:
        # M[i][wpos*C + c, ox*OC + oc] = w[oc, c, i, j]  where wpos = stride*ox + j
        T = jax.nn.one_hot(
            stride * jnp.arange(ow)[None, :] + jnp.arange(KW)[:, None],
            w_dim, dtype=jnp.float32)              # (KW, ow, W)
        M = jnp.einsum("jxw,ocij->iwcxo", T, w).reshape(KH, w_dim * c_dim, ow * OC)

        # Per-output-column bias / BN scale / BN shift (BN after LeakyReLU).
        scale = bn["gamma"] / jnp.sqrt(bn["var"] + eps)
        shift = bn["beta"] - bn["mean"] * scale
        aff = jnp.stack([jnp.tile(conv["b"], ow),
                         jnp.tile(scale, ow),
                         jnp.tile(shift, ow)]).reshape(3, 1, ow * OC)

        folded["convs"].append((R.astype(MXU_DTYPE), M.astype(MXU_DTYPE),
                                aff.astype(jnp.float32)))
        h_dim, w_dim, c_dim = oh, ow, OC

    # FC head: fold the NCHW flatten (x.view(N, -1)) ordering into fc1_w and
    # gather the per-sample spatial rows of the last conv output with S[r].
    oh4, ow4, OC = h_dim, w_dim, c_dim
    F = params["fc1_w"].shape[1]
    w1 = params["fc1_w"].reshape(OC, oh4, ow4, F)
    w1 = jnp.transpose(w1, (1, 2, 0, 3)).reshape(oh4, ow4 * OC, F)
    S = jnp.stack([jnp.kron(jnp.eye(N, dtype=jnp.float32),
                            jnp.eye(oh4, dtype=jnp.float32)[r:r + 1])
                   for r in range(oh4)])           # (oh4, N, N*oh4)

    folded["S"] = S.astype(MXU_DTYPE)
    folded["fc1_w"] = w1.astype(MXU_DTYPE)
    folded["fc1_b"] = params["fc1_b"].reshape(1, -1).astype(jnp.float32)
    folded["fc2_w"] = params["fc2_w"].astype(MXU_DTYPE)
    folded["fc2_b"] = params["fc2_b"].reshape(1, -1).astype(jnp.float32)
    return folded


# -----------------------------------------------------------------------------
# Forward pass: NCHW in, (N, num_actions) out — single pallas_call.
# -----------------------------------------------------------------------------
def dqn_cnn_forward(folded, x_nchw):
    N, C, H, W = x_nchw.shape
    # NCHW -> NHWC -> (N*H, W*C): rows = image rows, lanes = (pixel, channel).
    x2d = jnp.transpose(x_nchw, (0, 2, 3, 1)).reshape(N * H, W * C)
    x2d = x2d.astype(jnp.float32)

    operands = [x2d]
    for R, M, aff in folded["convs"]:
        operands += [R, M, aff]
    operands += [folded["S"], folded["fc1_w"], folded["fc1_b"],
                 folded["fc2_w"], folded["fc2_b"]]

    num_actions = folded["fc2_w"].shape[-1]
    num_conv = len(folded["convs"])

    # Advisory cost estimate so XLA schedules the surrounding glue sensibly.
    flops = 0
    a_cols = x2d.shape[1]
    a_rows = x2d.shape[0]
    for R, M, _ in folded["convs"]:
        taps, rows_out, rows_in = R.shape
        _, k_in, cols_out = M.shape
        flops += taps * 2 * rows_out * (rows_in * a_cols + k_in * cols_out)
        a_rows, a_cols = rows_out, cols_out
    oh4 = folded["S"].shape[0]
    F = folded["fc1_w"].shape[-1]
    flops += oh4 * 2 * N * (a_rows * a_cols + a_cols * F)
    flops += 2 * N * F * num_actions
    bytes_accessed = sum(int(np.prod(o.shape)) * o.dtype.itemsize
                         for o in operands) + N * num_actions * 4

    kernel = functools.partial(_dqn_fused_kernel, num_conv=num_conv,
                               neg_slope=NEG_SLOPE)
    return pl.pallas_call(
        kernel,
        out_shape=jax.ShapeDtypeStruct((N, num_actions), jnp.float32),
        cost_estimate=pl.CostEstimate(flops=flops, transcendentals=0,
                                      bytes_accessed=bytes_accessed),
        compiler_params=pltpu.CompilerParams(vmem_limit_bytes=32 * 1024 * 1024),
    )(*operands)


# -----------------------------------------------------------------------------
# Parameter init (deterministic, synthetic)
# -----------------------------------------------------------------------------
def init_params(key, input_shape, num_actions):
    C, H, W = input_shape
    chans = [C, 32, 64, 64, 64]
    params = {"convs": [], "bns": []}
    h = H
    for li in range(4):
        key, kw_, kb_, kg, kbt, km, kv = jax.random.split(key, 7)
        ic, oc = chans[li], chans[li + 1]
        fan_in = ic * 3 * 3
        params["convs"].append({
            "w": jax.random.normal(kw_, (oc, ic, 3, 3), jnp.float32)
                 / math.sqrt(fan_in),
            "b": 0.01 * jax.random.normal(kb_, (oc,), jnp.float32),
        })
        params["bns"].append({
            "gamma": 1.0 + 0.1 * jax.random.normal(kg, (oc,), jnp.float32),
            "beta": 0.05 * jax.random.normal(kbt, (oc,), jnp.float32),
            "mean": 0.1 * jax.random.normal(km, (oc,), jnp.float32),
            "var": 1.0 + 0.1 * jnp.abs(jax.random.normal(kv, (oc,), jnp.float32)),
        })
        h = (h - 3) // 2 + 1
    feat = 64 * h * h  # H == W assumed for the demo input
    key, k1, k2, k3, k4 = jax.random.split(key, 5)
    params["fc1_w"] = jax.random.normal(k1, (feat, 512), jnp.float32) / math.sqrt(feat)
    params["fc1_b"] = 0.01 * jax.random.normal(k2, (512,), jnp.float32)
    params["fc2_w"] = jax.random.normal(k3, (512, num_actions), jnp.float32) / math.sqrt(512)
    params["fc2_b"] = 0.01 * jax.random.normal(k4, (num_actions,), jnp.float32)
    return params


# -----------------------------------------------------------------------------
# Pure-JAX reference (same math, f32, no Pallas) for a sanity check
# -----------------------------------------------------------------------------
def _ref_forward(params, x_nchw, eps=BN_EPS, slope=NEG_SLOPE):
    x = x_nchw.astype(jnp.float32)
    for conv, bn in zip(params["convs"], params["bns"]):
        x = jax.lax.conv_general_dilated(
            x, conv["w"], window_strides=(2, 2), padding="VALID",
            dimension_numbers=("NCHW", "OIHW", "NCHW"))
        x = x + conv["b"][None, :, None, None]
        x = jnp.where(x >= 0, x, slope * x)
        sc = bn["gamma"] / jnp.sqrt(bn["var"] + eps)
        sh = bn["beta"] - bn["mean"] * sc
        x = x * sc[None, :, None, None] + sh[None, :, None, None]
    x = x.reshape(x.shape[0], -1)
    x = x @ params["fc1_w"] + params["fc1_b"]
    x = jnp.where(x >= 0, x, slope * x)
    return x @ params["fc2_w"] + params["fc2_b"]


if __name__ == "__main__":
    # 4 stride-2 valid 3x3 convs need >=31 px: (C=4, 32, 32) -> feature_size 64.
    input_shape = (4, 32, 32)
    num_actions = 6
    batch = 2

    key = jax.random.PRNGKey(0)
    kx, kp = jax.random.split(key)
    x = jax.random.normal(kx, (batch,) + input_shape, jnp.float32)

    params = init_params(kp, input_shape, num_actions)
    folded = fold_params(params, input_shape, batch)

    fwd = jax.jit(dqn_cnn_forward)
    out = jax.block_until_ready(fwd(folded, x))
    assert out.shape == (batch, num_actions), out.shape

    ref = jax.block_until_ready(_ref_forward(params, x))
    # bf16 MXU operands with f32 accumulation (per perf guidance) -> tolerance
    # loosened vs a pure-f32 kernel; set MXU_DTYPE = jnp.float32 for bit-tight.
    np.testing.assert_allclose(np.asarray(out), np.asarray(ref),
                               rtol=5e-2, atol=5e-2)

    print("KERNEL_OK")
</pallas_src>

<mosaic_0001>
module attributes {stable_mosaic.version = 11 : i64} {
  func.func @_dqn_fused_kernel(%arg0: memref<64x128xf32, #tpu.memory_space<vmem>>, %arg1: memref<3x30x64xbf16, #tpu.memory_space<vmem>>, %arg2: memref<3x128x480xbf16, #tpu.memory_space<vmem>>, %arg3: memref<3x1x480xf32, #tpu.memory_space<vmem>>, %arg4: memref<3x14x30xbf16, #tpu.memory_space<vmem>>, %arg5: memref<3x480x448xbf16, #tpu.memory_space<vmem>>, %arg6: memref<3x1x448xf32, #tpu.memory_space<vmem>>, %arg7: memref<3x6x14xbf16, #tpu.memory_space<vmem>>, %arg8: memref<3x448x192xbf16, #tpu.memory_space<vmem>>, %arg9: memref<3x1x192xf32, #tpu.memory_space<vmem>>, %arg10: memref<3x2x6xbf16, #tpu.memory_space<vmem>>, %arg11: memref<3x192x64xbf16, #tpu.memory_space<vmem>>, %arg12: memref<3x1x64xf32, #tpu.memory_space<vmem>>, %arg13: memref<1x2x2xbf16, #tpu.memory_space<vmem>>, %arg14: memref<1x64x512xbf16, #tpu.memory_space<vmem>>, %arg15: memref<1x512xf32, #tpu.memory_space<vmem>>, %arg16: memref<512x6xbf16, #tpu.memory_space<vmem>>, %arg17: memref<1x6xf32, #tpu.memory_space<vmem>>, %arg18: memref<2x6xf32, #tpu.memory_space<vmem>>) attributes {dimension_semantics = [], scalar_prefetch = 0 : i64, scratch_operands = 0 : i64, tpu.core_type = #tpu.core_type<tc>} {
    %c0 = arith.constant 0 : index
    %c0_0 = arith.constant 0 : index
    %0 = vector.load %arg0[%c0, %c0_0] : memref<64x128xf32, #tpu.memory_space<vmem>>, vector<64x128xf32>
    %1 = arith.truncf %0 : vector<64x128xf32> to vector<64x128xbf16>
    %c0_1 = arith.constant 0 : index
    %c0_2 = arith.constant 0 : index
    %c0_3 = arith.constant 0 : index
    %2 = vector.load %arg1[%c0_1, %c0_2, %c0_3] : memref<3x30x64xbf16, #tpu.memory_space<vmem>>, vector<1x30x64xbf16>
    %3 = vector.shape_cast %2 : vector<1x30x64xbf16> to vector<30x64xbf16>
    %cst = arith.constant dense<0.000000e+00> : vector<30x128xf32>
    %4 = tpu.matmul %3, %1, %cst {dimension_numbers = #tpu.dot_dimension_numbers<[1], [0], [0], [1], [0, 0, 1, 1], [], []>} : vector<30x64xbf16>, vector<64x128xbf16>, vector<30x128xf32> -> vector<30x128xf32>
    %5 = arith.truncf %4 : vector<30x128xf32> to vector<30x128xbf16>
    %c0_4 = arith.constant 0 : index
    %c0_5 = arith.constant 0 : index
    %c0_6 = arith.constant 0 : index
    %6 = vector.load %arg2[%c0_4, %c0_5, %c0_6] : memref<3x128x480xbf16, #tpu.memory_space<vmem>>, vector<1x128x480xbf16>
    %7 = vector.shape_cast %6 : vector<1x128x480xbf16> to vector<128x480xbf16>
    %cst_7 = arith.constant dense<0.000000e+00> : vector<30x480xf32>
    %8 = tpu.matmul %5, %7, %cst_7 {dimension_numbers = #tpu.dot_dimension_numbers<[1], [0], [0], [1], [0, 0, 1, 1], [], []>} : vector<30x128xbf16>, vector<128x480xbf16>, vector<30x480xf32> -> vector<30x480xf32>
    %c1 = arith.constant 1 : index
    %c0_8 = arith.constant 0 : index
    %c0_9 = arith.constant 0 : index
    %9 = vector.load %arg1[%c1, %c0_8, %c0_9] : memref<3x30x64xbf16, #tpu.memory_space<vmem>>, vector<1x30x64xbf16>
    %10 = vector.shape_cast %9 : vector<1x30x64xbf16> to vector<30x64xbf16>
    %cst_10 = arith.constant dense<0.000000e+00> : vector<30x128xf32>
    %11 = tpu.matmul %10, %1, %cst_10 {dimension_numbers = #tpu.dot_dimension_numbers<[1], [0], [0], [1], [0, 0, 1, 1], [], []>} : vector<30x64xbf16>, vector<64x128xbf16>, vector<30x128xf32> -> vector<30x128xf32>
    %12 = arith.truncf %11 : vector<30x128xf32> to vector<30x128xbf16>
    %c1_11 = arith.constant 1 : index
    %c0_12 = arith.constant 0 : index
    %c0_13 = arith.constant 0 : index
    %13 = vector.load %arg2[%c1_11, %c0_12, %c0_13] : memref<3x128x480xbf16, #tpu.memory_space<vmem>>, vector<1x128x480xbf16>
    %14 = vector.shape_cast %13 : vector<1x128x480xbf16> to vector<128x480xbf16>
    %cst_14 = arith.constant dense<0.000000e+00> : vector<30x480xf32>
    %15 = tpu.matmul %12, %14, %cst_14 {dimension_numbers = #tpu.dot_dimension_numbers<[1], [0], [0], [1], [0, 0, 1, 1], [], []>} : vector<30x128xbf16>, vector<128x480xbf16>, vector<30x480xf32> -> vector<30x480xf32>
    %16 = arith.addf %8, %15 : vector<30x480xf32>
    %c2 = arith.constant 2 : index
    %c0_15 = arith.constant 0 : index
    %c0_16 = arith.constant 0 : index
    %17 = vector.load %arg1[%c2, %c0_15, %c0_16] : memref<3x30x64xbf16, #tpu.memory_space<vmem>>, vector<1x30x64xbf16>
    %18 = vector.shape_cast %17 : vector<1x30x64xbf16> to vector<30x64xbf16>
    %cst_17 = arith.constant dense<0.000000e+00> : vector<30x128xf32>
    %19 = tpu.matmul %18, %1, %cst_17 {dimension_numbers = #tpu.dot_dimension_numbers<[1], [0], [0], [1], [0, 0, 1, 1], [], []>} : vector<30x64xbf16>, vector<64x128xbf16>, vector<30x128xf32> -> vector<30x128xf32>
    %20 = arith.truncf %19 : vector<30x128xf32> to vector<30x128xbf16>
    %c2_18 = arith.constant 2 : index
    %c0_19 = arith.constant 0 : index
    %c0_20 = arith.constant 0 : index
    %21 = vector.load %arg2[%c2_18, %c0_19, %c0_20] : memref<3x128x480xbf16, #tpu.memory_space<vmem>>, vector<1x128x480xbf16>
    %22 = vector.shape_cast %21 : vector<1x128x480xbf16> to vector<128x480xbf16>
    %cst_21 = arith.constant dense<0.000000e+00> : vector<30x480xf32>
    %23 = tpu.matmul %20, %22, %cst_21 {dimension_numbers = #tpu.dot_dimension_numbers<[1], [0], [0], [1], [0, 0, 1, 1], [], []>} : vector<30x128xbf16>, vector<128x480xbf16>, vector<30x480xf32> -> vector<30x480xf32>
    %24 = arith.addf %16, %23 : vector<30x480xf32>
    %c0_22 = arith.constant 0 : index
    %c0_23 = arith.constant 0 : index
    %c0_24 = arith.constant 0 : index
    %25 = vector.load %arg3[%c0_22, %c0_23, %c0_24] : memref<3x1x480xf32, #tpu.memory_space<vmem>>, vector<1x1x480xf32>
    %26 = vector.shape_cast %25 : vector<1x1x480xf32> to vector<1x480xf32>
    %27 = vector.broadcast %26 : vector<1x480xf32> to vector<30x480xf32>
    %28 = arith.addf %24, %27 : vector<30x480xf32>
    %cst_25 = arith.constant 0.000000e+00 : f32
    %29 = vector.broadcast %cst_25 : f32 to vector<30x480xf32>
    %30 = arith.cmpf oge, %28, %29 : vector<30x480xf32>
    %cst_26 = arith.constant 1.000000e-01 : f32
    %31 = vector.broadcast %cst_26 : f32 to vector<30x480xf32>
    %32 = arith.mulf %31, %28 : vector<30x480xf32>
    %33 = arith.select %30, %28, %32 : vector<30x480xi1>, vector<30x480xf32>
    %c1_27 = arith.constant 1 : index
    %c0_28 = arith.constant 0 : index
    %c0_29 = arith.constant 0 : index
    %34 = vector.load %arg3[%c1_27, %c0_28, %c0_29] : memref<3x1x480xf32, #tpu.memory_space<vmem>>, vector<1x1x480xf32>
    %35 = vector.shape_cast %34 : vector<1x1x480xf32> to vector<1x480xf32>
    %36 = vector.broadcast %35 : vector<1x480xf32> to vector<30x480xf32>
    %37 = arith.mulf %33, %36 : vector<30x480xf32>
    %c2_30 = arith.constant 2 : index
    %c0_31 = arith.constant 0 : index
    %c0_32 = arith.constant 0 : index
    %38 = vector.load %arg3[%c2_30, %c0_31, %c0_32] : memref<3x1x480xf32, #tpu.memory_space<vmem>>, vector<1x1x480xf32>
    %39 = vector.shape_cast %38 : vector<1x1x480xf32> to vector<1x480xf32>
    %40 = vector.broadcast %39 : vector<1x480xf32> to vector<30x480xf32>
    %41 = arith.addf %37, %40 : vector<30x480xf32>
    %42 = arith.truncf %41 : vector<30x480xf32> to vector<30x480xbf16>
    %c0_33 = arith.constant 0 : index
    %c0_34 = arith.constant 0 : index
    %c0_35 = arith.constant 0 : index
    %43 = vector.load %arg4[%c0_33, %c0_34, %c0_35] : memref<3x14x30xbf16, #tpu.memory_space<vmem>>, vector<1x14x30xbf16>
    %44 = vector.shape_cast %43 : vector<1x14x30xbf16> to vector<14x30xbf16>
    %cst_36 = arith.constant dense<0.000000e+00> : vector<14x480xf32>
    %45 = tpu.matmul %44, %42, %cst_36 {dimension_numbers = #tpu.dot_dimension_numbers<[1], [0], [0], [1], [0, 0, 1, 1], [], []>} : vector<14x30xbf16>, vector<30x480xbf16>, vector<14x480xf32> -> vector<14x480xf32>
    %46 = arith.truncf %45 : vector<14x480xf32> to vector<14x480xbf16>
    %c0_37 = arith.constant 0 : index
    %c0_38 = arith.constant 0 : index
    %c0_39 = arith.constant 0 : index
    %47 = vector.load %arg5[%c0_37, %c0_38, %c0_39] : memref<3x480x448xbf16, #tpu.memory_space<vmem>>, vector<1x480x448xbf16>
    %48 = vector.shape_cast %47 : vector<1x480x448xbf16> to vector<480x448xbf16>
    %cst_40 = arith.constant dense<0.000000e+00> : vector<14x448xf32>
    %49 = tpu.matmul %46, %48, %cst_40 {dimension_numbers = #tpu.dot_dimension_numbers<[1], [0], [0], [1], [0, 0, 1, 1], [], []>} : vector<14x480xbf16>, vector<480x448xbf16>, vector<14x448xf32> -> vector<14x448xf32>
    %c1_41 = arith.constant 1 : index
    %c0_42 = arith.constant 0 : index
    %c0_43 = arith.constant 0 : index
    %50 = vector.load %arg4[%c1_41, %c0_42, %c0_43] : memref<3x14x30xbf16, #tpu.memory_space<vmem>>, vector<1x14x30xbf16>
    %51 = vector.shape_cast %50 : vector<1x14x30xbf16> to vector<14x30xbf16>
    %cst_44 = arith.constant dense<0.000000e+00> : vector<14x480xf32>
    %52 = tpu.matmul %51, %42, %cst_44 {dimension_numbers = #tpu.dot_dimension_numbers<[1], [0], [0], [1], [0, 0, 1, 1], [], []>} : vector<14x30xbf16>, vector<30x480xbf16>, vector<14x480xf32> -> vector<14x480xf32>
    %53 = arith.truncf %52 : vector<14x480xf32> to vector<14x480xbf16>
    %c1_45 = arith.constant 1 : index
    %c0_46 = arith.constant 0 : index
    %c0_47 = arith.constant 0 : index
    %54 = vector.load %arg5[%c1_45, %c0_46, %c0_47] : memref<3x480x448xbf16, #tpu.memory_space<vmem>>, vector<1x480x448xbf16>
    %55 = vector.shape_cast %54 : vector<1x480x448xbf16> to vector<480x448xbf16>
    %cst_48 = arith.constant dense<0.000000e+00> : vector<14x448xf32>
    %56 = tpu.matmul %53, %55, %cst_48 {dimension_numbers = #tpu.dot_dimension_numbers<[1], [0], [0], [1], [0, 0, 1, 1], [], []>} : vector<14x480xbf16>, vector<480x448xbf16>, vector<14x448xf32> -> vector<14x448xf32>
    %57 = arith.addf %49, %56 : vector<14x448xf32>
    %c2_49 = arith.constant 2 : index
    %c0_50 = arith.constant 0 : index
    %c0_51 = arith.constant 0 : index
    %58 = vector.load %arg4[%c2_49, %c0_50, %c0_51] : memref<3x14x30xbf16, #tpu.memory_space<vmem>>, vector<1x14x30xbf16>
    %59 = vector.shape_cast %58 : vector<1x14x30xbf16> to vector<14x30xbf16>
    %cst_52 = arith.constant dense<0.000000e+00> : vector<14x480xf32>
    %60 = tpu.matmul %59, %42, %cst_52 {dimension_numbers = #tpu.dot_dimension_numbers<[1], [0], [0], [1], [0, 0, 1, 1], [], []>} : vector<14x30xbf16>, vector<30x480xbf16>, vector<14x480xf32> -> vector<14x480xf32>
    %61 = arith.truncf %60 : vector<14x480xf32> to vector<14x480xbf16>
    %c2_53 = arith.constant 2 : index
    %c0_54 = arith.constant 0 : index
    %c0_55 = arith.constant 0 : index
    %62 = vector.load %arg5[%c2_53, %c0_54, %c0_55] : memref<3x480x448xbf16, #tpu.memory_space<vmem>>, vector<1x480x448xbf16>
    %63 = vector.shape_cast %62 : vector<1x480x448xbf16> to vector<480x448xbf16>
    %cst_56 = arith.constant dense<0.000000e+00> : vector<14x448xf32>
    %64 = tpu.matmul %61, %63, %cst_56 {dimension_numbers = #tpu.dot_dimension_numbers<[1], [0], [0], [1], [0, 0, 1, 1], [], []>} : vector<14x480xbf16>, vector<480x448xbf16>, vector<14x448xf32> -> vector<14x448xf32>
    %65 = arith.addf %57, %64 : vector<14x448xf32>
    %c0_57 = arith.constant 0 : index
    %c0_58 = arith.constant 0 : index
    %c0_59 = arith.constant 0 : index
    %66 = vector.load %arg6[%c0_57, %c0_58, %c0_59] : memref<3x1x448xf32, #tpu.memory_space<vmem>>, vector<1x1x448xf32>
    %67 = vector.shape_cast %66 : vector<1x1x448xf32> to vector<1x448xf32>
    %68 = vector.broadcast %67 : vector<1x448xf32> to vector<14x448xf32>
    %69 = arith.addf %65, %68 : vector<14x448xf32>
    %cst_60 = arith.constant 0.000000e+00 : f32
    %70 = vector.broadcast %cst_60 : f32 to vector<14x448xf32>
    %71 = arith.cmpf oge, %69, %70 : vector<14x448xf32>
    %cst_61 = arith.constant 1.000000e-01 : f32
    %72 = vector.broadcast %cst_61 : f32 to vector<14x448xf32>
    %73 = arith.mulf %72, %69 : vector<14x448xf32>
    %74 = arith.select %71, %69, %73 : vector<14x448xi1>, vector<14x448xf32>
    %c1_62 = arith.constant 1 : index
    %c0_63 = arith.constant 0 : index
    %c0_64 = arith.constant 0 : index
    %75 = vector.load %arg6[%c1_62, %c0_63, %c0_64] : memref<3x1x448xf32, #tpu.memory_space<vmem>>, vector<1x1x448xf32>
    %76 = vector.shape_cast %75 : vector<1x1x448xf32> to vector<1x448xf32>
    %77 = vector.broadcast %76 : vector<1x448xf32> to vector<14x448xf32>
    %78 = arith.mulf %74, %77 : vector<14x448xf32>
    %c2_65 = arith.constant 2 : index
    %c0_66 = arith.constant 0 : index
    %c0_67 = arith.constant 0 : index
    %79 = vector.load %arg6[%c2_65, %c0_66, %c0_67] : memref<3x1x448xf32, #tpu.memory_space<vmem>>, vector<1x1x448xf32>
    %80 = vector.shape_cast %79 : vector<1x1x448xf32> to vector<1x448xf32>
    %81 = vector.broadcast %80 : vector<1x448xf32> to vector<14x448xf32>
    %82 = arith.addf %78, %81 : vector<14x448xf32>
    %83 = arith.truncf %82 : vector<14x448xf32> to vector<14x448xbf16>
    %c0_68 = arith.constant 0 : index
    %c0_69 = arith.constant 0 : index
    %c0_70 = arith.constant 0 : index
    %84 = vector.load %arg7[%c0_68, %c0_69, %c0_70] : memref<3x6x14xbf16, #tpu.memory_space<vmem>>, vector<1x6x14xbf16>
    %85 = vector.shape_cast %84 : vector<1x6x14xbf16> to vector<6x14xbf16>
    %cst_71 = arith.constant dense<0.000000e+00> : vector<6x448xf32>
    %86 = tpu.matmul %85, %83, %cst_71 {dimension_numbers = #tpu.dot_dimension_numbers<[1], [0], [0], [1], [0, 0, 1, 1], [], []>} : vector<6x14xbf16>, vector<14x448xbf16>, vector<6x448xf32> -> vector<6x448xf32>
    %87 = arith.truncf %86 : vector<6x448xf32> to vector<6x448xbf16>
    %c0_72 = arith.constant 0 : index
    %c0_73 = arith.constant 0 : index
    %c0_74 = arith.constant 0 : index
    %88 = vector.load %arg8[%c0_72, %c0_73, %c0_74] : memref<3x448x192xbf16, #tpu.memory_space<vmem>>, vector<1x448x192xbf16>
    %89 = vector.shape_cast %88 : vector<1x448x192xbf16> to vector<448x192xbf16>
    %cst_75 = arith.constant dense<0.000000e+00> : vector<6x192xf32>
    %90 = tpu.matmul %87, %89, %cst_75 {dimension_numbers = #tpu.dot_dimension_numbers<[1], [0], [0], [1], [0, 0, 1, 1], [], []>} : vector<6x448xbf16>, vector<448x192xbf16>, vector<6x192xf32> -> vector<6x192xf32>
    %c1_76 = arith.constant 1 : index
    %c0_77 = arith.constant 0 : index
    %c0_78 = arith.constant 0 : index
    %91 = vector.load %arg7[%c1_76, %c0_77, %c0_78] : memref<3x6x14xbf16, #tpu.memory_space<vmem>>, vector<1x6x14xbf16>
    %92 = vector.shape_cast %91 : vector<1x6x14xbf16> to vector<6x14xbf16>
    %cst_79 = arith.constant dense<0.000000e+00> : vector<6x448xf32>
    %93 = tpu.matmul %92, %83, %cst_79 {dimension_numbers = #tpu.dot_dimension_numbers<[1], [0], [0], [1], [0, 0, 1, 1], [], []>} : vector<6x14xbf16>, vector<14x448xbf16>, vector<6x448xf32> -> vector<6x448xf32>
    %94 = arith.truncf %93 : vector<6x448xf32> to vector<6x448xbf16>
    %c1_80 = arith.constant 1 : index
    %c0_81 = arith.constant 0 : index
    %c0_82 = arith.constant 0 : index
    %95 = vector.load %arg8[%c1_80, %c0_81, %c0_82] : memref<3x448x192xbf16, #tpu.memory_space<vmem>>, vector<1x448x192xbf16>
    %96 = vector.shape_cast %95 : vector<1x448x192xbf16> to vector<448x192xbf16>
    %cst_83 = arith.constant dense<0.000000e+00> : vector<6x192xf32>
    %97 = tpu.matmul %94, %96, %cst_83 {dimension_numbers = #tpu.dot_dimension_numbers<[1], [0], [0], [1], [0, 0, 1, 1], [], []>} : vector<6x448xbf16>, vector<448x192xbf16>, vector<6x192xf32> -> vector<6x192xf32>
    %98 = arith.addf %90, %97 : vector<6x192xf32>
    %c2_84 = arith.constant 2 : index
    %c0_85 = arith.constant 0 : index
    %c0_86 = arith.constant 0 : index
    %99 = vector.load %arg7[%c2_84, %c0_85, %c0_86] : memref<3x6x14xbf16, #tpu.memory_space<vmem>>, vector<1x6x14xbf16>
    %100 = vector.shape_cast %99 : vector<1x6x14xbf16> to vector<6x14xbf16>
    %cst_87 = arith.constant dense<0.000000e+00> : vector<6x448xf32>
    %101 = tpu.matmul %100, %83, %cst_87 {dimension_numbers = #tpu.dot_dimension_numbers<[1], [0], [0], [1], [0, 0, 1, 1], [], []>} : vector<6x14xbf16>, vector<14x448xbf16>, vector<6x448xf32> -> vector<6x448xf32>
    %102 = arith.truncf %101 : vector<6x448xf32> to vector<6x448xbf16>
    %c2_88 = arith.constant 2 : index
    %c0_89 = arith.constant 0 : index
    %c0_90 = arith.constant 0 : index
    %103 = vector.load %arg8[%c2_88, %c0_89, %c0_90] : memref<3x448x192xbf16, #tpu.memory_space<vmem>>, vector<1x448x192xbf16>
    %104 = vector.shape_cast %103 : vector<1x448x192xbf16> to vector<448x192xbf16>
    %cst_91 = arith.constant dense<0.000000e+00> : vector<6x192xf32>
    %105 = tpu.matmul %102, %104, %cst_91 {dimension_numbers = #tpu.dot_dimension_numbers<[1], [0], [0], [1], [0, 0, 1, 1], [], []>} : vector<6x448xbf16>, vector<448x192xbf16>, vector<6x192xf32> -> vector<6x192xf32>
    %106 = arith.addf %98, %105 : vector<6x192xf32>
    %c0_92 = arith.constant 0 : index
    %c0_93 = arith.constant 0 : index
    %c0_94 = arith.constant 0 : index
    %107 = vector.load %arg9[%c0_92, %c0_93, %c0_94] : memref<3x1x192xf32, #tpu.memory_space<vmem>>, vector<1x1x192xf32>
    %108 = vector.shape_cast %107 : vector<1x1x192xf32> to vector<1x192xf32>
    %109 = vector.broadcast %108 : vector<1x192xf32> to vector<6x192xf32>
    %110 = arith.addf %106, %109 : vector<6x192xf32>
    %cst_95 = arith.constant 0.000000e+00 : f32
    %111 = vector.broadcast %cst_95 : f32 to vector<6x192xf32>
    %112 = arith.cmpf oge, %110, %111 : vector<6x192xf32>
    %cst_96 = arith.constant 1.000000e-01 : f32
    %113 = vector.broadcast %cst_96 : f32 to vector<6x192xf32>
    %114 = arith.mulf %113, %110 : vector<6x192xf32>
    %115 = arith.select %112, %110, %114 : vector<6x192xi1>, vector<6x192xf32>
    %c1_97 = arith.constant 1 : index
    %c0_98 = arith.constant 0 : index
    %c0_99 = arith.constant 0 : index
    %116 = vector.load %arg9[%c1_97, %c0_98, %c0_99] : memref<3x1x192xf32, #tpu.memory_space<vmem>>, vector<1x1x192xf32>
    %117 = vector.shape_cast %116 : vector<1x1x192xf32> to vector<1x192xf32>
    %118 = vector.broadcast %117 : vector<1x192xf32> to vector<6x192xf32>
    %119 = arith.mulf %115, %118 : vector<6x192xf32>
    %c2_100 = arith.constant 2 : index
    %c0_101 = arith.constant 0 : index
    %c0_102 = arith.constant 0 : index
    %120 = vector.load %arg9[%c2_100, %c0_101, %c0_102] : memref<3x1x192xf32, #tpu.memory_space<vmem>>, vector<1x1x192xf32>
    %121 = vector.shape_cast %120 : vector<1x1x192xf32> to vector<1x192xf32>
    %122 = vector.broadcast %121 : vector<1x192xf32> to vector<6x192xf32>
    %123 = arith.addf %119, %122 : vector<6x192xf32>
    %124 = arith.truncf %123 : vector<6x192xf32> to vector<6x192xbf16>
    %c0_103 = arith.constant 0 : index
    %c0_104 = arith.constant 0 : index
    %c0_105 = arith.constant 0 : index
    %125 = vector.load %arg10[%c0_103, %c0_104, %c0_105] : memref<3x2x6xbf16, #tpu.memory_space<vmem>>, vector<1x2x6xbf16>
    %126 = vector.shape_cast %125 : vector<1x2x6xbf16> to vector<2x6xbf16>
    %cst_106 = arith.constant dense<0.000000e+00> : vector<2x192xf32>
    %127 = tpu.matmul %126, %124, %cst_106 {dimension_numbers = #tpu.dot_dimension_numbers<[1], [0], [0], [1], [0, 0, 1, 1], [], []>} : vector<2x6xbf16>, vector<6x192xbf16>, vector<2x192xf32> -> vector<2x192xf32>
    %128 = arith.truncf %127 : vector<2x192xf32> to vector<2x192xbf16>
    %c0_107 = arith.constant 0 : index
    %c0_108 = arith.constant 0 : index
    %c0_109 = arith.constant 0 : index
    %129 = vector.load %arg11[%c0_107, %c0_108, %c0_109] : memref<3x192x64xbf16, #tpu.memory_space<vmem>>, vector<1x192x64xbf16>
    %130 = vector.shape_cast %129 : vector<1x192x64xbf16> to vector<192x64xbf16>
    %cst_110 = arith.constant dense<0.000000e+00> : vector<2x64xf32>
    %131 = tpu.matmul %128, %130, %cst_110 {dimension_numbers = #tpu.dot_dimension_numbers<[1], [0], [0], [1], [0, 0, 1, 1], [], []>} : vector<2x192xbf16>, vector<192x64xbf16>, vector<2x64xf32> -> vector<2x64xf32>
    %c1_111 = arith.constant 1 : index
    %c0_112 = arith.constant 0 : index
    %c0_113 = arith.constant 0 : index
    %132 = vector.load %arg10[%c1_111, %c0_112, %c0_113] : memref<3x2x6xbf16, #tpu.memory_space<vmem>>, vector<1x2x6xbf16>
    %133 = vector.shape_cast %132 : vector<1x2x6xbf16> to vector<2x6xbf16>
    %cst_114 = arith.constant dense<0.000000e+00> : vector<2x192xf32>
    %134 = tpu.matmul %133, %124, %cst_114 {dimension_numbers = #tpu.dot_dimension_numbers<[1], [0], [0], [1], [0, 0, 1, 1], [], []>} : vector<2x6xbf16>, vector<6x192xbf16>, vector<2x192xf32> -> vector<2x192xf32>
    %135 = arith.truncf %134 : vector<2x192xf32> to vector<2x192xbf16>
    %c1_115 = arith.constant 1 : index
    %c0_116 = arith.constant 0 : index
    %c0_117 = arith.constant 0 : index
    %136 = vector.load %arg11[%c1_115, %c0_116, %c0_117] : memref<3x192x64xbf16, #tpu.memory_space<vmem>>, vector<1x192x64xbf16>
    %137 = vector.shape_cast %136 : vector<1x192x64xbf16> to vector<192x64xbf16>
    %cst_118 = arith.constant dense<0.000000e+00> : vector<2x64xf32>
    %138 = tpu.matmul %135, %137, %cst_118 {dimension_numbers = #tpu.dot_dimension_numbers<[1], [0], [0], [1], [0, 0, 1, 1], [], []>} : vector<2x192xbf16>, vector<192x64xbf16>, vector<2x64xf32> -> vector<2x64xf32>
    %139 = arith.addf %131, %138 : vector<2x64xf32>
    %c2_119 = arith.constant 2 : index
    %c0_120 = arith.constant 0 : index
    %c0_121 = arith.constant 0 : index
    %140 = vector.load %arg10[%c2_119, %c0_120, %c0_121] : memref<3x2x6xbf16, #tpu.memory_space<vmem>>, vector<1x2x6xbf16>
    %141 = vector.shape_cast %140 : vector<1x2x6xbf16> to vector<2x6xbf16>
    %cst_122 = arith.constant dense<0.000000e+00> : vector<2x192xf32>
    %142 = tpu.matmul %141, %124, %cst_122 {dimension_numbers = #tpu.dot_dimension_numbers<[1], [0], [0], [1], [0, 0, 1, 1], [], []>} : vector<2x6xbf16>, vector<6x192xbf16>, vector<2x192xf32> -> vector<2x192xf32>
    %143 = arith.truncf %142 : vector<2x192xf32> to vector<2x192xbf16>
    %c2_123 = arith.constant 2 : index
    %c0_124 = arith.constant 0 : index
    %c0_125 = arith.constant 0 : index
    %144 = vector.load %arg11[%c2_123, %c0_124, %c0_125] : memref<3x192x64xbf16, #tpu.memory_space<vmem>>, vector<1x192x64xbf16>
    %145 = vector.shape_cast %144 : vector<1x192x64xbf16> to vector<192x64xbf16>
    %cst_126 = arith.constant dense<0.000000e+00> : vector<2x64xf32>
    %146 = tpu.matmul %143, %145, %cst_126 {dimension_numbers = #tpu.dot_dimension_numbers<[1], [0], [0], [1], [0, 0, 1, 1], [], []>} : vector<2x192xbf16>, vector<192x64xbf16>, vector<2x64xf32> -> vector<2x64xf32>
    %147 = arith.addf %139, %146 : vector<2x64xf32>
    %c0_127 = arith.constant 0 : index
    %c0_128 = arith.constant 0 : index
    %c0_129 = arith.constant 0 : index
    %148 = vector.load %arg12[%c0_127, %c0_128, %c0_129] : memref<3x1x64xf32, #tpu.memory_space<vmem>>, vector<1x1x64xf32>
    %149 = vector.shape_cast %148 : vector<1x1x64xf32> to vector<1x64xf32>
    %150 = vector.broadcast %149 : vector<1x64xf32> to vector<2x64xf32>
    %151 = arith.addf %147, %150 : vector<2x64xf32>
    %cst_130 = arith.constant 0.000000e+00 : f32
    %152 = vector.broadcast %cst_130 : f32 to vector<2x64xf32>
    %153 = arith.cmpf oge, %151, %152 : vector<2x64xf32>
    %cst_131 = arith.constant 1.000000e-01 : f32
    %154 = vector.broadcast %cst_131 : f32 to vector<2x64xf32>
    %155 = arith.mulf %154, %151 : vector<2x64xf32>
    %156 = arith.select %153, %151, %155 : vector<2x64xi1>, vector<2x64xf32>
    %c1_132 = arith.constant 1 : index
    %c0_133 = arith.constant 0 : index
    %c0_134 = arith.constant 0 : index
    %157 = vector.load %arg12[%c1_132, %c0_133, %c0_134] : memref<3x1x64xf32, #tpu.memory_space<vmem>>, vector<1x1x64xf32>
    %158 = vector.shape_cast %157 : vector<1x1x64xf32> to vector<1x64xf32>
    %159 = vector.broadcast %158 : vector<1x64xf32> to vector<2x64xf32>
    %160 = arith.mulf %156, %159 : vector<2x64xf32>
    %c2_135 = arith.constant 2 : index
    %c0_136 = arith.constant 0 : index
    %c0_137 = arith.constant 0 : index
    %161 = vector.load %arg12[%c2_135, %c0_136, %c0_137] : memref<3x1x64xf32, #tpu.memory_space<vmem>>, vector<1x1x64xf32>
    %162 = vector.shape_cast %161 : vector<1x1x64xf32> to vector<1x64xf32>
    %163 = vector.broadcast %162 : vector<1x64xf32> to vector<2x64xf32>
    %164 = arith.addf %160, %163 : vector<2x64xf32>
    %165 = arith.truncf %164 : vector<2x64xf32> to vector<2x64xbf16>
    %c0_138 = arith.constant 0 : index
    %c0_139 = arith.constant 0 : index
    %c0_140 = arith.constant 0 : index
    %166 = vector.load %arg13[%c0_138, %c0_139, %c0_140] : memref<1x2x2xbf16, #tpu.memory_space<vmem>>, vector<1x2x2xbf16>
    %167 = vector.shape_cast %166 : vector<1x2x2xbf16> to vector<2x2xbf16>
    %cst_141 = arith.constant dense<0.000000e+00> : vector<2x64xf32>
    %168 = tpu.matmul %167, %165, %cst_141 {dimension_numbers = #tpu.dot_dimension_numbers<[1], [0], [0], [1], [0, 0, 1, 1], [], []>} : vector<2x2xbf16>, vector<2x64xbf16>, vector<2x64xf32> -> vector<2x64xf32>
    %169 = arith.truncf %168 : vector<2x64xf32> to vector<2x64xbf16>
    %c0_142 = arith.constant 0 : index
    %c0_143 = arith.constant 0 : index
    %c0_144 = arith.constant 0 : index
    %170 = vector.load %arg14[%c0_142, %c0_143, %c0_144] : memref<1x64x512xbf16, #tpu.memory_space<vmem>>, vector<1x64x512xbf16>
    %171 = vector.shape_cast %170 : vector<1x64x512xbf16> to vector<64x512xbf16>
    %cst_145 = arith.constant dense<0.000000e+00> : vector<2x512xf32>
    %172 = tpu.matmul %169, %171, %cst_145 {dimension_numbers = #tpu.dot_dimension_numbers<[1], [0], [0], [1], [0, 0, 1, 1], [], []>} : vector<2x64xbf16>, vector<64x512xbf16>, vector<2x512xf32> -> vector<2x512xf32>
    %c0_146 = arith.constant 0 : index
    %c0_147 = arith.constant 0 : index
    %173 = vector.load %arg15[%c0_146, %c0_147] : memref<1x512xf32, #tpu.memory_space<vmem>>, vector<1x512xf32>
    %174 = vector.broadcast %173 : vector<1x512xf32> to vector<2x512xf32>
    %175 = arith.addf %172, %174 : vector<2x512xf32>
    %cst_148 = arith.constant 0.000000e+00 : f32
    %176 = vector.broadcast %cst_148 : f32 to vector<2x512xf32>
    %177 = arith.cmpf oge, %175, %176 : vector<2x512xf32>
    %cst_149 = arith.constant 1.000000e-01 : f32
    %178 = vector.broadcast %cst_149 : f32 to vector<2x512xf32>
    %179 = arith.mulf %178, %175 : vector<2x512xf32>
    %180 = arith.select %177, %175, %179 : vector<2x512xi1>, vector<2x512xf32>
    %181 = arith.truncf %180 : vector<2x512xf32> to vector<2x512xbf16>
    %c0_150 = arith.constant 0 : index
    %c0_151 = arith.constant 0 : index
    %182 = vector.load %arg16[%c0_150, %c0_151] : memref<512x6xbf16, #tpu.memory_space<vmem>>, vector<512x6xbf16>
    %cst_152 = arith.constant dense<0.000000e+00> : vector<2x6xf32>
    %183 = tpu.matmul %181, %182, %cst_152 {dimension_numbers = #tpu.dot_dimension_numbers<[1], [0], [0], [1], [0, 0, 1, 1], [], []>} : vector<2x512xbf16>, vector<512x6xbf16>, vector<2x6xf32> -> vector<2x6xf32>
    %c0_153 = arith.constant 0 : index
    %c0_154 = arith.constant 0 : index
    %184 = vector.load %arg17[%c0_153, %c0_154] : memref<1x6xf32, #tpu.memory_space<vmem>>, vector<1x6xf32>
    %185 = vector.broadcast %184 : vector<1x6xf32> to vector<2x6xf32>
    %186 = arith.addf %183, %185 : vector<2x6xf32>
    %c0_155 = arith.constant 0 : index
    %c0_156 = arith.constant 0 : index
    %187 = vector.load %arg18[%c0_155, %c0_156] : memref<2x6xf32, #tpu.memory_space<vmem>>, vector<2x6xf32>
    tpu.vector_store %arg18[%c0_155, %c0_156], %186 {strides = array<i32>} : memref<2x6xf32, #tpu.memory_space<vmem>>, vector<2x6xf32>,
    return
  }
}

</mosaic_0001>

<llo_original>
// kernel: dqn_cnn_forward.1
$region0: #{dqn_cnn_forward.1}
  #allocation0 [shape = 'u32[]', space=smem, size = 0x4, offset = 0x4, fixed_abs, tag = 'smem constant byte address 0x4 - core index']
  #allocation1 [shape = 'u32[72,128]{1,0:T(1,128)}', space=vmem, size = 0x9000, scoped, tag = 'internal scratch']
  %s0 = inlined_call_operand.vmem [shape: f32[64,128], index: 0, kind: input, shape index: {}]
  %s1 = inlined_call_operand.vmem [shape: bf16[3,30,64], index: 1, kind: input, shape index: {}]
  %s2 = inlined_call_operand.vmem [shape: bf16[3,128,480], index: 2, kind: input, shape index: {}]
  %s3 = inlined_call_operand.vmem [shape: f32[3,1,480], index: 3, kind: input, shape index: {}]
  %s4 = inlined_call_operand.vmem [shape: bf16[3,14,30], index: 4, kind: input, shape index: {}]
  %s5 = inlined_call_operand.vmem [shape: bf16[3,480,448], index: 5, kind: input, shape index: {}]
  %s6 = inlined_call_operand.vmem [shape: f32[3,1,448], index: 6, kind: input, shape index: {}]
  %s7 = inlined_call_operand.vmem [shape: bf16[3,6,14], index: 7, kind: input, shape index: {}]
  %s8 = inlined_call_operand.vmem [shape: bf16[3,448,192], index: 8, kind: input, shape index: {}]
  %s9 = inlined_call_operand.vmem [shape: f32[3,1,192], index: 9, kind: input, shape index: {}]
  %s10 = inlined_call_operand.vmem [shape: bf16[3,2,6], index: 10, kind: input, shape index: {}]
  %s11 = inlined_call_operand.vmem [shape: bf16[3,192,64], index: 11, kind: input, shape index: {}]
  %s12 = inlined_call_operand.vmem [shape: f32[3,1,64], index: 12, kind: input, shape index: {}]
  %s13 = inlined_call_operand.vmem [shape: bf16[1,2,2], index: 13, kind: input, shape index: {}]
  %s14 = inlined_call_operand.vmem [shape: bf16[1,64,512], index: 14, kind: input, shape index: {}]
  %s15 = inlined_call_operand.vmem [shape: f32[1,512], index: 15, kind: input, shape index: {}]
  %s16 = inlined_call_operand.vmem [shape: bf16[512,6], index: 16, kind: input, shape index: {}]
  %s17 = inlined_call_operand.vmem [shape: f32[1,6], index: 17, kind: input, shape index: {}]
  %s18 = inlined_call_operand.hbm [shape: f32[2,6], index: 18, kind: output, shape index: {}]
  %s19 = sld [smem:[#allocation0]]
  $region82: #{dqn_cnn_forward.1} parent=0
    _
  %s21 = ssub.s32 1, %s19
  %s22 = scalar_select 0, %s21, %s19
  $region1: #{dqn_cnn_forward.1} parent=0
    #allocation2 [shape = 'u8[1024]{0}', space=vmem, size = 0x400, scoped, tag = 'output window, operand 0, single buffered']
    #allocation3 [shape = 's32[1]{0}', space=sflag, size = 0x4, scoped, tag = 'scoped memory for dqn_cnn_forward.1']
    %23 = vsyncpa [#allocation3], 0
    // Predicated region
    $region2: #{dqn_cnn_forward.1} parent=1 // pred_check
      _
    $region3: #{dqn_cnn_forward.1} parent=1 // pred_check_branch
      %25 = sbr.rel (0) target = $region5
    $region4: #{dqn_cnn_forward.1} parent=1 // pred_region
      _
    $region5: #{dqn_cnn_forward.1} parent=1 // pred_fallthru
      _
    // Predicated region
    $region6: #{dqn_cnn_forward.1} parent=1 // pred_check
      _
    $region7: #{dqn_cnn_forward.1} parent=1 // pred_check_branch
      %27 = sbr.rel (0) target = $region9
    $region8: #{dqn_cnn_forward.1} parent=1 // pred_region
      _
    $region9: #{dqn_cnn_forward.1} parent=1 // pred_fallthru
      _
    // Predicated region
    $region10: #{dqn_cnn_forward.1} parent=1 // pred_check
      _
    $region11: #{dqn_cnn_forward.1} parent=1 // pred_check_branch
      %29 = sbr.rel (0) target = $region13
    $region12: #{dqn_cnn_forward.1} parent=1 // pred_region
      _
    $region13: #{dqn_cnn_forward.1} parent=1 // pred_fallthru
      _
    // Predicated region
    $region14: #{dqn_cnn_forward.1} parent=1 // pred_check
      _
    $region15: #{dqn_cnn_forward.1} parent=1 // pred_check_branch
      %31 = sbr.rel (0) target = $region17
    $region16: #{dqn_cnn_forward.1} parent=1 // pred_region
      _
    $region17: #{dqn_cnn_forward.1} parent=1 // pred_fallthru
      _
    // Predicated region
    $region18: #{dqn_cnn_forward.1} parent=1 // pred_check
      _
    $region19: #{dqn_cnn_forward.1} parent=1 // pred_check_branch
      %33 = sbr.rel (0) target = $region21
    $region20: #{dqn_cnn_forward.1} parent=1 // pred_region
      _
    $region21: #{dqn_cnn_forward.1} parent=1 // pred_fallthru
      _
    // Predicated region
    $region22: #{dqn_cnn_forward.1} parent=1 // pred_check
      _
    $region23: #{dqn_cnn_forward.1} parent=1 // pred_check_branch
      %35 = sbr.rel (0) target = $region25
    $region24: #{dqn_cnn_forward.1} parent=1 // pred_region
      _
    $region25: #{dqn_cnn_forward.1} parent=1 // pred_fallthru
      _
    // Predicated region
    $region26: #{dqn_cnn_forward.1} parent=1 // pred_check
      _
    $region27: #{dqn_cnn_forward.1} parent=1 // pred_check_branch
      %37 = sbr.rel (0) target = $region29
    $region28: #{dqn_cnn_forward.1} parent=1 // pred_region
      _
    $region29: #{dqn_cnn_forward.1} parent=1 // pred_fallthru
      _
    // Predicated region
    $region30: #{dqn_cnn_forward.1} parent=1 // pred_check
      _
    $region31: #{dqn_cnn_forward.1} parent=1 // pred_check_branch
      %39 = sbr.rel (0) target = $region33
    $region32: #{dqn_cnn_forward.1} parent=1 // pred_region
      _
    $region33: #{dqn_cnn_forward.1} parent=1 // pred_fallthru
      _
    // Predicated region
    $region34: #{dqn_cnn_forward.1} parent=1 // pred_check
      _
    $region35: #{dqn_cnn_forward.1} parent=1 // pred_check_branch
      %41 = sbr.rel (0) target = $region37
    $region36: #{dqn_cnn_forward.1} parent=1 // pred_region
      _
    $region37: #{dqn_cnn_forward.1} parent=1 // pred_fallthru
      _
    // Predicated region
    $region38: #{dqn_cnn_forward.1} parent=1 // pred_check
      _
    $region39: #{dqn_cnn_forward.1} parent=1 // pred_check_branch
      %43 = sbr.rel (0) target = $region41
    $region40: #{dqn_cnn_forward.1} parent=1 // pred_region
      _
    $region41: #{dqn_cnn_forward.1} parent=1 // pred_fallthru
      _
    // Predicated region
    $region42: #{dqn_cnn_forward.1} parent=1 // pred_check
      _
    $region43: #{dqn_cnn_forward.1} parent=1 // pred_check_branch
      %45 = sbr.rel (0) target = $region45
    $region44: #{dqn_cnn_forward.1} parent=1 // pred_region
      _
    $region45: #{dqn_cnn_forward.1} parent=1 // pred_fallthru
      _
    // Predicated region
    $region46: #{dqn_cnn_forward.1} parent=1 // pred_check
      _
    $region47: #{dqn_cnn_forward.1} parent=1 // pred_check_branch
      %47 = sbr.rel (0) target = $region49
    $region48: #{dqn_cnn_forward.1} parent=1 // pred_region
      _
    $region49: #{dqn_cnn_forward.1} parent=1 // pred_fallthru
      _
    // Predicated region
    $region50: #{dqn_cnn_forward.1} parent=1 // pred_check
      _
    $region51: #{dqn_cnn_forward.1} parent=1 // pred_check_branch
      %49 = sbr.rel (0) target = $region53
    $region52: #{dqn_cnn_forward.1} parent=1 // pred_region
      _
    $region53: #{dqn_cnn_forward.1} parent=1 // pred_fallthru
      _
    // Predicated region
    $region54: #{dqn_cnn_forward.1} parent=1 // pred_check
      _
    $region55: #{dqn_cnn_forward.1} parent=1 // pred_check_branch
      %51 = sbr.rel (0) target = $region57
    $region56: #{dqn_cnn_forward.1} parent=1 // pred_region
      _
    $region57: #{dqn_cnn_forward.1} parent=1 // pred_fallthru
      _
    // Predicated region
    $region58: #{dqn_cnn_forward.1} parent=1 // pred_check
      _
    $region59: #{dqn_cnn_forward.1} parent=1 // pred_check_branch
      %53 = sbr.rel (0) target = $region61
    $region60: #{dqn_cnn_forward.1} parent=1 // pred_region
      _
    $region61: #{dqn_cnn_forward.1} parent=1 // pred_fallthru
      _
    // Predicated region
    $region62: #{dqn_cnn_forward.1} parent=1 // pred_check
      _
    $region63: #{dqn_cnn_forward.1} parent=1 // pred_check_branch
      %55 = sbr.rel (0) target = $region65
    $region64: #{dqn_cnn_forward.1} parent=1 // pred_region
      _
    $region65: #{dqn_cnn_forward.1} parent=1 // pred_fallthru
      _
    // Predicated region
    $region66: #{dqn_cnn_forward.1} parent=1 // pred_check
      _
    $region67: #{dqn_cnn_forward.1} parent=1 // pred_check_branch
      %57 = sbr.rel (0) target = $region69
    $region68: #{dqn_cnn_forward.1} parent=1 // pred_region
      _
    $region69: #{dqn_cnn_forward.1} parent=1 // pred_fallthru
      _
    // Predicated region
    $region70: #{dqn_cnn_forward.1} parent=1 // pred_check
      _
    $region71: #{dqn_cnn_forward.1} parent=1 // pred_check_branch
      %59 = sbr.rel (0) target = $region73
    $region72: #{dqn_cnn_forward.1} parent=1 // pred_region
      _
    $region73: #{dqn_cnn_forward.1} parent=1 // pred_fallthru
      _
    %v61 = vld [vmem:[%s0] sm:$0xff]
    %v62 = vld [vmem:[%s0 + $0x8] sm:$0xff]
    %v63 = vld [vmem:[%s0 + $0x10] sm:$0xff]
    %v64 = vld [vmem:[%s0 + $0x18] sm:$0xff]
    %v65 = vld [vmem:[%s0 + $0x20] sm:$0xff]
    %v66 = vld [vmem:[%s0 + $0x28] sm:$0xff]
    %v67 = vld [vmem:[%s0 + $0x30] sm:$0xff]
    %v68 = vld [vmem:[%s0 + $0x38] sm:$0xff]
    %v69 = vpack.c.bf16 %v62, %v61
    %v70 = vpack.c.bf16 %v64, %v63
    %v71 = vpack.c.bf16 %v66, %v65
    %v72 = vpack.c.bf16 %v68, %v67
    %v73 = vld [vmem:[%s1] sm:$0xf]
    %v74 = vld [vmem:[%s1 + $0x4] sm:$0xf]
    %v75 = vld [vmem:[%s1 + $0x8] sm:$0xf]
    %v76 = vld [vmem:[%s1 + $0xc] sm:$0x7]
    %v81 = vunpack.c.l.b16 %v73
    %v82 = vunpack.c.l.b16 %v74
    %v83 = vunpack.c.l.b16 %v75
    %v84 = vunpack.c.l.b16 %v76
    %v85 = vpack.c.b16 %v82, %v81
    %v86 = vpack.c.b16 %v84, %v83
    %vm87 = vcmask 523264
    %v89 = vsel %vm87, %v85, 0
    %v92 = vsel %vm87, %v86, 0
    %94 = vmatpush.bf16.msra.mxu0 0
    %95 = vmatpush.bf16.msra.mxu0 0
    %96 = vmatpush.bf16.msra.mxu0 0
    %97 = vmatpush.bf16.msra.mxu0 0
    %98 = vmatpush.bf16.msra.mxu0 %v72
    %99 = vmatpush.bf16.msra.mxu0 %v71
    %100 = vmatpush.bf16.msra.mxu0 %v70
    %101 = vmatpush.bf16.msra.mxu0 %v69
    %102 = vmatmul.bf16.gmra.mxu0 %v89
    %v103 = vpop.f32.mrf.mxu0
    %v104 = vadd.f32 0.0, %v103
    %v105 = vpop.f32.mrf.mxu0
    %v106 = vadd.f32 0.0, %v105
    %107 = vmatmul.bf16.gmra.mxu0 %v92
    %v108 = vpop.f32.mrf.mxu0
    %v109 = vadd.f32 0.0, %v108
    %v110 = vpop.f32.mrf.mxu0
    %v111 = vadd.f32 0.0, %v110
    %112 = vdwg.mxu0
    %v113 = vpack.c.bf16 %v106, %v104
    %v114 = vpack.c.bf16 %v111, %v109
    %v115 = vld [vmem:[%s2] sm:$0xff]
    %v116 = vld [vmem:[%s2 + $0x8] sm:$0xff]
    %v117 = vld [vmem:[%s2 + $0x10] sm:$0xff]
    %v118 = vld [vmem:[%s2 + $0x18] sm:$0xff]
    %v119 = vld [vmem:[%s2 + $0x20] sm:$0xff]
    %v120 = vld [vmem:[%s2 + $0x28] sm:$0xff]
    %v121 = vld [vmem:[%s2 + $0x30] sm:$0xff]
    %v122 = vld [vmem:[%s2 + $0x38] sm:$0xff]
    %v123 = vld [vmem:[%s2 + $0x40] sm:$0xff]
    %v124 = vld [vmem:[%s2 + $0x48] sm:$0xff]
    %v125 = vld [vmem:[%s2 + $0x50] sm:$0xff]
    %v126 = vld [vmem:[%s2 + $0x58] sm:$0xff]
    %v127 = vld [vmem:[%s2 + $0x60] sm:$0xff]
    %v128 = vld [vmem:[%s2 + $0x68] sm:$0xff]
    %v129 = vld [vmem:[%s2 + $0x70] sm:$0xff]
    %v130 = vld [vmem:[%s2 + $0x78] sm:$0xff]
    %v131 = vld [vmem:[%s2 + $0x80] sm:$0xff]
    %v132 = vld [vmem:[%s2 + $0x88] sm:$0xff]
    %v133 = vld [vmem:[%s2 + $0x90] sm:$0xff]
    %v134 = vld [vmem:[%s2 + $0x98] sm:$0xff]
    %v135 = vld [vmem:[%s2 + $0xa0] sm:$0xff]
    %v136 = vld [vmem:[%s2 + $0xa8] sm:$0xff]
    %v137 = vld [vmem:[%s2 + $0xb0] sm:$0xff]
    %v138 = vld [vmem:[%s2 + $0xb8] sm:$0xff]
    %v139 = vld [vmem:[%s2 + $0xc0] sm:$0xff]
    %v140 = vld [vmem:[%s2 + $0xc8] sm:$0xff]
    %v141 = vld [vmem:[%s2 + $0xd0] sm:$0xff]
    %v142 = vld [vmem:[%s2 + $0xd8] sm:$0xff]
    %v143 = vld [vmem:[%s2 + $0xe0] sm:$0xff]
    %v144 = vld [vmem:[%s2 + $0xe8] sm:$0xff]
    %v145 = vld [vmem:[%s2 + $0xf0] sm:$0xff]
    %v146 = vld [vmem:[%s2 + $0xf8] sm:$0xff]
    %s147 = scalar_lea.vmem %s1, 16
    %v148 = vld [vmem:[%s147] sm:$0xf]
    %v149 = vld [vmem:[%s147 + $0x4] sm:$0xf]
    %v150 = vld [vmem:[%s147 + $0x8] sm:$0xf]
    %v151 = vld [vmem:[%s147 + $0xc] sm:$0x7]
    %v156 = vunpack.c.l.b16 %v148
    %v157 = vunpack.c.l.b16 %v149
    %v158 = vunpack.c.l.b16 %v150
    %v159 = vunpack.c.l.b16 %v151
    %v160 = vpack.c.b16 %v157, %v156
    %v161 = vpack.c.b16 %v159, %v158
    %v163 = vsel %vm87, %v160, 0
    %v166 = vsel %vm87, %v161, 0
    %168 = vmatpush.bf16.msra.mxu0 0
    %169 = vmatpush.bf16.msra.mxu0 0
    %170 = vmatpush.bf16.msra.mxu0 0
    %171 = vmatpush.bf16.msra.mxu0 0
    %172 = vmatpush.bf16.msra.mxu0 %v72
    %173 = vmatpush.bf16.msra.mxu0 %v71
    %174 = vmatpush.bf16.msra.mxu0 %v70
    %175 = vmatpush.bf16.msra.mxu0 %v69
    %176 = vmatmul.bf16.gmra.mxu0 %v163
    %v177 = vpop.f32.mrf.mxu0
    %v178 = vadd.f32 0.0, %v177
    %v179 = vpop.f32.mrf.mxu0
    %v180 = vadd.f32 0.0, %v179
    %181 = vmatmul.bf16.gmra.mxu0 %v166
    %v182 = vpop.f32.mrf.mxu0
    %v183 = vadd.f32 0.0, %v182
    %v184 = vpop.f32.mrf.mxu0
    %v185 = vadd.f32 0.0, %v184
    %186 = vdwg.mxu0
    %v187 = vpack.c.bf16 %v180, %v178
    %v188 = vpack.c.bf16 %v185, %v183
    %s189 = scalar_lea.vmem %s2, 256
    %v190 = vld [vmem:[%s189] sm:$0xff]
    %v191 = vld [vmem:[%s189 + $0x8] sm:$0xff]
    %v192 = vld [vmem:[%s189 + $0x10] sm:$0xff]
    %v193 = vld [vmem:[%s189 + $0x18] sm:$0xff]
    %v194 = vld [vmem:[%s189 + $0x20] sm:$0xff]
    %v195 = vld [vmem:[%s189 + $0x28] sm:$0xff]
    %v196 = vld [vmem:[%s189 + $0x30] sm:$0xff]
    %v197 = vld [vmem:[%s189 + $0x38] sm:$0xff]
    %v198 = vld [vmem:[%s189 + $0x40] sm:$0xff]
    %v199 = vld [vmem:[%s189 + $0x48] sm:$0xff]
    %v200 = vld [vmem:[%s189 + $0x50] sm:$0xff]
    %v201 = vld [vmem:[%s189 + $0x58] sm:$0xff]
    %v202 = vld [vmem:[%s189 + $0x60] sm:$0xff]
    %v203 = vld [vmem:[%s189 + $0x68] sm:$0xff]
    %v204 = vld [vmem:[%s189 + $0x70] sm:$0xff]
    %v205 = vld [vmem:[%s189 + $0x78] sm:$0xff]
    %v206 = vld [vmem:[%s189 + $0x80] sm:$0xff]
    %v207 = vld [vmem:[%s189 + $0x88] sm:$0xff]
    %v208 = vld [vmem:[%s189 + $0x90] sm:$0xff]
    %v209 = vld [vmem:[%s189 + $0x98] sm:$0xff]
    %v210 = vld [vmem:[%s189 + $0xa0] sm:$0xff]
    %v211 = vld [vmem:[%s189 + $0xa8] sm:$0xff]
    %v212 = vld [vmem:[%s189 + $0xb0] sm:$0xff]
    %v213 = vld [vmem:[%s189 + $0xb8] sm:$0xff]
    %v214 = vld [vmem:[%s189 + $0xc0] sm:$0xff]
    %v215 = vld [vmem:[%s189 + $0xc8] sm:$0xff]
    %v216 = vld [vmem:[%s189 + $0xd0] sm:$0xff]
    %v217 = vld [vmem:[%s189 + $0xd8] sm:$0xff]
    %v218 = vld [vmem:[%s189 + $0xe0] sm:$0xff]
    %v219 = vld [vmem:[%s189 + $0xe8] sm:$0xff]
    %v220 = vld [vmem:[%s189 + $0xf0] sm:$0xff]
    %v221 = vld [vmem:[%s189 + $0xf8] sm:$0xff]
    %v254 = vunpack.c.l.b16 %v190
    %v255 = vunpack.c.h.b16 %v190
    %v256 = vunpack.c.l.b16 %v191
    %v257 = vunpack.c.h.b16 %v191
    %v258 = vunpack.c.l.b16 %v192
    %v259 = vunpack.c.h.b16 %v192
    %v260 = vunpack.c.l.b16 %v193
    %v261 = vunpack.c.h.b16 %v193
    %v262 = vunpack.c.l.b16 %v194
    %v263 = vunpack.c.h.b16 %v194
    %v264 = vunpack.c.l.b16 %v195
    %v265 = vunpack.c.h.b16 %v195
    %v266 = vunpack.c.l.b16 %v196
    %v267 = vunpack.c.h.b16 %v196
    %v268 = vunpack.c.l.b16 %v197
    %v269 = vunpack.c.h.b16 %v197
    %v270 = vunpack.c.l.b16 %v198
    %v271 = vunpack.c.h.b16 %v198
    %v272 = vunpack.c.l.b16 %v199
    %v273 = vunpack.c.h.b16 %v199
    %v274 = vunpack.c.l.b16 %v200
    %v275 = vunpack.c.h.b16 %v200
    %v276 = vunpack.c.l.b16 %v201
    %v277 = vunpack.c.h.b16 %v201
    %v278 = vunpack.c.l.b16 %v202
    %v279 = vunpack.c.h.b16 %v202
    %v280 = vunpack.c.l.b16 %v203
    %v281 = vunpack.c.h.b16 %v203
    %v282 = vunpack.c.l.b16 %v204
    %v283 = vunpack.c.h.b16 %v204
    %v284 = vunpack.c.l.b16 %v205
    %v285 = vunpack.c.h.b16 %v205
    %v286 = vunpack.c.l.b16 %v206
    %v287 = vunpack.c.h.b16 %v206
    %v288 = vunpack.c.l.b16 %v207
    %v289 = vunpack.c.h.b16 %v207
    %v290 = vunpack.c.l.b16 %v208
    %v291 = vunpack.c.h.b16 %v208
    %v292 = vunpack.c.l.b16 %v209
    %v293 = vunpack.c.h.b16 %v209
    %v294 = vunpack.c.l.b16 %v210
    %v295 = vunpack.c.h.b16 %v210
    %v296 = vunpack.c.l.b16 %v211
    %v297 = vunpack.c.h.b16 %v211
    %v298 = vunpack.c.l.b16 %v212
    %v299 = vunpack.c.h.b16 %v212
    %v300 = vunpack.c.l.b16 %v213
    %v301 = vunpack.c.h.b16 %v213
    %v302 = vunpack.c.l.b16 %v214
    %v303 = vunpack.c.h.b16 %v214
    %v304 = vunpack.c.l.b16 %v215
    %v305 = vunpack.c.h.b16 %v215
    %v306 = vunpack.c.l.b16 %v216
    %v307 = vunpack.c.h.b16 %v216
    %v308 = vunpack.c.l.b16 %v217
    %v309 = vunpack.c.h.b16 %v217
    %v310 = vunpack.c.l.b16 %v218
    %v311 = vunpack.c.h.b16 %v218
    %v312 = vunpack.c.l.b16 %v219
    %v313 = vunpack.c.h.b16 %v219
    %v314 = vunpack.c.l.b16 %v220
    %v315 = vunpack.c.h.b16 %v220
    %v316 = vunpack.c.l.b16 %v221
    %v317 = vunpack.c.h.b16 %v221
    %v318 = vpack.c.b16 %v258, %v254
    %v319 = vpack.c.b16 %v259, %v255
    %v320 = vpack.c.b16 %v260, %v256
    %v321 = vpack.c.b16 %v261, %v257
    %v322 = vpack.c.b16 %v266, %v262
    %v323 = vpack.c.b16 %v267, %v263
    %v324 = vpack.c.b16 %v268, %v264
    %v325 = vpack.c.b16 %v269, %v265
    %v326 = vpack.c.b16 %v274, %v270
    %v327 = vpack.c.b16 %v275, %v271
    %v328 = vpack.c.b16 %v276, %v272
    %v329 = vpack.c.b16 %v277, %v273
    %v330 = vpack.c.b16 %v282, %v278
    %v331 = vpack.c.b16 %v283, %v279
    %v332 = vpack.c.b16 %v284, %v280
    %v333 = vpack.c.b16 %v285, %v281
    %v334 = vpack.c.b16 %v290, %v286
    %v335 = vpack.c.b16 %v291, %v287
    %v336 = vpack.c.b16 %v292, %v288
    %v337 = vpack.c.b16 %v293, %v289
    %v338 = vpack.c.b16 %v298, %v294
    %v339 = vpack.c.b16 %v299, %v295
    %v340 = vpack.c.b16 %v300, %v296
    %v341 = vpack.c.b16 %v301, %v297
    %v342 = vpack.c.b16 %v306, %v302
    %v343 = vpack.c.b16 %v307, %v303
    %v344 = vpack.c.b16 %v308, %v304
    %v345 = vpack.c.b16 %v309, %v305
    %v346 = vpack.c.b16 %v314, %v310
    %v347 = vpack.c.b16 %v315, %v311
    %v348 = vpack.c.b16 %v316, %v312
    %v349 = vpack.c.b16 %v317, %v313
    %382 = vmatpush.bf16.msra.mxu0 %v346
    %383 = vmatpush.bf16.msra.mxu0 %v342
    %384 = vmatpush.bf16.msra.mxu0 %v338
    %385 = vmatpush.bf16.msra.mxu0 %v334
    %386 = vmatpush.bf16.msra.mxu0 %v330
    %387 = vmatpush.bf16.msra.mxu0 %v326
    %388 = vmatpush.bf16.msra.mxu0 %v322
    %389 = vmatpush.bf16.msra.mxu0 %v318
    %390 = vmatmul.bf16.gmra.mxu0 %v187
    %v391 = vpop.f32.mrf.mxu0
    %v392 = vadd.f32 0.0, %v391
    %v393 = vpop.f32.mrf.mxu0
    %v394 = vadd.f32 0.0, %v393
    %395 = vmatmul.bf16.gmra.mxu0 %v188
    %v396 = vpop.f32.mrf.mxu0
    %v397 = vadd.f32 0.0, %v396
    %v398 = vpop.f32.mrf.mxu0
    %v399 = vadd.f32 0.0, %v398
    %400 = vdwg.mxu0
    %401 = vmatpush.bf16.msra.mxu0 %v347
    %402 = vmatpush.bf16.msra.mxu0 %v343
    %403 = vmatpush.bf16.msra.mxu0 %v339
    %404 = vmatpush.bf16.msra.mxu0 %v335
    %405 = vmatpush.bf16.msra.mxu0 %v331
    %406 = vmatpush.bf16.msra.mxu0 %v327
    %407 = vmatpush.bf16.msra.mxu0 %v323
    %408 = vmatpush.bf16.msra.mxu0 %v319
    %409 = vmatmul.bf16.gmra.mxu0 %v187
    %v410 = vpop.f32.mrf.mxu0
    %v411 = vadd.f32 0.0, %v410
    %v412 = vpop.f32.mrf.mxu0
    %v413 = vadd.f32 0.0, %v412
    %414 = vmatmul.bf16.gmra.mxu0 %v188
    %v415 = vpop.f32.mrf.mxu0
    %v416 = vadd.f32 0.0, %v415
    %v417 = vpop.f32.mrf.mxu0
    %v418 = vadd.f32 0.0, %v417
    %419 = vdwg.mxu0
    %420 = vmatpush.bf16.msra.mxu0 %v348
    %421 = vmatpush.bf16.msra.mxu0 %v344
    %422 = vmatpush.bf16.msra.mxu0 %v340
    %423 = vmatpush.bf16.msra.mxu0 %v336
    %424 = vmatpush.bf16.msra.mxu0 %v332
    %425 = vmatpush.bf16.msra.mxu0 %v328
    %426 = vmatpush.bf16.msra.mxu0 %v324
    %427 = vmatpush.bf16.msra.mxu0 %v320
    %428 = vmatmul.bf16.gmra.mxu0 %v187
    %v429 = vpop.f32.mrf.mxu0
    %v430 = vadd.f32 0.0, %v429
    %v431 = vpop.f32.mrf.mxu0
    %v432 = vadd.f32 0.0, %v431
    %433 = vmatmul.bf16.gmra.mxu0 %v188
    %v434 = vpop.f32.mrf.mxu0
    %v435 = vadd.f32 0.0, %v434
    %v436 = vpop.f32.mrf.mxu0
    %v437 = vadd.f32 0.0, %v436
    %438 = vdwg.mxu0
    %439 = vmatpush.bf16.msra.mxu0 %v349
    %440 = vmatpush.bf16.msra.mxu0 %v345
    %441 = vmatpush.bf16.msra.mxu0 %v341
    %442 = vmatpush.bf16.msra.mxu0 %v337
    %443 = vmatpush.bf16.msra.mxu0 %v333
    %444 = vmatpush.bf16.msra.mxu0 %v329
    %445 = vmatpush.bf16.msra.mxu0 %v325
    %446 = vmatpush.bf16.msra.mxu0 %v321
    %447 = vmatmul.bf16.gmra.mxu0 %v187
    %v448 = vpop.f32.mrf.mxu0
    %v449 = vadd.f32 0.0, %v448
    %v450 = vpop.f32.mrf.mxu0
    %v451 = vadd.f32 0.0, %v450
    %452 = vmatmul.bf16.gmra.mxu0 %v188
    %v453 = vpop.f32.mrf.mxu0
    %v454 = vadd.f32 0.0, %v453
    %v455 = vpop.f32.mrf.mxu0
    %v456 = vadd.f32 0.0, %v455
    %457 = vdwg.mxu0
    %v490 = vunpack.c.l.b16 %v115
    %v491 = vunpack.c.h.b16 %v115
    %v492 = vunpack.c.l.b16 %v116
    %v493 = vunpack.c.h.b16 %v116
    %v494 = vunpack.c.l.b16 %v117
    %v495 = vunpack.c.h.b16 %v117
    %v496 = vunpack.c.l.b16 %v118
    %v497 = vunpack.c.h.b16 %v118
    %v498 = vunpack.c.l.b16 %v119
    %v499 = vunpack.c.h.b16 %v119
    %v500 = vunpack.c.l.b16 %v120
    %v501 = vunpack.c.h.b16 %v120
    %v502 = vunpack.c.l.b16 %v121
    %v503 = vunpack.c.h.b16 %v121
    %v504 = vunpack.c.l.b16 %v122
    %v505 = vunpack.c.h.b16 %v122
    %v506 = vunpack.c.l.b16 %v123
    %v507 = vunpack.c.h.b16 %v123
    %v508 = vunpack.c.l.b16 %v124
    %v509 = vunpack.c.h.b16 %v124
    %v510 = vunpack.c.l.b16 %v125
    %v511 = vunpack.c.h.b16 %v125
    %v512 = vunpack.c.l.b16 %v126
    %v513 = vunpack.c.h.b16 %v126
    %v514 = vunpack.c.l.b16 %v127
    %v515 = vunpack.c.h.b16 %v127
    %v516 = vunpack.c.l.b16 %v128
    %v517 = vunpack.c.h.b16 %v128
    %v518 = vunpack.c.l.b16 %v129
    %v519 = vunpack.c.h.b16 %v129
    %v520 = vunpack.c.l.b16 %v130
    %v521 = vunpack.c.h.b16 %v130
    %v522 = vunpack.c.l.b16 %v131
    %v523 = vunpack.c.h.b16 %v131
    %v524 = vunpack.c.l.b16 %v132
    %v525 = vunpack.c.h.b16 %v132
    %v526 = vunpack.c.l.b16 %v133
    %v527 = vunpack.c.h.b16 %v133
    %v528 = vunpack.c.l.b16 %v134
    %v529 = vunpack.c.h.b16 %v134
    %v530 = vunpack.c.l.b16 %v135
    %v531 = vunpack.c.h.b16 %v135
    %v532 = vunpack.c.l.b16 %v136
    %v533 = vunpack.c.h.b16 %v136
    %v534 = vunpack.c.l.b16 %v137
    %v535 = vunpack.c.h.b16 %v137
    %v536 = vunpack.c.l.b16 %v138
    %v537 = vunpack.c.h.b16 %v138
    %v538 = vunpack.c.l.b16 %v139
    %v539 = vunpack.c.h.b16 %v139
    %v540 = vunpack.c.l.b16 %v140
    %v541 = vunpack.c.h.b16 %v140
    %v542 = vunpack.c.l.b16 %v141
    %v543 = vunpack.c.h.b16 %v141
    %v544 = vunpack.c.l.b16 %v142
    %v545 = vunpack.c.h.b16 %v142
    %v546 = vunpack.c.l.b16 %v143
    %v547 = vunpack.c.h.b16 %v143
    %v548 = vunpack.c.l.b16 %v144
    %v549 = vunpack.c.h.b16 %v144
    %v550 = vunpack.c.l.b16 %v145
    %v551 = vunpack.c.h.b16 %v145
    %v552 = vunpack.c.l.b16 %v146
    %v553 = vunpack.c.h.b16 %v146
    %v554 = vpack.c.b16 %v494, %v490
    %v555 = vpack.c.b16 %v495, %v491
    %v556 = vpack.c.b16 %v496, %v492
    %v557 = vpack.c.b16 %v497, %v493
    %v558 = vpack.c.b16 %v502, %v498
    %v559 = vpack.c.b16 %v503, %v499
    %v560 = vpack.c.b16 %v504, %v500
    %v561 = vpack.c.b16 %v505, %v501
    %v562 = vpack.c.b16 %v510, %v506
    %v563 = vpack.c.b16 %v511, %v507
    %v564 = vpack.c.b16 %v512, %v508
    %v565 = vpack.c.b16 %v513, %v509
    %v566 = vpack.c.b16 %v518, %v514
    %v567 = vpack.c.b16 %v519, %v515
    %v568 = vpack.c.b16 %v520, %v516
    %v569 = vpack.c.b16 %v521, %v517
    %v570 = vpack.c.b16 %v526, %v522
    %v571 = vpack.c.b16 %v527, %v523
    %v572 = vpack.c.b16 %v528, %v524
    %v573 = vpack.c.b16 %v529, %v525
    %v574 = vpack.c.b16 %v534, %v530
    %v575 = vpack.c.b16 %v535, %v531
    %v576 = vpack.c.b16 %v536, %v532
    %v577 = vpack.c.b16 %v537, %v533
    %v578 = vpack.c.b16 %v542, %v538
    %v579 = vpack.c.b16 %v543, %v539
    %v580 = vpack.c.b16 %v544, %v540
    %v581 = vpack.c.b16 %v545, %v541
    %v582 = vpack.c.b16 %v550, %v546
    %v583 = vpack.c.b16 %v551, %v547
    %v584 = vpack.c.b16 %v552, %v548
    %v585 = vpack.c.b16 %v553, %v549
    %618 = vmatpush.bf16.msra.mxu0 %v582
    %619 = vmatpush.bf16.msra.mxu0 %v578
    %620 = vmatpush.bf16.msra.mxu0 %v574
    %621 = vmatpush.bf16.msra.mxu0 %v570
    %622 = vmatpush.bf16.msra.mxu0 %v566
    %623 = vmatpush.bf16.msra.mxu0 %v562
    %624 = vmatpush.bf16.msra.mxu0 %v558
    %625 = vmatpush.bf16.msra.mxu0 %v554
    %626 = vmatmul.bf16.gmra.mxu0 %v113
    %v627 = vpop.f32.mrf.mxu0
    %v628 = vadd.f32 %v392, %v627
    %v629 = vpop.f32.mrf.mxu0
    %v630 = vadd.f32 %v394, %v629
    %631 = vmatmul.bf16.gmra.mxu0 %v114
    %v632 = vpop.f32.mrf.mxu0
    %v633 = vadd.f32 %v397, %v632
    %v634 = vpop.f32.mrf.mxu0
    %v635 = vadd.f32 %v399, %v634
    %636 = vdwg.mxu0
    %637 = vmatpush.bf16.msra.mxu0 %v583
    %638 = vmatpush.bf16.msra.mxu0 %v579
    %639 = vmatpush.bf16.msra.mxu0 %v575
    %640 = vmatpush.bf16.msra.mxu0 %v571
    %641 = vmatpush.bf16.msra.mxu0 %v567
    %642 = vmatpush.bf16.msra.mxu0 %v563
    %643 = vmatpush.bf16.msra.mxu0 %v559
    %644 = vmatpush.bf16.msra.mxu0 %v555
    %645 = vmatmul.bf16.gmra.mxu0 %v113
    %v646 = vpop.f32.mrf.mxu0
    %v647 = vadd.f32 %v411, %v646
    %v648 = vpop.f32.mrf.mxu0
    %v649 = vadd.f32 %v413, %v648
    %650 = vmatmul.bf16.gmra.mxu0 %v114
    %v651 = vpop.f32.mrf.mxu0
    %v652 = vadd.f32 %v416, %v651
    %v653 = vpop.f32.mrf.mxu0
    %v654 = vadd.f32 %v418, %v653
    %655 = vdwg.mxu0
    %656 = vmatpush.bf16.msra.mxu0 %v584
    %657 = vmatpush.bf16.msra.mxu0 %v580
    %658 = vmatpush.bf16.msra.mxu0 %v576
    %659 = vmatpush.bf16.msra.mxu0 %v572
    %660 = vmatpush.bf16.msra.mxu0 %v568
    %661 = vmatpush.bf16.msra.mxu0 %v564
    %662 = vmatpush.bf16.msra.mxu0 %v560
    %663 = vmatpush.bf16.msra.mxu0 %v556
    %664 = vmatmul.bf16.gmra.mxu0 %v113
    %v665 = vpop.f32.mrf.mxu0
    %v666 = vadd.f32 %v430, %v665
    %v667 = vpop.f32.mrf.mxu0
    %v668 = vadd.f32 %v432, %v667
    %669 = vmatmul.bf16.gmra.mxu0 %v114
    %v670 = vpop.f32.mrf.mxu0
    %v671 = vadd.f32 %v435, %v670
    %v672 = vpop.f32.mrf.mxu0
    %v673 = vadd.f32 %v437, %v672
    %674 = vdwg.mxu0
    %675 = vmatpush.bf16.msra.mxu0 %v585
    %676 = vmatpush.bf16.msra.mxu0 %v581
    %677 = vmatpush.bf16.msra.mxu0 %v577
    %678 = vmatpush.bf16.msra.mxu0 %v573
    %679 = vmatpush.bf16.msra.mxu0 %v569
    %680 = vmatpush.bf16.msra.mxu0 %v565
    %681 = vmatpush.bf16.msra.mxu0 %v561
    %682 = vmatpush.bf16.msra.mxu0 %v557
    %683 = vmatmul.bf16.gmra.mxu0 %v113
    %v684 = vpop.f32.mrf.mxu0
    %v685 = vadd.f32 %v449, %v684
    %v686 = vpop.f32.mrf.mxu0
    %v687 = vadd.f32 %v451, %v686
    %688 = vmatmul.bf16.gmra.mxu0 %v114
    %v689 = vpop.f32.mrf.mxu0
    %v690 = vadd.f32 %v454, %v689
    %v691 = vpop.f32.mrf.mxu0
    %v692 = vadd.f32 %v456, %v691
    %693 = vdwg.mxu0
    %s694 = scalar_lea.vmem %s1, 32
    %v695 = vld [vmem:[%s694] sm:$0xf]
    %v696 = vld [vmem:[%s694 + $0x4] sm:$0xf]
    %v697 = vld [vmem:[%s694 + $0x8] sm:$0xf]
    %v698 = vld [vmem:[%s694 + $0xc] sm:$0x7]
    %v703 = vunpack.c.l.b16 %v695
    %v704 = vunpack.c.l.b16 %v696
    %v705 = vunpack.c.l.b16 %v697
    %v706 = vunpack.c.l.b16 %v698
    %v707 = vpack.c.b16 %v704, %v703
    %v708 = vpack.c.b16 %v706, %v705
    %v710 = vsel %vm87, %v707, 0
    %v713 = vsel %vm87, %v708, 0
    %715 = vmatpush.bf16.msra.mxu0 0
    %716 = vmatpush.bf16.msra.mxu0 0
    %717 = vmatpush.bf16.msra.mxu0 0
    %718 = vmatpush.bf16.msra.mxu0 0
    %719 = vmatpush.bf16.msra.mxu0 %v72
    %720 = vmatpush.bf16.msra.mxu0 %v71
    %721 = vmatpush.bf16.msra.mxu0 %v70
    %722 = vmatpush.bf16.msra.mxu0 %v69
    %723 = vmatmul.bf16.gmra.mxu0 %v710
    %v724 = vpop.f32.mrf.mxu0
    %v725 = vadd.f32 0.0, %v724
    %v726 = vpop.f32.mrf.mxu0
    %v727 = vadd.f32 0.0, %v726
    %728 = vmatmul.bf16.gmra.mxu0 %v713
    %v729 = vpop.f32.mrf.mxu0
    %v730 = vadd.f32 0.0, %v729
    %v731 = vpop.f32.mrf.mxu0
    %v732 = vadd.f32 0.0, %v731
    %733 = vdwg.mxu0
    %v734 = vpack.c.bf16 %v727, %v725
    %v735 = vpack.c.bf16 %v732, %v730
    %s736 = scalar_lea.vmem %s2, 512
    %v737 = vld [vmem:[%s736] sm:$0xff]
    %v738 = vld [vmem:[%s736 + $0x8] sm:$0xff]
    %v739 = vld [vmem:[%s736 + $0x10] sm:$0xff]
    %v740 = vld [vmem:[%s736 + $0x18] sm:$0xff]
    %v741 = vld [vmem:[%s736 + $0x20] sm:$0xff]
    %v742 = vld [vmem:[%s736 + $0x28] sm:$0xff]
    %v743 = vld [vmem:[%s736 + $0x30] sm:$0xff]
    %v744 = vld [vmem:[%s736 + $0x38] sm:$0xff]
    %v745 = vld [vmem:[%s736 + $0x40] sm:$0xff]
    %v746 = vld [vmem:[%s736 + $0x48] sm:$0xff]
    %v747 = vld [vmem:[%s736 + $0x50] sm:$0xff]
    %v748 = vld [vmem:[%s736 + $0x58] sm:$0xff]
    %v749 = vld [vmem:[%s736 + $0x60] sm:$0xff]
    %v750 = vld [vmem:[%s736 + $0x68] sm:$0xff]
    %v751 = vld [vmem:[%s736 + $0x70] sm:$0xff]
    %v752 = vld [vmem:[%s736 + $0x78] sm:$0xff]
    %v753 = vld [vmem:[%s736 + $0x80] sm:$0xff]
    %v754 = vld [vmem:[%s736 + $0x88] sm:$0xff]
    %v755 = vld [vmem:[%s736 + $0x90] sm:$0xff]
    %v756 = vld [vmem:[%s736 + $0x98] sm:$0xff]
    %v757 = vld [vmem:[%s736 + $0xa0] sm:$0xff]
    %v758 = vld [vmem:[%s736 + $0xa8] sm:$0xff]
    %v759 = vld [vmem:[%s736 + $0xb0] sm:$0xff]
    %v760 = vld [vmem:[%s736 + $0xb8] sm:$0xff]
    %v761 = vld [vmem:[%s736 + $0xc0] sm:$0xff]
    %v762 = vld [vmem:[%s736 + $0xc8] sm:$0xff]
    %v763 = vld [vmem:[%s736 + $0xd0] sm:$0xff]
    %v764 = vld [vmem:[%s736 + $0xd8] sm:$0xff]
    %v765 = vld [vmem:[%s736 + $0xe0] sm:$0xff]
    %v766 = vld [vmem:[%s736 + $0xe8] sm:$0xff]
    %v767 = vld [vmem:[%s736 + $0xf0] sm:$0xff]
    %v768 = vld [vmem:[%s736 + $0xf8] sm:$0xff]
    %v801 = vunpack.c.l.b16 %v737
    %v802 = vunpack.c.h.b16 %v737
    %v803 = vunpack.c.l.b16 %v738
    %v804 = vunpack.c.h.b16 %v738
    %v805 = vunpack.c.l.b16 %v739
    %v806 = vunpack.c.h.b16 %v739
    %v807 = vunpack.c.l.b16 %v740
    %v808 = vunpack.c.h.b16 %v740
    %v809 = vunpack.c.l.b16 %v741
    %v810 = vunpack.c.h.b16 %v741
    %v811 = vunpack.c.l.b16 %v742
    %v812 = vunpack.c.h.b16 %v742
    %v813 = vunpack.c.l.b16 %v743
    %v814 = vunpack.c.h.b16 %v743
    %v815 = vunpack.c.l.b16 %v744
    %v816 = vunpack.c.h.b16 %v744
    %v817 = vunpack.c.l.b16 %v745
    %v818 = vunpack.c.h.b16 %v745
    %v819 = vunpack.c.l.b16 %v746
    %v820 = vunpack.c.h.b16 %v746
    %v821 = vunpack.c.l.b16 %v747
    %v822 = vunpack.c.h.b16 %v747
    %v823 = vunpack.c.l.b16 %v748
    %v824 = vunpack.c.h.b16 %v748
    %v825 = vunpack.c.l.b16 %v749
    %v826 = vunpack.c.h.b16 %v749
    %v827 = vunpack.c.l.b16 %v750
    %v828 = vunpack.c.h.b16 %v750
    %v829 = vunpack.c.l.b16 %v751
    %v830 = vunpack.c.h.b16 %v751
    %v831 = vunpack.c.l.b16 %v752
    %v832 = vunpack.c.h.b16 %v752
    %v833 = vunpack.c.l.b16 %v753
    %v834 = vunpack.c.h.b16 %v753
    %v835 = vunpack.c.l.b16 %v754
    %v836 = vunpack.c.h.b16 %v754
    %v837 = vunpack.c.l.b16 %v755
    %v838 = vunpack.c.h.b16 %v755
    %v839 = vunpack.c.l.b16 %v756
    %v840 = vunpack.c.h.b16 %v756
    %v841 = vunpack.c.l.b16 %v757
    %v842 = vunpack.c.h.b16 %v757
    %v843 = vunpack.c.l.b16 %v758
    %v844 = vunpack.c.h.b16 %v758
    %v845 = vunpack.c.l.b16 %v759
    %v846 = vunpack.c.h.b16 %v759
    %v847 = vunpack.c.l.b16 %v760
    %v848 = vunpack.c.h.b16 %v760
    %v849 = vunpack.c.l.b16 %v761
    %v850 = vunpack.c.h.b16 %v761
    %v851 = vunpack.c.l.b16 %v762
    %v852 = vunpack.c.h.b16 %v762
    %v853 = vunpack.c.l.b16 %v763
    %v854 = vunpack.c.h.b16 %v763
    %v855 = vunpack.c.l.b16 %v764
    %v856 = vunpack.c.h.b16 %v764
    %v857 = vunpack.c.l.b16 %v765
    %v858 = vunpack.c.h.b16 %v765
    %v859 = vunpack.c.l.b16 %v766
    %v860 = vunpack.c.h.b16 %v766
    %v861 = vunpack.c.l.b16 %v767
    %v862 = vunpack.c.h.b16 %v767
    %v863 = vunpack.c.l.b16 %v768
    %v864 = vunpack.c.h.b16 %v768
    %v865 = vpack.c.b16 %v805, %v801
    %v866 = vpack.c.b16 %v806, %v802
    %v867 = vpack.c.b16 %v807, %v803
    %v868 = vpack.c.b16 %v808, %v804
    %v869 = vpack.c.b16 %v813, %v809
    %v870 = vpack.c.b16 %v814, %v810
    %v871 = vpack.c.b16 %v815, %v811
    %v872 = vpack.c.b16 %v816, %v812
    %v873 = vpack.c.b16 %v821, %v817
    %v874 = vpack.c.b16 %v822, %v818
    %v875 = vpack.c.b16 %v823, %v819
    %v876 = vpack.c.b16 %v824, %v820
    %v877 = vpack.c.b16 %v829, %v825
    %v878 = vpack.c.b16 %v830, %v826
    %v879 = vpack.c.b16 %v831, %v827
    %v880 = vpack.c.b16 %v832, %v828
    %v881 = vpack.c.b16 %v837, %v833
    %v882 = vpack.c.b16 %v838, %v834
    %v883 = vpack.c.b16 %v839, %v835
    %v884 = vpack.c.b16 %v840, %v836
    %v885 = vpack.c.b16 %v845, %v841
    %v886 = vpack.c.b16 %v846, %v842
    %v887 = vpack.c.b16 %v847, %v843
    %v888 = vpack.c.b16 %v848, %v844
    %v889 = vpack.c.b16 %v853, %v849
    %v890 = vpack.c.b16 %v854, %v850
    %v891 = vpack.c.b16 %v855, %v851
    %v892 = vpack.c.b16 %v856, %v852
    %v893 = vpack.c.b16 %v861, %v857
    %v894 = vpack.c.b16 %v862, %v858
    %v895 = vpack.c.b16 %v863, %v859
    %v896 = vpack.c.b16 %v864, %v860
    %929 = vmatpush.bf16.msra.mxu0 %v893
    %930 = vmatpush.bf16.msra.mxu0 %v889
    %931 = vmatpush.bf16.msra.mxu0 %v885
    %932 = vmatpush.bf16.msra.mxu0 %v881
    %933 = vmatpush.bf16.msra.mxu0 %v877
    %934 = vmatpush.bf16.msra.mxu0 %v873
    %935 = vmatpush.bf16.msra.mxu0 %v869
    %936 = vmatpush.bf16.msra.mxu0 %v865
    %937 = vmatmul.bf16.gmra.mxu0 %v734
    %v938 = vpop.f32.mrf.mxu0
    %v939 = vadd.f32 0.0, %v938
    %v940 = vpop.f32.mrf.mxu0
    %v941 = vadd.f32 0.0, %v940
    %942 = vmatmul.bf16.gmra.mxu0 %v735
    %v943 = vpop.f32.mrf.mxu0
    %v944 = vadd.f32 0.0, %v943
    %v945 = vpop.f32.mrf.mxu0
    %v946 = vadd.f32 0.0, %v945
    %947 = vdwg.mxu0
    %948 = vmatpush.bf16.msra.mxu0 %v894
    %949 = vmatpush.bf16.msra.mxu0 %v890
    %950 = vmatpush.bf16.msra.mxu0 %v886
    %951 = vmatpush.bf16.msra.mxu0 %v882
    %952 = vmatpush.bf16.msra.mxu0 %v878
    %953 = vmatpush.bf16.msra.mxu0 %v874
    %954 = vmatpush.bf16.msra.mxu0 %v870
    %955 = vmatpush.bf16.msra.mxu0 %v866
    %956 = vmatmul.bf16.gmra.mxu0 %v734
    %v957 = vpop.f32.mrf.mxu0
    %v958 = vadd.f32 0.0, %v957
    %v959 = vpop.f32.mrf.mxu0
    %v960 = vadd.f32 0.0, %v959
    %961 = vmatmul.bf16.gmra.mxu0 %v735
    %v962 = vpop.f32.mrf.mxu0
    %v963 = vadd.f32 0.0, %v962
    %v964 = vpop.f32.mrf.mxu0
    %v965 = vadd.f32 0.0, %v964
    %966 = vdwg.mxu0
    %967 = vmatpush.bf16.msra.mxu0 %v895
    %968 = vmatpush.bf16.msra.mxu0 %v891
    %969 = vmatpush.bf16.msra.mxu0 %v887
    %970 = vmatpush.bf16.msra.mxu0 %v883
    %971 = vmatpush.bf16.msra.mxu0 %v879
    %972 = vmatpush.bf16.msra.mxu0 %v875
    %973 = vmatpush.bf16.msra.mxu0 %v871
    %974 = vmatpush.bf16.msra.mxu0 %v867
    %975 = vmatmul.bf16.gmra.mxu0 %v734
    %v976 = vpop.f32.mrf.mxu0
    %v977 = vadd.f32 0.0, %v976
    %v978 = vpop.f32.mrf.mxu0
    %v979 = vadd.f32 0.0, %v978
    %980 = vmatmul.bf16.gmra.mxu0 %v735
    %v981 = vpop.f32.mrf.mxu0
    %v982 = vadd.f32 0.0, %v981
    %v983 = vpop.f32.mrf.mxu0
    %v984 = vadd.f32 0.0, %v983
    %985 = vdwg.mxu0
    %986 = vmatpush.bf16.msra.mxu0 %v896
    %987 = vmatpush.bf16.msra.mxu0 %v892
    %988 = vmatpush.bf16.msra.mxu0 %v888
    %989 = vmatpush.bf16.msra.mxu0 %v884
    %990 = vmatpush.bf16.msra.mxu0 %v880
    %991 = vmatpush.bf16.msra.mxu0 %v876
    %992 = vmatpush.bf16.msra.mxu0 %v872
    %993 = vmatpush.bf16.msra.mxu0 %v868
    %994 = vmatmul.bf16.gmra.mxu0 %v734
    %v995 = vpop.f32.mrf.mxu0
    %v996 = vadd.f32 0.0, %v995
    %v997 = vpop.f32.mrf.mxu0
    %v998 = vadd.f32 0.0, %v997
    %999 = vmatmul.bf16.gmra.mxu0 %v735
    %v1000 = vpop.f32.mrf.mxu0
    %v1001 = vadd.f32 0.0, %v1000
    %v1002 = vpop.f32.mrf.mxu0
    %v1003 = vadd.f32 0.0, %v1002
    %1004 = vdwg.mxu0
    %v1005 = vadd.f32 %v628, %v939
    %v1006 = vadd.f32 %v647, %v958
    %v1007 = vadd.f32 %v666, %v977
    %v1008 = vadd.f32 %v685, %v996
    %v1009 = vadd.f32 %v630, %v941
    %v1010 = vadd.f32 %v649, %v960
    %v1011 = vadd.f32 %v668, %v979
    %v1012 = vadd.f32 %v687, %v998
    %v1013 = vadd.f32 %v633, %v944
    %v1014 = vadd.f32 %v652, %v963
    %v1015 = vadd.f32 %v671, %v982
    %v1016 = vadd.f32 %v690, %v1001
    %v1017 = vadd.f32 %v635, %v946
    %v1018 = vadd.f32 %v654, %v965
    %v1019 = vadd.f32 %v673, %v984
    %v1020 = vadd.f32 %v692, %v1003
    %v1021 = vld [vmem:[%s3] sm:$0xf]
    %v1023 = vperm.slane %v1021, 0
    %v1024 = vperm.slane %v1021, 1
    %v1025 = vperm.slane %v1021, 2
    %v1026 = vperm.slane %v1021, 3
    %v1031 = vadd.f32 %v1005, %v1023
    %v1032 = vadd.f32 %v1006, %v1024
    %v1033 = vadd.f32 %v1007, %v1025
    %v1034 = vadd.f32 %v1008, %v1026
    %v1035 = vadd.f32 %v1009, %v1023
    %v1036 = vadd.f32 %v1010, %v1024
    %v1037 = vadd.f32 %v1011, %v1025
    %v1038 = vadd.f32 %v1012, %v1026
    %v1039 = vadd.f32 %v1013, %v1023
    %v1040 = vadd.f32 %v1014, %v1024
    %v1041 = vadd.f32 %v1015, %v1025
    %v1042 = vadd.f32 %v1016, %v1026
    %v1043 = vadd.f32 %v1017, %v1023
    %v1044 = vadd.f32 %v1018, %v1024
    %v1045 = vadd.f32 %v1019, %v1025
    %v1046 = vadd.f32 %v1020, %v1026
    %vm1047 = vcmp.ge.f32.partialorder %v1031, 0.0
    %vm1048 = vcmp.ge.f32.partialorder %v1032, 0.0
    %vm1049 = vcmp.ge.f32.partialorder %v1033, 0.0
    %vm1050 = vcmp.ge.f32.partialorder %v1034, 0.0
    %vm1051 = vcmp.ge.f32.partialorder %v1035, 0.0
    %vm1052 = vcmp.ge.f32.partialorder %v1036, 0.0
    %vm1053 = vcmp.ge.f32.partialorder %v1037, 0.0
    %vm1054 = vcmp.ge.f32.partialorder %v1038, 0.0
    %vm1055 = vcmp.ge.f32.partialorder %v1039, 0.0
    %vm1056 = vcmp.ge.f32.partialorder %v1040, 0.0
    %vm1057 = vcmp.ge.f32.partialorder %v1041, 0.0
    %vm1058 = vcmp.ge.f32.partialorder %v1042, 0.0
    %vm1059 = vcmp.ge.f32.partialorder %v1043, 0.0
    %vm1060 = vcmp.ge.f32.partialorder %v1044, 0.0
    %vm1061 = vcmp.ge.f32.partialorder %v1045, 0.0
    %vm1062 = vcmp.ge.f32.partialorder %v1046, 0.0
    %v1063 = vmul.f32 %v1031, 0.1
    %v1064 = vmul.f32 %v1032, 0.1
    %v1065 = vmul.f32 %v1033, 0.1
    %v1066 = vmul.f32 %v1034, 0.1
    %v1067 = vmul.f32 %v1035, 0.1
    %v1068 = vmul.f32 %v1036, 0.1
    %v1069 = vmul.f32 %v1037, 0.1
    %v1070 = vmul.f32 %v1038, 0.1
    %v1071 = vmul.f32 %v1039, 0.1
    %v1072 = vmul.f32 %v1040, 0.1
    %v1073 = vmul.f32 %v1041, 0.1
    %v1074 = vmul.f32 %v1042, 0.1
    %v1075 = vmul.f32 %v1043, 0.1
    %v1076 = vmul.f32 %v1044, 0.1
    %v1077 = vmul.f32 %v1045, 0.1
    %v1078 = vmul.f32 %v1046, 0.1
    %v1079 = vsel %vm1047, %v1031, %v1063
    %v1080 = vsel %vm1048, %v1032, %v1064
    %v1081 = vsel %vm1049, %v1033, %v1065
    %v1082 = vsel %vm1050, %v1034, %v1066
    %v1083 = vsel %vm1051, %v1035, %v1067
    %v1084 = vsel %vm1052, %v1036, %v1068
    %v1085 = vsel %vm1053, %v1037, %v1069
    %v1086 = vsel %vm1054, %v1038, %v1070
    %v1087 = vsel %vm1055, %v1039, %v1071
    %v1088 = vsel %vm1056, %v1040, %v1072
    %v1089 = vsel %vm1057, %v1041, %v1073
    %v1090 = vsel %vm1058, %v1042, %v1074
    %v1091 = vsel %vm1059, %v1043, %v1075
    %v1092 = vsel %vm1060, %v1044, %v1076
    %v1093 = vsel %vm1061, %v1045, %v1077
    %v1094 = vsel %vm1062, %v1046, %v1078
    %s1095 = scalar_lea.vmem %s3, 4
    %v1096 = vld [vmem:[%s1095] sm:$0xf]
    %v1098 = vperm.slane %v1096, 0
    %v1099 = vperm.slane %v1096, 1
    %v1100 = vperm.slane %v1096, 2
    %v1101 = vperm.slane %v1096, 3
    %v1106 = vmul.f32 %v1079, %v1098
    %v1107 = vmul.f32 %v1080, %v1099
    %v1108 = vmul.f32 %v1081, %v1100
    %v1109 = vmul.f32 %v1082, %v1101
    %v1110 = vmul.f32 %v1083, %v1098
    %v1111 = vmul.f32 %v1084, %v1099
    %v1112 = vmul.f32 %v1085, %v1100
    %v1113 = vmul.f32 %v1086, %v1101
    %v1114 = vmul.f32 %v1087, %v1098
    %v1115 = vmul.f32 %v1088, %v1099
    %v1116 = vmul.f32 %v1089, %v1100
    %v1117 = vmul.f32 %v1090, %v1101
    %v1118 = vmul.f32 %v1091, %v1098
    %v1119 = vmul.f32 %v1092, %v1099
    %v1120 = vmul.f32 %v1093, %v1100
    %v1121 = vmul.f32 %v1094, %v1101
    %s1122 = scalar_lea.vmem %s3, 8
    %v1123 = vld [vmem:[%s1122] sm:$0xf]
    %v1125 = vperm.slane %v1123, 0
    %v1126 = vperm.slane %v1123, 1
    %v1127 = vperm.slane %v1123, 2
    %v1128 = vperm.slane %v1123, 3
    %v1133 = vadd.f32 %v1106, %v1125
    %v1134 = vadd.f32 %v1107, %v1126
    %v1135 = vadd.f32 %v1108, %v1127
    %v1136 = vadd.f32 %v1109, %v1128
    %v1137 = vadd.f32 %v1110, %v1125
    %v1138 = vadd.f32 %v1111, %v1126
    %v1139 = vadd.f32 %v1112, %v1127
    %v1140 = vadd.f32 %v1113, %v1128
    %v1141 = vadd.f32 %v1114, %v1125
    %v1142 = vadd.f32 %v1115, %v1126
    %v1143 = vadd.f32 %v1116, %v1127
    %v1144 = vadd.f32 %v1117, %v1128
    %v1145 = vadd.f32 %v1118, %v1125
    %v1146 = vadd.f32 %v1119, %v1126
    %v1147 = vadd.f32 %v1120, %v1127
    %v1148 = vadd.f32 %v1121, %v1128
    %v1149 = vpack.c.bf16 %v1137, %v1133
    %v1150 = vpack.c.bf16 %v1138, %v1134
    %v1151 = vpack.c.bf16 %v1139, %v1135
    %v1152 = vpack.c.bf16 %v1140, %v1136
    %v1153 = vpack.c.bf16 %v1145, %v1141
    %v1154 = vpack.c.bf16 %v1146, %v1142
    %v1155 = vpack.c.bf16 %v1147, %v1143
    %v1156 = vpack.c.bf16 %v1148, %v1144
    %v1157 = vld [vmem:[%s4] sm:$0xf]
    %v1158 = vld [vmem:[%s4 + $0x4] sm:$0x7]
    %v1161 = vunpack.c.l.b16 %v1157
    %v1162 = vunpack.c.l.b16 %v1158
    %v1163 = vpack.c.b16 %v1162, %v1161
    %vm1164 = vcmask 244736
    %v1166 = vsel %vm1164, %v1163, 0
    %vm1168 = vcmask 1046528
    %v1170 = vsel %vm1168, %v1153, 0
    %v1173 = vsel %vm1168, %v1154, 0
    %v1176 = vsel %vm1168, %v1155, 0
    %v1179 = vsel %vm1168, %v1156, 0
    %1181 = vmatpush.bf16.msra.mxu0 0
    %1182 = vmatpush.bf16.msra.mxu0 0
    %1183 = vmatpush.bf16.msra.mxu0 0
    %1184 = vmatpush.bf16.msra.mxu0 0
    %1185 = vmatpush.bf16.msra.mxu0 0
    %1186 = vmatpush.bf16.msra.mxu0 0
    %1187 = vmatpush.bf16.msra.mxu0 %v1170
    %1188 = vmatpush.bf16.msra.mxu0 %v1149
    %1189 = vmatmul.bf16.gmra.mxu0 %v1166
    %v1190 = vpop.f32.mrf.mxu0
    %v1191 = vadd.f32 0.0, %v1190
    %v1192 = vpop.f32.mrf.mxu0
    %v1193 = vadd.f32 0.0, %v1192
    %1194 = vdwg.mxu0
    %1195 = vmatpush.bf16.msra.mxu0 0
    %1196 = vmatpush.bf16.msra.mxu0 0
    %1197 = vmatpush.bf16.msra.mxu0 0
    %1198 = vmatpush.bf16.msra.mxu0 0
    %1199 = vmatpush.bf16.msra.mxu0 0
    %1200 = vmatpush.bf16.msra.mxu0 0
    %1201 = vmatpush.bf16.msra.mxu0 %v1173
    %1202 = vmatpush.bf16.msra.mxu0 %v1150
    %1203 = vmatmul.bf16.gmra.mxu0 %v1166
    %v1204 = vpop.f32.mrf.mxu0
    %v1205 = vadd.f32 0.0, %v1204
    %v1206 = vpop.f32.mrf.mxu0
    %v1207 = vadd.f32 0.0, %v1206
    %1208 = vdwg.mxu0
    %1209 = vmatpush.bf16.msra.mxu0 0
    %1210 = vmatpush.bf16.msra.mxu0 0
    %1211 = vmatpush.bf16.msra.mxu0 0
    %1212 = vmatpush.bf16.msra.mxu0 0
    %1213 = vmatpush.bf16.msra.mxu0 0
    %1214 = vmatpush.bf16.msra.mxu0 0
    %1215 = vmatpush.bf16.msra.mxu0 %v1176
    %1216 = vmatpush.bf16.msra.mxu0 %v1151
    %1217 = vmatmul.bf16.gmra.mxu0 %v1166
    %v1218 = vpop.f32.mrf.mxu0
    %v1219 = vadd.f32 0.0, %v1218
    %v1220 = vpop.f32.mrf.mxu0
    %v1221 = vadd.f32 0.0, %v1220
    %1222 = vdwg.mxu0
    %1223 = vmatpush.bf16.msra.mxu0 0
    %1224 = vmatpush.bf16.msra.mxu0 0
    %1225 = vmatpush.bf16.msra.mxu0 0
    %1226 = vmatpush.bf16.msra.mxu0 0
    %1227 = vmatpush.bf16.msra.mxu0 0
    %1228 = vmatpush.bf16.msra.mxu0 0
    %1229 = vmatpush.bf16.msra.mxu0 %v1179
    %1230 = vmatpush.bf16.msra.mxu0 %v1152
    %1231 = vmatmul.bf16.gmra.mxu0 %v1166
    %v1232 = vpop.f32.mrf.mxu0
    %v1233 = vadd.f32 0.0, %v1232
    %v1234 = vpop.f32.mrf.mxu0
    %v1235 = vadd.f32 0.0, %v1234
    %1236 = vdwg.mxu0
    %v1237 = vpack.c.bf16 %v1193, %v1191
    %v1238 = vpack.c.bf16 %v1207, %v1205
    %v1239 = vpack.c.bf16 %v1221, %v1219
    %v1240 = vpack.c.bf16 %v1235, %v1233
    %v1241 = vld [vmem:[%s5] sm:$0xff]
    %v1242 = vld [vmem:[%s5 + $0x8] sm:$0xff]
    %v1243 = vld [vmem:[%s5 + $0x10] sm:$0xff]
    %v1244 = vld [vmem:[%s5 + $0x18] sm:$0xff]
    %v1245 = vld [vmem:[%s5 + $0x20] sm:$0xff]
    %v1246 = vld [vmem:[%s5 + $0x28] sm:$0xff]
    %v1247 = vld [vmem:[%s5 + $0x30] sm:$0xff]
    %v1248 = vld [vmem:[%s5 + $0x38] sm:$0xff]
    %v1249 = vld [vmem:[%s5 + $0x40] sm:$0xff]
    %v1250 = vld [vmem:[%s5 + $0x48] sm:$0xff]
    %v1251 = vld [vmem:[%s5 + $0x50] sm:$0xff]
    %v1252 = vld [vmem:[%s5 + $0x58] sm:$0xff]
    %v1253 = vld [vmem:[%s5 + $0x60] sm:$0xff]
    %v1254 = vld [vmem:[%s5 + $0x68] sm:$0xff]
    %v1255 = vld [vmem:[%s5 + $0x70] sm:$0xff]
    %v1256 = vld [vmem:[%s5 + $0x78] sm:$0xff]
    %v1257 = vld [vmem:[%s5 + $0x80] sm:$0xff]
    %v1258 = vld [vmem:[%s5 + $0x88] sm:$0xff]
    %v1259 = vld [vmem:[%s5 + $0x90] sm:$0xff]
    %v1260 = vld [vmem:[%s5 + $0x98] sm:$0xff]
    %v1261 = vld [vmem:[%s5 + $0xa0] sm:$0xff]
    %v1262 = vld [vmem:[%s5 + $0xa8] sm:$0xff]
    %v1263 = vld [vmem:[%s5 + $0xb0] sm:$0xff]
    %v1264 = vld [vmem:[%s5 + $0xb8] sm:$0xff]
    %v1265 = vld [vmem:[%s5 + $0xc0] sm:$0xff]
    %v1266 = vld [vmem:[%s5 + $0xc8] sm:$0xff]
    %v1267 = vld [vmem:[%s5 + $0xd0] sm:$0xff]
    %v1268 = vld [vmem:[%s5 + $0xd8] sm:$0xff]
    %v1269 = vld [vmem:[%s5 + $0xe0] sm:$0xff]
    %v1270 = vld [vmem:[%s5 + $0xe8] sm:$0xff]
    %v1271 = vld [vmem:[%s5 + $0xf0] sm:$0xff]
    %v1272 = vld [vmem:[%s5 + $0xf8] sm:$0xff]
    %v1273 = vld [vmem:[%s5 + $0x100] sm:$0xff]
    %v1274 = vld [vmem:[%s5 + $0x108] sm:$0xff]
    %v1275 = vld [vmem:[%s5 + $0x110] sm:$0xff]
    %v1276 = vld [vmem:[%s5 + $0x118] sm:$0xff]
    %v1277 = vld [vmem:[%s5 + $0x120] sm:$0xff]
    %v1278 = vld [vmem:[%s5 + $0x128] sm:$0xff]
    %v1279 = vld [vmem:[%s5 + $0x130] sm:$0xff]
    %v1280 = vld [vmem:[%s5 + $0x138] sm:$0xff]
    %v1281 = vld [vmem:[%s5 + $0x140] sm:$0xff]
    %v1282 = vld [vmem:[%s5 + $0x148] sm:$0xff]
    %v1283 = vld [vmem:[%s5 + $0x150] sm:$0xff]
    %v1284 = vld [vmem:[%s5 + $0x158] sm:$0xff]
    %v1285 = vld [vmem:[%s5 + $0x160] sm:$0xff]
    %v1286 = vld [vmem:[%s5 + $0x168] sm:$0xff]
    %v1287 = vld [vmem:[%s5 + $0x170] sm:$0xff]
    %v1288 = vld [vmem:[%s5 + $0x178] sm:$0xff]
    %v1289 = vld [vmem:[%s5 + $0x180] sm:$0xff]
    %v1290 = vld [vmem:[%s5 + $0x188] sm:$0xff]
    %v1291 = vld [vmem:[%s5 + $0x190] sm:$0xff]
    %v1292 = vld [vmem:[%s5 + $0x198] sm:$0xff]
    %v1293 = vld [vmem:[%s5 + $0x1a0] sm:$0xff]
    %v1294 = vld [vmem:[%s5 + $0x1a8] sm:$0xff]
    %v1295 = vld [vmem:[%s5 + $0x1b0] sm:$0xff]
    %v1296 = vld [vmem:[%s5 + $0x1b8] sm:$0xff]
    %v1297 = vld [vmem:[%s5 + $0x1c0] sm:$0xff]
    %v1298 = vld [vmem:[%s5 + $0x1c8] sm:$0xff]
    %v1299 = vld [vmem:[%s5 + $0x1d0] sm:$0xff]
    %v1300 = vld [vmem:[%s5 + $0x1d8] sm:$0xff]
    %v1301 = vld [vmem:[%s5 + $0x1e0] sm:$0xff]
    %v1302 = vld [vmem:[%s5 + $0x1e8] sm:$0xff]
    %v1303 = vld [vmem:[%s5 + $0x1f0] sm:$0xff]
    %v1304 = vld [vmem:[%s5 + $0x1f8] sm:$0xff]
    %v1305 = vld [vmem:[%s5 + $0x200] sm:$0xff]
    %v1306 = vld [vmem:[%s5 + $0x208] sm:$0xff]
    %v1307 = vld [vmem:[%s5 + $0x210] sm:$0xff]
    %v1308 = vld [vmem:[%s5 + $0x218] sm:$0xff]
    %v1309 = vld [vmem:[%s5 + $0x220] sm:$0xff]
    %v1310 = vld [vmem:[%s5 + $0x228] sm:$0xff]
    %v1311 = vld [vmem:[%s5 + $0x230] sm:$0xff]
    %v1312 = vld [vmem:[%s5 + $0x238] sm:$0xff]
    %v1313 = vld [vmem:[%s5 + $0x240] sm:$0xff]
    %v1314 = vld [vmem:[%s5 + $0x248] sm:$0xff]
    %v1315 = vld [vmem:[%s5 + $0x250] sm:$0xff]
    %v1316 = vld [vmem:[%s5 + $0x258] sm:$0xff]
    %v1317 = vld [vmem:[%s5 + $0x260] sm:$0xff]
    %v1318 = vld [vmem:[%s5 + $0x268] sm:$0xff]
    %v1319 = vld [vmem:[%s5 + $0x270] sm:$0xff]
    %v1320 = vld [vmem:[%s5 + $0x278] sm:$0xff]
    %v1321 = vld [vmem:[%s5 + $0x280] sm:$0xff]
    %v1322 = vld [vmem:[%s5 + $0x288] sm:$0xff]
    %v1323 = vld [vmem:[%s5 + $0x290] sm:$0xff]
    %v1324 = vld [vmem:[%s5 + $0x298] sm:$0xff]
    %v1325 = vld [vmem:[%s5 + $0x2a0] sm:$0xff]
    %v1326 = vld [vmem:[%s5 + $0x2a8] sm:$0xff]
    %v1327 = vld [vmem:[%s5 + $0x2b0] sm:$0xff]
    %v1328 = vld [vmem:[%s5 + $0x2b8] sm:$0xff]
    %v1329 = vld [vmem:[%s5 + $0x2c0] sm:$0xff]
    %v1330 = vld [vmem:[%s5 + $0x2c8] sm:$0xff]
    %v1331 = vld [vmem:[%s5 + $0x2d0] sm:$0xff]
    %v1332 = vld [vmem:[%s5 + $0x2d8] sm:$0xff]
    %v1333 = vld [vmem:[%s5 + $0x2e0] sm:$0xff]
    %v1334 = vld [vmem:[%s5 + $0x2e8] sm:$0xff]
    %v1335 = vld [vmem:[%s5 + $0x2f0] sm:$0xff]
    %v1336 = vld [vmem:[%s5 + $0x2f8] sm:$0xff]
    %v1337 = vld [vmem:[%s5 + $0x300] sm:$0xff]
    %v1338 = vld [vmem:[%s5 + $0x308] sm:$0xff]
    %v1339 = vld [vmem:[%s5 + $0x310] sm:$0xff]
    %v1340 = vld [vmem:[%s5 + $0x318] sm:$0xff]
    %v1341 = vld [vmem:[%s5 + $0x320] sm:$0xff]
    %v1342 = vld [vmem:[%s5 + $0x328] sm:$0xff]
    %v1343 = vld [vmem:[%s5 + $0x330] sm:$0xff]
    %v1344 = vld [vmem:[%s5 + $0x338] sm:$0xff]
    %v1345 = vld [vmem:[%s5 + $0x340] sm:$0xff]
    %v1346 = vld [vmem:[%s5 + $0x348] sm:$0xff]
    %v1347 = vld [vmem:[%s5 + $0x350] sm:$0xff]
    %v1348 = vld [vmem:[%s5 + $0x358] sm:$0xff]
    %v1349 = vld [vmem:[%s5 + $0x360] sm:$0xff]
    %v1350 = vld [vmem:[%s5 + $0x368] sm:$0xff]
    %v1351 = vld [vmem:[%s5 + $0x370] sm:$0xff]
    %v1352 = vld [vmem:[%s5 + $0x378] sm:$0xff]
    %v1353 = vld [vmem:[%s5 + $0x380] sm:$0xff]
    %v1354 = vld [vmem:[%s5 + $0x388] sm:$0xff]
    %v1355 = vld [vmem:[%s5 + $0x390] sm:$0xff]
    %v1356 = vld [vmem:[%s5 + $0x398] sm:$0xff]
    %v1357 = vld [vmem:[%s5 + $0x3a0] sm:$0xff]
    %v1358 = vld [vmem:[%s5 + $0x3a8] sm:$0xff]
    %v1359 = vld [vmem:[%s5 + $0x3b0] sm:$0xff]
    %v1360 = vld [vmem:[%s5 + $0x3b8] sm:$0xff]
    %s1361 = scalar_lea.vmem %s4, 8
    %v1362 = vld [vmem:[%s1361] sm:$0xf]
    %v1363 = vld [vmem:[%s1361 + $0x4] sm:$0x7]
    %v1366 = vunpack.c.l.b16 %v1362
    %v1367 = vunpack.c.l.b16 %v1363
    %v1368 = vpack.c.b16 %v1367, %v1366
    %v1370 = vsel %vm1164, %v1368, 0
    %1372 = vmatpush.bf16.msra.mxu0 0
    %1373 = vmatpush.bf16.msra.mxu0 0
    %1374 = vmatpush.bf16.msra.mxu0 0
    %1375 = vmatpush.bf16.msra.mxu0 0
    %1376 = vmatpush.bf16.msra.mxu0 0
    %1377 = vmatpush.bf16.msra.mxu0 0
    %1378 = vmatpush.bf16.msra.mxu0 %v1170
    %1379 = vmatpush.bf16.msra.mxu0 %v1149
    %1380 = vmatmul.bf16.gmra.mxu0 %v1370
    %v1381 = vpop.f32.mrf.mxu0
    %v1382 = vadd.f32 0.0, %v1381
    %v1383 = vpop.f32.mrf.mxu0
    %v1384 = vadd.f32 0.0, %v1383
    %1385 = vdwg.mxu0
    %1386 = vmatpush.bf16.msra.mxu0 0
    %1387 = vmatpush.bf16.msra.mxu0 0
    %1388 = vmatpush.bf16.msra.mxu0 0
    %1389 = vmatpush.bf16.msra.mxu0 0
    %1390 = vmatpush.bf16.msra.mxu0 0
    %1391 = vmatpush.bf16.msra.mxu0 0
    %1392 = vmatpush.bf16.msra.mxu0 %v1173
    %1393 = vmatpush.bf16.msra.mxu0 %v1150
    %1394 = vmatmul.bf16.gmra.mxu0 %v1370
    %v1395 = vpop.f32.mrf.mxu0
    %v1396 = vadd.f32 0.0, %v1395
    %v1397 = vpop.f32.mrf.mxu0
    %v1398 = vadd.f32 0.0, %v1397
    %1399 = vdwg.mxu0
    %1400 = vmatpush.bf16.msra.mxu0 0
    %1401 = vmatpush.bf16.msra.mxu0 0
    %1402 = vmatpush.bf16.msra.mxu0 0
    %1403 = vmatpush.bf16.msra.mxu0 0
    %1404 = vmatpush.bf16.msra.mxu0 0
    %1405 = vmatpush.bf16.msra.mxu0 0
    %1406 = vmatpush.bf16.msra.mxu0 %v1176
    %1407 = vmatpush.bf16.msra.mxu0 %v1151
    %1408 = vmatmul.bf16.gmra.mxu0 %v1370
    %v1409 = vpop.f32.mrf.mxu0
    %v1410 = vadd.f32 0.0, %v1409
    %v1411 = vpop.f32.mrf.mxu0
    %v1412 = vadd.f32 0.0, %v1411
    %1413 = vdwg.mxu0
    %1414 = vmatpush.bf16.msra.mxu0 0
    %1415 = vmatpush.bf16.msra.mxu0 0
    %1416 = vmatpush.bf16.msra.mxu0 0
    %1417 = vmatpush.bf16.msra.mxu0 0
    %1418 = vmatpush.bf16.msra.mxu0 0
    %1419 = vmatpush.bf16.msra.mxu0 0
    %1420 = vmatpush.bf16.msra.mxu0 %v1179
    %1421 = vmatpush.bf16.msra.mxu0 %v1152
    %1422 = vmatmul.bf16.gmra.mxu0 %v1370
    %v1423 = vpop.f32.mrf.mxu0
    %v1424 = vadd.f32 0.0, %v1423
    %v1425 = vpop.f32.mrf.mxu0
    %v1426 = vadd.f32 0.0, %v1425
    %1427 = vdwg.mxu0
    %v1428 = vpack.c.bf16 %v1384, %v1382
    %v1429 = vpack.c.bf16 %v1398, %v1396
    %v1430 = vpack.c.bf16 %v1412, %v1410
    %v1431 = vpack.c.bf16 %v1426, %v1424
    %s1432 = scalar_lea.vmem %s5, 960
    %v1433 = vld [vmem:[%s1432] sm:$0xff]
    %v1434 = vld [vmem:[%s1432 + $0x8] sm:$0xff]
    %v1435 = vld [vmem:[%s1432 + $0x10] sm:$0xff]
    %v1436 = vld [vmem:[%s1432 + $0x18] sm:$0xff]
    %v1437 = vld [vmem:[%s1432 + $0x20] sm:$0xff]
    %v1438 = vld [vmem:[%s1432 + $0x28] sm:$0xff]
    %v1439 = vld [vmem:[%s1432 + $0x30] sm:$0xff]
    %v1440 = vld [vmem:[%s1432 + $0x38] sm:$0xff]
    %v1441 = vld [vmem:[%s1432 + $0x40] sm:$0xff]
    %v1442 = vld [vmem:[%s1432 + $0x48] sm:$0xff]
    %v1443 = vld [vmem:[%s1432 + $0x50] sm:$0xff]
    %v1444 = vld [vmem:[%s1432 + $0x58] sm:$0xff]
    %v1445 = vld [vmem:[%s1432 + $0x60] sm:$0xff]
    %v1446 = vld [vmem:[%s1432 + $0x68] sm:$0xff]
    %v1447 = vld [vmem:[%s1432 + $0x70] sm:$0xff]
    %v1448 = vld [vmem:[%s1432 + $0x78] sm:$0xff]
    %v1449 = vld [vmem:[%s1432 + $0x80] sm:$0xff]
    %v1450 = vld [vmem:[%s1432 + $0x88] sm:$0xff]
    %v1451 = vld [vmem:[%s1432 + $0x90] sm:$0xff]
    %v1452 = vld [vmem:[%s1432 + $0x98] sm:$0xff]
    %v1453 = vld [vmem:[%s1432 + $0xa0] sm:$0xff]
    %v1454 = vld [vmem:[%s1432 + $0xa8] sm:$0xff]
    %v1455 = vld [vmem:[%s1432 + $0xb0] sm:$0xff]
    %v1456 = vld [vmem:[%s1432 + $0xb8] sm:$0xff]
    %v1457 = vld [vmem:[%s1432 + $0xc0] sm:$0xff]
    %v1458 = vld [vmem:[%s1432 + $0xc8] sm:$0xff]
    %v1459 = vld [vmem:[%s1432 + $0xd0] sm:$0xff]
    %v1460 = vld [vmem:[%s1432 + $0xd8] sm:$0xff]
    %v1461 = vld [vmem:[%s1432 + $0xe0] sm:$0xff]
    %v1462 = vld [vmem:[%s1432 + $0xe8] sm:$0xff]
    %v1463 = vld [vmem:[%s1432 + $0xf0] sm:$0xff]
    %v1464 = vld [vmem:[%s1432 + $0xf8] sm:$0xff]
    %v1465 = vld [vmem:[%s1432 + $0x100] sm:$0xff]
    %v1466 = vld [vmem:[%s1432 + $0x108] sm:$0xff]
    %v1467 = vld [vmem:[%s1432 + $0x110] sm:$0xff]
    %v1468 = vld [vmem:[%s1432 + $0x118] sm:$0xff]
    %v1469 = vld [vmem:[%s1432 + $0x120] sm:$0xff]
    %v1470 = vld [vmem:[%s1432 + $0x128] sm:$0xff]
    %v1471 = vld [vmem:[%s1432 + $0x130] sm:$0xff]
    %v1472 = vld [vmem:[%s1432 + $0x138] sm:$0xff]
    %v1473 = vld [vmem:[%s1432 + $0x140] sm:$0xff]
    %v1474 = vld [vmem:[%s1432 + $0x148] sm:$0xff]
    %v1475 = vld [vmem:[%s1432 + $0x150] sm:$0xff]
    %v1476 = vld [vmem:[%s1432 + $0x158] sm:$0xff]
    %v1477 = vld [vmem:[%s1432 + $0x160] sm:$0xff]
    %v1478 = vld [vmem:[%s1432 + $0x168] sm:$0xff]
    %v1479 = vld [vmem:[%s1432 + $0x170] sm:$0xff]
    %v1480 = vld [vmem:[%s1432 + $0x178] sm:$0xff]
    %v1481 = vld [vmem:[%s1432 + $0x180] sm:$0xff]
    %v1482 = vld [vmem:[%s1432 + $0x188] sm:$0xff]
    %v1483 = vld [vmem:[%s1432 + $0x190] sm:$0xff]
    %v1484 = vld [vmem:[%s1432 + $0x198] sm:$0xff]
    %v1485 = vld [vmem:[%s1432 + $0x1a0] sm:$0xff]
    %v1486 = vld [vmem:[%s1432 + $0x1a8] sm:$0xff]
    %v1487 = vld [vmem:[%s1432 + $0x1b0] sm:$0xff]
    %v1488 = vld [vmem:[%s1432 + $0x1b8] sm:$0xff]
    %v1489 = vld [vmem:[%s1432 + $0x1c0] sm:$0xff]
    %v1490 = vld [vmem:[%s1432 + $0x1c8] sm:$0xff]
    %v1491 = vld [vmem:[%s1432 + $0x1d0] sm:$0xff]
    %v1492 = vld [vmem:[%s1432 + $0x1d8] sm:$0xff]
    %v1493 = vld [vmem:[%s1432 + $0x1e0] sm:$0xff]
    %v1494 = vld [vmem:[%s1432 + $0x1e8] sm:$0xff]
    %v1495 = vld [vmem:[%s1432 + $0x1f0] sm:$0xff]
    %v1496 = vld [vmem:[%s1432 + $0x1f8] sm:$0xff]
    %v1497 = vld [vmem:[%s1432 + $0x200] sm:$0xff]
    %v1498 = vld [vmem:[%s1432 + $0x208] sm:$0xff]
    %v1499 = vld [vmem:[%s1432 + $0x210] sm:$0xff]
    %v1500 = vld [vmem:[%s1432 + $0x218] sm:$0xff]
    %v1501 = vld [vmem:[%s1432 + $0x220] sm:$0xff]
    %v1502 = vld [vmem:[%s1432 + $0x228] sm:$0xff]
    %v1503 = vld [vmem:[%s1432 + $0x230] sm:$0xff]
    %v1504 = vld [vmem:[%s1432 + $0x238] sm:$0xff]
    %v1505 = vld [vmem:[%s1432 + $0x240] sm:$0xff]
    %v1506 = vld [vmem:[%s1432 + $0x248] sm:$0xff]
    %v1507 = vld [vmem:[%s1432 + $0x250] sm:$0xff]
    %v1508 = vld [vmem:[%s1432 + $0x258] sm:$0xff]
    %v1509 = vld [vmem:[%s1432 + $0x260] sm:$0xff]
    %v1510 = vld [vmem:[%s1432 + $0x268] sm:$0xff]
    %v1511 = vld [vmem:[%s1432 + $0x270] sm:$0xff]
    %v1512 = vld [vmem:[%s1432 + $0x278] sm:$0xff]
    %v1513 = vld [vmem:[%s1432 + $0x280] sm:$0xff]
    %v1514 = vld [vmem:[%s1432 + $0x288] sm:$0xff]
    %v1515 = vld [vmem:[%s1432 + $0x290] sm:$0xff]
    %v1516 = vld [vmem:[%s1432 + $0x298] sm:$0xff]
    %v1517 = vld [vmem:[%s1432 + $0x2a0] sm:$0xff]
    %v1518 = vld [vmem:[%s1432 + $0x2a8] sm:$0xff]
    %v1519 = vld [vmem:[%s1432 + $0x2b0] sm:$0xff]
    %v1520 = vld [vmem:[%s1432 + $0x2b8] sm:$0xff]
    %v1521 = vld [vmem:[%s1432 + $0x2c0] sm:$0xff]
    %v1522 = vld [vmem:[%s1432 + $0x2c8] sm:$0xff]
    %v1523 = vld [vmem:[%s1432 + $0x2d0] sm:$0xff]
    %v1524 = vld [vmem:[%s1432 + $0x2d8] sm:$0xff]
    %v1525 = vld [vmem:[%s1432 + $0x2e0] sm:$0xff]
    %v1526 = vld [vmem:[%s1432 + $0x2e8] sm:$0xff]
    %v1527 = vld [vmem:[%s1432 + $0x2f0] sm:$0xff]
    %v1528 = vld [vmem:[%s1432 + $0x2f8] sm:$0xff]
    %v1529 = vld [vmem:[%s1432 + $0x300] sm:$0xff]
    %v1530 = vld [vmem:[%s1432 + $0x308] sm:$0xff]
    %v1531 = vld [vmem:[%s1432 + $0x310] sm:$0xff]
    %v1532 = vld [vmem:[%s1432 + $0x318] sm:$0xff]
    %v1533 = vld [vmem:[%s1432 + $0x320] sm:$0xff]
    %v1534 = vld [vmem:[%s1432 + $0x328] sm:$0xff]
    %v1535 = vld [vmem:[%s1432 + $0x330] sm:$0xff]
    %v1536 = vld [vmem:[%s1432 + $0x338] sm:$0xff]
    %v1537 = vld [vmem:[%s1432 + $0x340] sm:$0xff]
    %v1538 = vld [vmem:[%s1432 + $0x348] sm:$0xff]
    %v1539 = vld [vmem:[%s1432 + $0x350] sm:$0xff]
    %v1540 = vld [vmem:[%s1432 + $0x358] sm:$0xff]
    %v1541 = vld [vmem:[%s1432 + $0x360] sm:$0xff]
    %v1542 = vld [vmem:[%s1432 + $0x368] sm:$0xff]
    %v1543 = vld [vmem:[%s1432 + $0x370] sm:$0xff]
    %v1544 = vld [vmem:[%s1432 + $0x378] sm:$0xff]
    %v1545 = vld [vmem:[%s1432 + $0x380] sm:$0xff]
    %v1546 = vld [vmem:[%s1432 + $0x388] sm:$0xff]
    %v1547 = vld [vmem:[%s1432 + $0x390] sm:$0xff]
    %v1548 = vld [vmem:[%s1432 + $0x398] sm:$0xff]
    %v1549 = vld [vmem:[%s1432 + $0x3a0] sm:$0xff]
    %v1550 = vld [vmem:[%s1432 + $0x3a8] sm:$0xff]
    %v1551 = vld [vmem:[%s1432 + $0x3b0] sm:$0xff]
    %v1552 = vld [vmem:[%s1432 + $0x3b8] sm:$0xff]
    %v1673 = vunpack.c.l.b16 %v1433
    %v1674 = vunpack.c.h.b16 %v1433
    %v1675 = vunpack.c.l.b16 %v1434
    %v1676 = vunpack.c.h.b16 %v1434
    %v1677 = vunpack.c.l.b16 %v1435
    %v1678 = vunpack.c.h.b16 %v1435
    %v1679 = vunpack.c.l.b16 %v1436
    %v1680 = vunpack.c.h.b16 %v1436
    %v1681 = vunpack.c.l.b16 %v1437
    %v1682 = vunpack.c.h.b16 %v1437
    %v1683 = vunpack.c.l.b16 %v1438
    %v1684 = vunpack.c.h.b16 %v1438
    %v1685 = vunpack.c.l.b16 %v1439
    %v1686 = vunpack.c.h.b16 %v1439
    %v1687 = vunpack.c.l.b16 %v1440
    %v1688 = vunpack.c.h.b16 %v1440
    %v1689 = vunpack.c.l.b16 %v1441
    %v1690 = vunpack.c.h.b16 %v1441
    %v1691 = vunpack.c.l.b16 %v1442
    %v1692 = vunpack.c.h.b16 %v1442
    %v1693 = vunpack.c.l.b16 %v1443
    %v1694 = vunpack.c.h.b16 %v1443
    %v1695 = vunpack.c.l.b16 %v1444
    %v1696 = vunpack.c.h.b16 %v1444
    %v1697 = vunpack.c.l.b16 %v1445
    %v1698 = vunpack.c.h.b16 %v1445
    %v1699 = vunpack.c.l.b16 %v1446
    %v1700 = vunpack.c.h.b16 %v1446
    %v1701 = vunpack.c.l.b16 %v1447
    %v1702 = vunpack.c.h.b16 %v1447
    %v1703 = vunpack.c.l.b16 %v1448
    %v1704 = vunpack.c.h.b16 %v1448
    %v1705 = vunpack.c.l.b16 %v1449
    %v1706 = vunpack.c.h.b16 %v1449
    %v1707 = vunpack.c.l.b16 %v1450
    %v1708 = vunpack.c.h.b16 %v1450
    %v1709 = vunpack.c.l.b16 %v1451
    %v1710 = vunpack.c.h.b16 %v1451
    %v1711 = vunpack.c.l.b16 %v1452
    %v1712 = vunpack.c.h.b16 %v1452
    %v1713 = vunpack.c.l.b16 %v1453
    %v1714 = vunpack.c.h.b16 %v1453
    %v1715 = vunpack.c.l.b16 %v1454
    %v1716 = vunpack.c.h.b16 %v1454
    %v1717 = vunpack.c.l.b16 %v1455
    %v1718 = vunpack.c.h.b16 %v1455
    %v1719 = vunpack.c.l.b16 %v1456
    %v1720 = vunpack.c.h.b16 %v1456
    %v1721 = vunpack.c.l.b16 %v1457
    %v1722 = vunpack.c.h.b16 %v1457
    %v1723 = vunpack.c.l.b16 %v1458
    %v1724 = vunpack.c.h.b16 %v1458
    %v1725 = vunpack.c.l.b16 %v1459
    %v1726 = vunpack.c.h.b16 %v1459
    %v1727 = vunpack.c.l.b16 %v1460
    %v1728 = vunpack.c.h.b16 %v1460
    %v1729 = vunpack.c.l.b16 %v1461
    %v1730 = vunpack.c.h.b16 %v1461
    %v1731 = vunpack.c.l.b16 %v1462
    %v1732 = vunpack.c.h.b16 %v1462
    %v1733 = vunpack.c.l.b16 %v1463
    %v1734 = vunpack.c.h.b16 %v1463
    %v1735 = vunpack.c.l.b16 %v1464
    %v1736 = vunpack.c.h.b16 %v1464
    %v1737 = vunpack.c.l.b16 %v1465
    %v1738 = vunpack.c.h.b16 %v1465
    %v1739 = vunpack.c.l.b16 %v1466
    %v1740 = vunpack.c.h.b16 %v1466
    %v1741 = vunpack.c.l.b16 %v1467
    %v1742 = vunpack.c.h.b16 %v1467
    %v1743 = vunpack.c.l.b16 %v1468
    %v1744 = vunpack.c.h.b16 %v1468
    %v1745 = vunpack.c.l.b16 %v1469
    %v1746 = vunpack.c.h.b16 %v1469
    %v1747 = vunpack.c.l.b16 %v1470
    %v1748 = vunpack.c.h.b16 %v1470
    %v1749 = vunpack.c.l.b16 %v1471
    %v1750 = vunpack.c.h.b16 %v1471
    %v1751 = vunpack.c.l.b16 %v1472
    %v1752 = vunpack.c.h.b16 %v1472
    %v1753 = vunpack.c.l.b16 %v1473
    %v1754 = vunpack.c.h.b16 %v1473
    %v1755 = vunpack.c.l.b16 %v1474
    %v1756 = vunpack.c.h.b16 %v1474
    %v1757 = vunpack.c.l.b16 %v1475
    %v1758 = vunpack.c.h.b16 %v1475
    %v1759 = vunpack.c.l.b16 %v1476
    %v1760 = vunpack.c.h.b16 %v1476
    %v1761 = vunpack.c.l.b16 %v1477
    %v1762 = vunpack.c.h.b16 %v1477
    %v1763 = vunpack.c.l.b16 %v1478
    %v1764 = vunpack.c.h.b16 %v1478
    %v1765 = vunpack.c.l.b16 %v1479
    %v1766 = vunpack.c.h.b16 %v1479
    %v1767 = vunpack.c.l.b16 %v1480
    %v1768 = vunpack.c.h.b16 %v1480
    %v1769 = vunpack.c.l.b16 %v1481
    %v1770 = vunpack.c.h.b16 %v1481
    %v1771 = vunpack.c.l.b16 %v1482
    %v1772 = vunpack.c.h.b16 %v1482
    %v1773 = vunpack.c.l.b16 %v1483
    %v1774 = vunpack.c.h.b16 %v1483
    %v1775 = vunpack.c.l.b16 %v1484
    %v1776 = vunpack.c.h.b16 %v1484
    %v1777 = vunpack.c.l.b16 %v1485
    %v1778 = vunpack.c.h.b16 %v1485
    %v1779 = vunpack.c.l.b16 %v1486
    %v1780 = vunpack.c.h.b16 %v1486
    %v1781 = vunpack.c.l.b16 %v1487
    %v1782 = vunpack.c.h.b16 %v1487
    %v1783 = vunpack.c.l.b16 %v1488
    %v1784 = vunpack.c.h.b16 %v1488
    %v1785 = vunpack.c.l.b16 %v1489
    %v1786 = vunpack.c.h.b16 %v1489
    %v1787 = vunpack.c.l.b16 %v1490
    %v1788 = vunpack.c.h.b16 %v1490
    %v1789 = vunpack.c.l.b16 %v1491
    %v1790 = vunpack.c.h.b16 %v1491
    %v1791 = vunpack.c.l.b16 %v1492
    %v1792 = vunpack.c.h.b16 %v1492
    %v1793 = vunpack.c.l.b16 %v1493
    %v1794 = vunpack.c.h.b16 %v1493
    %v1795 = vunpack.c.l.b16 %v1494
    %v1796 = vunpack.c.h.b16 %v1494
    %v1797 = vunpack.c.l.b16 %v1495
    %v1798 = vunpack.c.h.b16 %v1495
    %v1799 = vunpack.c.l.b16 %v1496
    %v1800 = vunpack.c.h.b16 %v1496
    %v1801 = vunpack.c.l.b16 %v1497
    %v1802 = vunpack.c.h.b16 %v1497
    %v1803 = vunpack.c.l.b16 %v1498
    %v1804 = vunpack.c.h.b16 %v1498
    %v1805 = vunpack.c.l.b16 %v1499
    %v1806 = vunpack.c.h.b16 %v1499
    %v1807 = vunpack.c.l.b16 %v1500
    %v1808 = vunpack.c.h.b16 %v1500
    %v1809 = vunpack.c.l.b16 %v1501
    %v1810 = vunpack.c.h.b16 %v1501
    %v1811 = vunpack.c.l.b16 %v1502
    %v1812 = vunpack.c.h.b16 %v1502
    %v1813 = vunpack.c.l.b16 %v1503
    %v1814 = vunpack.c.h.b16 %v1503
    %v1815 = vunpack.c.l.b16 %v1504
    %v1816 = vunpack.c.h.b16 %v1504
    %v1817 = vunpack.c.l.b16 %v1505
    %v1818 = vunpack.c.h.b16 %v1505
    %v1819 = vunpack.c.l.b16 %v1506
    %v1820 = vunpack.c.h.b16 %v1506
    %v1821 = vunpack.c.l.b16 %v1507
    %v1822 = vunpack.c.h.b16 %v1507
    %v1823 = vunpack.c.l.b16 %v1508
    %v1824 = vunpack.c.h.b16 %v1508
    %v1825 = vunpack.c.l.b16 %v1509
    %v1826 = vunpack.c.h.b16 %v1509
    %v1827 = vunpack.c.l.b16 %v1510
    %v1828 = vunpack.c.h.b16 %v1510
    %v1829 = vunpack.c.l.b16 %v1511
    %v1830 = vunpack.c.h.b16 %v1511
    %v1831 = vunpack.c.l.b16 %v1512
    %v1832 = vunpack.c.h.b16 %v1512
    %v1833 = vunpack.c.l.b16 %v1513
    %v1834 = vunpack.c.h.b16 %v1513
    %v1835 = vunpack.c.l.b16 %v1514
    %v1836 = vunpack.c.h.b16 %v1514
    %v1837 = vunpack.c.l.b16 %v1515
    %v1838 = vunpack.c.h.b16 %v1515
    %v1839 = vunpack.c.l.b16 %v1516
    %v1840 = vunpack.c.h.b16 %v1516
    %v1841 = vunpack.c.l.b16 %v1517
    %v1842 = vunpack.c.h.b16 %v1517
    %v1843 = vunpack.c.l.b16 %v1518
    %v1844 = vunpack.c.h.b16 %v1518
    %v1845 = vunpack.c.l.b16 %v1519
    %v1846 = vunpack.c.h.b16 %v1519
    %v1847 = vunpack.c.l.b16 %v1520
    %v1848 = vunpack.c.h.b16 %v1520
    %v1849 = vunpack.c.l.b16 %v1521
    %v1850 = vunpack.c.h.b16 %v1521
    %v1851 = vunpack.c.l.b16 %v1522
    %v1852 = vunpack.c.h.b16 %v1522
    %v1853 = vunpack.c.l.b16 %v1523
    %v1854 = vunpack.c.h.b16 %v1523
    %v1855 = vunpack.c.l.b16 %v1524
    %v1856 = vunpack.c.h.b16 %v1524
    %v1857 = vunpack.c.l.b16 %v1525
    %v1858 = vunpack.c.h.b16 %v1525
    %v1859 = vunpack.c.l.b16 %v1526
    %v1860 = vunpack.c.h.b16 %v1526
    %v1861 = vunpack.c.l.b16 %v1527
    %v1862 = vunpack.c.h.b16 %v1527
    %v1863 = vunpack.c.l.b16 %v1528
    %v1864 = vunpack.c.h.b16 %v1528
    %v1865 = vunpack.c.l.b16 %v1529
    %v1866 = vunpack.c.h.b16 %v1529
    %v1867 = vunpack.c.l.b16 %v1530
    %v1868 = vunpack.c.h.b16 %v1530
    %v1869 = vunpack.c.l.b16 %v1531
    %v1870 = vunpack.c.h.b16 %v1531
    %v1871 = vunpack.c.l.b16 %v1532
    %v1872 = vunpack.c.h.b16 %v1532
    %v1873 = vunpack.c.l.b16 %v1533
    %v1874 = vunpack.c.h.b16 %v1533
    %v1875 = vunpack.c.l.b16 %v1534
    %v1876 = vunpack.c.h.b16 %v1534
    %v1877 = vunpack.c.l.b16 %v1535
    %v1878 = vunpack.c.h.b16 %v1535
    %v1879 = vunpack.c.l.b16 %v1536
    %v1880 = vunpack.c.h.b16 %v1536
    %v1881 = vunpack.c.l.b16 %v1537
    %v1882 = vunpack.c.h.b16 %v1537
    %v1883 = vunpack.c.l.b16 %v1538
    %v1884 = vunpack.c.h.b16 %v1538
    %v1885 = vunpack.c.l.b16 %v1539
    %v1886 = vunpack.c.h.b16 %v1539
    %v1887 = vunpack.c.l.b16 %v1540
    %v1888 = vunpack.c.h.b16 %v1540
    %v1889 = vunpack.c.l.b16 %v1541
    %v1890 = vunpack.c.h.b16 %v1541
    %v1891 = vunpack.c.l.b16 %v1542
    %v1892 = vunpack.c.h.b16 %v1542
    %v1893 = vunpack.c.l.b16 %v1543
    %v1894 = vunpack.c.h.b16 %v1543
    %v1895 = vunpack.c.l.b16 %v1544
    %v1896 = vunpack.c.h.b16 %v1544
    %v1897 = vunpack.c.l.b16 %v1545
    %v1898 = vunpack.c.h.b16 %v1545
    %v1899 = vunpack.c.l.b16 %v1546
    %v1900 = vunpack.c.h.b16 %v1546
    %v1901 = vunpack.c.l.b16 %v1547
    %v1902 = vunpack.c.h.b16 %v1547
    %v1903 = vunpack.c.l.b16 %v1548
    %v1904 = vunpack.c.h.b16 %v1548
    %v1905 = vunpack.c.l.b16 %v1549
    %v1906 = vunpack.c.h.b16 %v1549
    %v1907 = vunpack.c.l.b16 %v1550
    %v1908 = vunpack.c.h.b16 %v1550
    %v1909 = vunpack.c.l.b16 %v1551
    %v1910 = vunpack.c.h.b16 %v1551
    %v1911 = vunpack.c.l.b16 %v1552
    %v1912 = vunpack.c.h.b16 %v1552
    %v1913 = vpack.c.b16 %v1677, %v1673
    %v1914 = vpack.c.b16 %v1678, %v1674
    %v1915 = vpack.c.b16 %v1679, %v1675
    %v1916 = vpack.c.b16 %v1680, %v1676
    %v1917 = vpack.c.b16 %v1685, %v1681
    %v1918 = vpack.c.b16 %v1686, %v1682
    %v1919 = vpack.c.b16 %v1687, %v1683
    %v1920 = vpack.c.b16 %v1688, %v1684
    %v1921 = vpack.c.b16 %v1693, %v1689
    %v1922 = vpack.c.b16 %v1694, %v1690
    %v1923 = vpack.c.b16 %v1695, %v1691
    %v1924 = vpack.c.b16 %v1696, %v1692
    %v1925 = vpack.c.b16 %v1701, %v1697
    %v1926 = vpack.c.b16 %v1702, %v1698
    %v1927 = vpack.c.b16 %v1703, %v1699
    %v1928 = vpack.c.b16 %v1704, %v1700
    %v1929 = vpack.c.b16 %v1709, %v1705
    %v1930 = vpack.c.b16 %v1710, %v1706
    %v1931 = vpack.c.b16 %v1711, %v1707
    %v1932 = vpack.c.b16 %v1712, %v1708
    %v1933 = vpack.c.b16 %v1717, %v1713
    %v1934 = vpack.c.b16 %v1718, %v1714
    %v1935 = vpack.c.b16 %v1719, %v1715
    %v1936 = vpack.c.b16 %v1720, %v1716
    %v1937 = vpack.c.b16 %v1725, %v1721
    %v1938 = vpack.c.b16 %v1726, %v1722
    %v1939 = vpack.c.b16 %v1727, %v1723
    %v1940 = vpack.c.b16 %v1728, %v1724
    %v1941 = vpack.c.b16 %v1733, %v1729
    %v1942 = vpack.c.b16 %v1734, %v1730
    %v1943 = vpack.c.b16 %v1735, %v1731
    %v1944 = vpack.c.b16 %v1736, %v1732
    %v1945 = vpack.c.b16 %v1741, %v1737
    %v1946 = vpack.c.b16 %v1742, %v1738
    %v1947 = vpack.c.b16 %v1743, %v1739
    %v1948 = vpack.c.b16 %v1744, %v1740
    %v1949 = vpack.c.b16 %v1749, %v1745
    %v1950 = vpack.c.b16 %v1750, %v1746
    %v1951 = vpack.c.b16 %v1751, %v1747
    %v1952 = vpack.c.b16 %v1752, %v1748
    %v1953 = vpack.c.b16 %v1757, %v1753
    %v1954 = vpack.c.b16 %v1758, %v1754
    %v1955 = vpack.c.b16 %v1759, %v1755
    %v1956 = vpack.c.b16 %v1760, %v1756
    %v1957 = vpack.c.b16 %v1765, %v1761
    %v1958 = vpack.c.b16 %v1766, %v1762
    %v1959 = vpack.c.b16 %v1767, %v1763
    %v1960 = vpack.c.b16 %v1768, %v1764
    %v1961 = vpack.c.b16 %v1773, %v1769
    %v1962 = vpack.c.b16 %v1774, %v1770
    %v1963 = vpack.c.b16 %v1775, %v1771
    %v1964 = vpack.c.b16 %v1776, %v1772
    %v1965 = vpack.c.b16 %v1781, %v1777
    %v1966 = vpack.c.b16 %v1782, %v1778
    %v1967 = vpack.c.b16 %v1783, %v1779
    %v1968 = vpack.c.b16 %v1784, %v1780
    %v1969 = vpack.c.b16 %v1789, %v1785
    %v1970 = vpack.c.b16 %v1790, %v1786
    %v1971 = vpack.c.b16 %v1791, %v1787
    %v1972 = vpack.c.b16 %v1792, %v1788
    %v1973 = vpack.c.b16 %v1797, %v1793
    %v1974 = vpack.c.b16 %v1798, %v1794
    %v1975 = vpack.c.b16 %v1799, %v1795
    %v1976 = vpack.c.b16 %v1800, %v1796
    %v1977 = vpack.c.b16 %v1805, %v1801
    %v1978 = vpack.c.b16 %v1806, %v1802
    %v1979 = vpack.c.b16 %v1807, %v1803
    %v1980 = vpack.c.b16 %v1808, %v1804
    %v1981 = vpack.c.b16 %v1813, %v1809
    %v1982 = vpack.c.b16 %v1814, %v1810
    %v1983 = vpack.c.b16 %v1815, %v1811
    %v1984 = vpack.c.b16 %v1816, %v1812
    %v1985 = vpack.c.b16 %v1821, %v1817
    %v1986 = vpack.c.b16 %v1822, %v1818
    %v1987 = vpack.c.b16 %v1823, %v1819
    %v1988 = vpack.c.b16 %v1824, %v1820
    %v1989 = vpack.c.b16 %v1829, %v1825
    %v1990 = vpack.c.b16 %v1830, %v1826
    %v1991 = vpack.c.b16 %v1831, %v1827
    %v1992 = vpack.c.b16 %v1832, %v1828
    %v1993 = vpack.c.b16 %v1837, %v1833
    %v1994 = vpack.c.b16 %v1838, %v1834
    %v1995 = vpack.c.b16 %v1839, %v1835
    %v1996 = vpack.c.b16 %v1840, %v1836
    %v1997 = vpack.c.b16 %v1845, %v1841
    %v1998 = vpack.c.b16 %v1846, %v1842
    %v1999 = vpack.c.b16 %v1847, %v1843
    %v2000 = vpack.c.b16 %v1848, %v1844
    %v2001 = vpack.c.b16 %v1853, %v1849
    %v2002 = vpack.c.b16 %v1854, %v1850
    %v2003 = vpack.c.b16 %v1855, %v1851
    %v2004 = vpack.c.b16 %v1856, %v1852
    %v2005 = vpack.c.b16 %v1861, %v1857
    %v2006 = vpack.c.b16 %v1862, %v1858
    %v2007 = vpack.c.b16 %v1863, %v1859
    %v2008 = vpack.c.b16 %v1864, %v1860
    %v2009 = vpack.c.b16 %v1869, %v1865
    %v2010 = vpack.c.b16 %v1870, %v1866
    %v2011 = vpack.c.b16 %v1871, %v1867
    %v2012 = vpack.c.b16 %v1872, %v1868
    %v2013 = vpack.c.b16 %v1877, %v1873
    %v2014 = vpack.c.b16 %v1878, %v1874
    %v2015 = vpack.c.b16 %v1879, %v1875
    %v2016 = vpack.c.b16 %v1880, %v1876
    %v2017 = vpack.c.b16 %v1885, %v1881
    %v2018 = vpack.c.b16 %v1886, %v1882
    %v2019 = vpack.c.b16 %v1887, %v1883
    %v2020 = vpack.c.b16 %v1888, %v1884
    %v2021 = vpack.c.b16 %v1893, %v1889
    %v2022 = vpack.c.b16 %v1894, %v1890
    %v2023 = vpack.c.b16 %v1895, %v1891
    %v2024 = vpack.c.b16 %v1896, %v1892
    %v2025 = vpack.c.b16 %v1901, %v1897
    %v2026 = vpack.c.b16 %v1902, %v1898
    %v2027 = vpack.c.b16 %v1903, %v1899
    %v2028 = vpack.c.b16 %v1904, %v1900
    %v2029 = vpack.c.b16 %v1909, %v1905
    %v2030 = vpack.c.b16 %v1910, %v1906
    %v2031 = vpack.c.b16 %v1911, %v1907
    %v2032 = vpack.c.b16 %v1912, %v1908
    %vm2153 = vcmask 785408
    %v2155 = vsel %vm2153, %v1431, 0
    %2157 = vmatpush.bf16.msra.mxu0 %v1941
    %2158 = vmatpush.bf16.msra.mxu0 %v1937
    %2159 = vmatpush.bf16.msra.mxu0 %v1933
    %2160 = vmatpush.bf16.msra.mxu0 %v1929
    %2161 = vmatpush.bf16.msra.mxu0 %v1925
    %2162 = vmatpush.bf16.msra.mxu0 %v1921
    %2163 = vmatpush.bf16.msra.mxu0 %v1917
    %2164 = vmatpush.bf16.msra.mxu0 %v1913
    %2165 = vmatmul.bf16.gmra.mxu0 %v1428
    %v2166 = vpop.f32.mrf.mxu0
    %v2167 = vadd.f32 0.0, %v2166
    %v2168 = vpop.f32.mrf.mxu0
    %v2169 = vadd.f32 0.0, %v2168
    %2170 = vdwg.mxu0
    %2171 = vmatpush.bf16.msra.mxu0 %v1973
    %2172 = vmatpush.bf16.msra.mxu0 %v1969
    %2173 = vmatpush.bf16.msra.mxu0 %v1965
    %2174 = vmatpush.bf16.msra.mxu0 %v1961
    %2175 = vmatpush.bf16.msra.mxu0 %v1957
    %2176 = vmatpush.bf16.msra.mxu0 %v1953
    %2177 = vmatpush.bf16.msra.mxu0 %v1949
    %2178 = vmatpush.bf16.msra.mxu0 %v1945
    %2179 = vmatmul.bf16.gmra.mxu0 %v1429
    %v2180 = vpop.f32.mrf.mxu0
    %v2181 = vadd.f32 %v2167, %v2180
    %v2182 = vpop.f32.mrf.mxu0
    %v2183 = vadd.f32 %v2169, %v2182
    %2184 = vdwg.mxu0
    %2185 = vmatpush.bf16.msra.mxu0 %v2005
    %2186 = vmatpush.bf16.msra.mxu0 %v2001
    %2187 = vmatpush.bf16.msra.mxu0 %v1997
    %2188 = vmatpush.bf16.msra.mxu0 %v1993
    %2189 = vmatpush.bf16.msra.mxu0 %v1989
    %2190 = vmatpush.bf16.msra.mxu0 %v1985
    %2191 = vmatpush.bf16.msra.mxu0 %v1981
    %2192 = vmatpush.bf16.msra.mxu0 %v1977
    %2193 = vmatmul.bf16.gmra.mxu0 %v1430
    %v2194 = vpop.f32.mrf.mxu0
    %v2195 = vadd.f32 %v2181, %v2194
    %v2196 = vpop.f32.mrf.mxu0
    %v2197 = vadd.f32 %v2183, %v2196
    %2198 = vdwg.mxu0
    %2199 = vmatpush.bf16.msra.mxu0 0
    %2200 = vmatpush.bf16.msra.mxu0 0
    %2201 = vmatpush.bf16.msra.mxu0 %v2029
    %2202 = vmatpush.bf16.msra.mxu0 %v2025
    %2203 = vmatpush.bf16.msra.mxu0 %v2021
    %2204 = vmatpush.bf16.msra.mxu0 %v2017
    %2205 = vmatpush.bf16.msra.mxu0 %v2013
    %2206 = vmatpush.bf16.msra.mxu0 %v2009
    %2207 = vmatmul.bf16.gmra.mxu0 %v2155
    %v2208 = vpop.f32.mrf.mxu0
    %v2209 = vadd.f32 %v2195, %v2208
    %v2210 = vpop.f32.mrf.mxu0
    %v2211 = vadd.f32 %v2197, %v2210
    %2212 = vdwg.mxu0
    %2213 = vmatpush.bf16.msra.mxu0 %v1942
    %2214 = vmatpush.bf16.msra.mxu0 %v1938
    %2215 = vmatpush.bf16.msra.mxu0 %v1934
    %2216 = vmatpush.bf16.msra.mxu0 %v1930
    %2217 = vmatpush.bf16.msra.mxu0 %v1926
    %2218 = vmatpush.bf16.msra.mxu0 %v1922
    %2219 = vmatpush.bf16.msra.mxu0 %v1918
    %2220 = vmatpush.bf16.msra.mxu0 %v1914
    %2221 = vmatmul.bf16.gmra.mxu0 %v1428
    %v2222 = vpop.f32.mrf.mxu0
    %v2223 = vadd.f32 0.0, %v2222
    %v2224 = vpop.f32.mrf.mxu0
    %v2225 = vadd.f32 0.0, %v2224
    %2226 = vdwg.mxu0
    %2227 = vmatpush.bf16.msra.mxu0 %v1974
    %2228 = vmatpush.bf16.msra.mxu0 %v1970
    %2229 = vmatpush.bf16.msra.mxu0 %v1966
    %2230 = vmatpush.bf16.msra.mxu0 %v1962
    %2231 = vmatpush.bf16.msra.mxu0 %v1958
    %2232 = vmatpush.bf16.msra.mxu0 %v1954
    %2233 = vmatpush.bf16.msra.mxu0 %v1950
    %2234 = vmatpush.bf16.msra.mxu0 %v1946
    %2235 = vmatmul.bf16.gmra.mxu0 %v1429
    %v2236 = vpop.f32.mrf.mxu0
    %v2237 = vadd.f32 %v2223, %v2236
    %v2238 = vpop.f32.mrf.mxu0
    %v2239 = vadd.f32 %v2225, %v2238
    %2240 = vdwg.mxu0
    %2241 = vmatpush.bf16.msra.mxu0 %v2006
    %2242 = vmatpush.bf16.msra.mxu0 %v2002
    %2243 = vmatpush.bf16.msra.mxu0 %v1998
    %2244 = vmatpush.bf16.msra.mxu0 %v1994
    %2245 = vmatpush.bf16.msra.mxu0 %v1990
    %2246 = vmatpush.bf16.msra.mxu0 %v1986
    %2247 = vmatpush.bf16.msra.mxu0 %v1982
    %2248 = vmatpush.bf16.msra.mxu0 %v1978
    %2249 = vmatmul.bf16.gmra.mxu0 %v1430
    %v2250 = vpop.f32.mrf.mxu0
    %v2251 = vadd.f32 %v2237, %v2250
    %v2252 = vpop.f32.mrf.mxu0
    %v2253 = vadd.f32 %v2239, %v2252
    %2254 = vdwg.mxu0
    %2255 = vmatpush.bf16.msra.mxu0 0
    %2256 = vmatpush.bf16.msra.mxu0 0
    %2257 = vmatpush.bf16.msra.mxu0 %v2030
    %2258 = vmatpush.bf16.msra.mxu0 %v2026
    %2259 = vmatpush.bf16.msra.mxu0 %v2022
    %2260 = vmatpush.bf16.msra.mxu0 %v2018
    %2261 = vmatpush.bf16.msra.mxu0 %v2014
    %2262 = vmatpush.bf16.msra.mxu0 %v2010
    %2263 = vmatmul.bf16.gmra.mxu0 %v2155
    %v2264 = vpop.f32.mrf.mxu0
    %v2265 = vadd.f32 %v2251, %v2264
    %v2266 = vpop.f32.mrf.mxu0
    %v2267 = vadd.f32 %v2253, %v2266
    %2268 = vdwg.mxu0
    %2269 = vmatpush.bf16.msra.mxu0 %v1943
    %2270 = vmatpush.bf16.msra.mxu0 %v1939
    %2271 = vmatpush.bf16.msra.mxu0 %v1935
    %2272 = vmatpush.bf16.msra.mxu0 %v1931
    %2273 = vmatpush.bf16.msra.mxu0 %v1927
    %2274 = vmatpush.bf16.msra.mxu0 %v1923
    %2275 = vmatpush.bf16.msra.mxu0 %v1919
    %2276 = vmatpush.bf16.msra.mxu0 %v1915
    %2277 = vmatmul.bf16.gmra.mxu0 %v1428
    %v2278 = vpop.f32.mrf.mxu0
    %v2279 = vadd.f32 0.0, %v2278
    %v2280 = vpop.f32.mrf.mxu0
    %v2281 = vadd.f32 0.0, %v2280
    %2282 = vdwg.mxu0
    %2283 = vmatpush.bf16.msra.mxu0 %v1975
    %2284 = vmatpush.bf16.msra.mxu0 %v1971
    %2285 = vmatpush.bf16.msra.mxu0 %v1967
    %2286 = vmatpush.bf16.msra.mxu0 %v1963
    %2287 = vmatpush.bf16.msra.mxu0 %v1959
    %2288 = vmatpush.bf16.msra.mxu0 %v1955
    %2289 = vmatpush.bf16.msra.mxu0 %v1951
    %2290 = vmatpush.bf16.msra.mxu0 %v1947
    %2291 = vmatmul.bf16.gmra.mxu0 %v1429
    %v2292 = vpop.f32.mrf.mxu0
    %v2293 = vadd.f32 %v2279, %v2292
    %v2294 = vpop.f32.mrf.mxu0
    %v2295 = vadd.f32 %v2281, %v2294
    %2296 = vdwg.mxu0
    %2297 = vmatpush.bf16.msra.mxu0 %v2007
    %2298 = vmatpush.bf16.msra.mxu0 %v2003
    %2299 = vmatpush.bf16.msra.mxu0 %v1999
    %2300 = vmatpush.bf16.msra.mxu0 %v1995
    %2301 = vmatpush.bf16.msra.mxu0 %v1991
    %2302 = vmatpush.bf16.msra.mxu0 %v1987
    %2303 = vmatpush.bf16.msra.mxu0 %v1983
    %2304 = vmatpush.bf16.msra.mxu0 %v1979
    %2305 = vmatmul.bf16.gmra.mxu0 %v1430
    %v2306 = vpop.f32.mrf.mxu0
    %v2307 = vadd.f32 %v2293, %v2306
    %v2308 = vpop.f32.mrf.mxu0
    %v2309 = vadd.f32 %v2295, %v2308
    %2310 = vdwg.mxu0
    %2311 = vmatpush.bf16.msra.mxu0 0
    %2312 = vmatpush.bf16.msra.mxu0 0
    %2313 = vmatpush.bf16.msra.mxu0 %v2031
    %2314 = vmatpush.bf16.msra.mxu0 %v2027
    %2315 = vmatpush.bf16.msra.mxu0 %v2023
    %2316 = vmatpush.bf16.msra.mxu0 %v2019
    %2317 = vmatpush.bf16.msra.mxu0 %v2015
    %2318 = vmatpush.bf16.msra.mxu0 %v2011
    %2319 = vmatmul.bf16.gmra.mxu0 %v2155
    %v2320 = vpop.f32.mrf.mxu0
    %v2321 = vadd.f32 %v2307, %v2320
    %v2322 = vpop.f32.mrf.mxu0
    %v2323 = vadd.f32 %v2309, %v2322
    %2324 = vdwg.mxu0
    %2325 = vmatpush.bf16.msra.mxu0 %v1944
    %2326 = vmatpush.bf16.msra.mxu0 %v1940
    %2327 = vmatpush.bf16.msra.mxu0 %v1936
    %2328 = vmatpush.bf16.msra.mxu0 %v1932
    %2329 = vmatpush.bf16.msra.mxu0 %v1928
    %2330 = vmatpush.bf16.msra.mxu0 %v1924
    %2331 = vmatpush.bf16.msra.mxu0 %v1920
    %2332 = vmatpush.bf16.msra.mxu0 %v1916
    %2333 = vmatmul.bf16.gmra.mxu0 %v1428
    %v2334 = vpop.f32.mrf.mxu0
    %v2335 = vadd.f32 0.0, %v2334
    %v2336 = vpop.f32.mrf.mxu0
    %v2337 = vadd.f32 0.0, %v2336
    %2338 = vdwg.mxu0
    %2339 = vmatpush.bf16.msra.mxu0 %v1976
    %2340 = vmatpush.bf16.msra.mxu0 %v1972
    %2341 = vmatpush.bf16.msra.mxu0 %v1968
    %2342 = vmatpush.bf16.msra.mxu0 %v1964
    %2343 = vmatpush.bf16.msra.mxu0 %v1960
    %2344 = vmatpush.bf16.msra.mxu0 %v1956
    %2345 = vmatpush.bf16.msra.mxu0 %v1952
    %2346 = vmatpush.bf16.msra.mxu0 %v1948
    %2347 = vmatmul.bf16.gmra.mxu0 %v1429
    %v2348 = vpop.f32.mrf.mxu0
    %v2349 = vadd.f32 %v2335, %v2348
    %v2350 = vpop.f32.mrf.mxu0
    %v2351 = vadd.f32 %v2337, %v2350
    %2352 = vdwg.mxu0
    %2353 = vmatpush.bf16.msra.mxu0 %v2008
    %2354 = vmatpush.bf16.msra.mxu0 %v2004
    %2355 = vmatpush.bf16.msra.mxu0 %v2000
    %2356 = vmatpush.bf16.msra.mxu0 %v1996
    %2357 = vmatpush.bf16.msra.mxu0 %v1992
    %2358 = vmatpush.bf16.msra.mxu0 %v1988
    %2359 = vmatpush.bf16.msra.mxu0 %v1984
    %2360 = vmatpush.bf16.msra.mxu0 %v1980
    %2361 = vmatmul.bf16.gmra.mxu0 %v1430
    %v2362 = vpop.f32.mrf.mxu0
    %v2363 = vadd.f32 %v2349, %v2362
    %v2364 = vpop.f32.mrf.mxu0
    %v2365 = vadd.f32 %v2351, %v2364
    %2366 = vdwg.mxu0
    %2367 = vmatpush.bf16.msra.mxu0 0
    %2368 = vmatpush.bf16.msra.mxu0 0
    %2369 = vmatpush.bf16.msra.mxu0 %v2032
    %2370 = vmatpush.bf16.msra.mxu0 %v2028
    %2371 = vmatpush.bf16.msra.mxu0 %v2024
    %2372 = vmatpush.bf16.msra.mxu0 %v2020
    %2373 = vmatpush.bf16.msra.mxu0 %v2016
    %2374 = vmatpush.bf16.msra.mxu0 %v2012
    %2375 = vmatmul.bf16.gmra.mxu0 %v2155
    %v2376 = vpop.f32.mrf.mxu0
    %v2377 = vadd.f32 %v2363, %v2376
    %v2378 = vpop.f32.mrf.mxu0
    %v2379 = vadd.f32 %v2365, %v2378
    %2380 = vdwg.mxu0
    %v2501 = vunpack.c.l.b16 %v1241
    %v2502 = vunpack.c.h.b16 %v1241
    %v2503 = vunpack.c.l.b16 %v1242
    %v2504 = vunpack.c.h.b16 %v1242
    %v2505 = vunpack.c.l.b16 %v1243
    %v2506 = vunpack.c.h.b16 %v1243
    %v2507 = vunpack.c.l.b16 %v1244
    %v2508 = vunpack.c.h.b16 %v1244
    %v2509 = vunpack.c.l.b16 %v1245
    %v2510 = vunpack.c.h.b16 %v1245
    %v2511 = vunpack.c.l.b16 %v1246
    %v2512 = vunpack.c.h.b16 %v1246
    %v2513 = vunpack.c.l.b16 %v1247
    %v2514 = vunpack.c.h.b16 %v1247
    %v2515 = vunpack.c.l.b16 %v1248
    %v2516 = vunpack.c.h.b16 %v1248
    %v2517 = vunpack.c.l.b16 %v1249
    %v2518 = vunpack.c.h.b16 %v1249
    %v2519 = vunpack.c.l.b16 %v1250
    %v2520 = vunpack.c.h.b16 %v1250
    %v2521 = vunpack.c.l.b16 %v1251
    %v2522 = vunpack.c.h.b16 %v1251
    %v2523 = vunpack.c.l.b16 %v1252
    %v2524 = vunpack.c.h.b16 %v1252
    %v2525 = vunpack.c.l.b16 %v1253
    %v2526 = vunpack.c.h.b16 %v1253
    %v2527 = vunpack.c.l.b16 %v1254
    %v2528 = vunpack.c.h.b16 %v1254
    %v2529 = vunpack.c.l.b16 %v1255
    %v2530 = vunpack.c.h.b16 %v1255
    %v2531 = vunpack.c.l.b16 %v1256
    %v2532 = vunpack.c.h.b16 %v1256
    %v2533 = vunpack.c.l.b16 %v1257
    %v2534 = vunpack.c.h.b16 %v1257
    %v2535 = vunpack.c.l.b16 %v1258
    %v2536 = vunpack.c.h.b16 %v1258
    %v2537 = vunpack.c.l.b16 %v1259
    %v2538 = vunpack.c.h.b16 %v1259
    %v2539 = vunpack.c.l.b16 %v1260
    %v2540 = vunpack.c.h.b16 %v1260
    %v2541 = vunpack.c.l.b16 %v1261
    %v2542 = vunpack.c.h.b16 %v1261
    %v2543 = vunpack.c.l.b16 %v1262
    %v2544 = vunpack.c.h.b16 %v1262
    %v2545 = vunpack.c.l.b16 %v1263
    %v2546 = vunpack.c.h.b16 %v1263
    %v2547 = vunpack.c.l.b16 %v1264
    %v2548 = vunpack.c.h.b16 %v1264
    %v2549 = vunpack.c.l.b16 %v1265
    %v2550 = vunpack.c.h.b16 %v1265
    %v2551 = vunpack.c.l.b16 %v1266
    %v2552 = vunpack.c.h.b16 %v1266
    %v2553 = vunpack.c.l.b16 %v1267
    %v2554 = vunpack.c.h.b16 %v1267
    %v2555 = vunpack.c.l.b16 %v1268
    %v2556 = vunpack.c.h.b16 %v1268
    %v2557 = vunpack.c.l.b16 %v1269
    %v2558 = vunpack.c.h.b16 %v1269
    %v2559 = vunpack.c.l.b16 %v1270
    %v2560 = vunpack.c.h.b16 %v1270
    %v2561 = vunpack.c.l.b16 %v1271
    %v2562 = vunpack.c.h.b16 %v1271
    %v2563 = vunpack.c.l.b16 %v1272
    %v2564 = vunpack.c.h.b16 %v1272
    %v2565 = vunpack.c.l.b16 %v1273
    %v2566 = vunpack.c.h.b16 %v1273
    %v2567 = vunpack.c.l.b16 %v1274
    %v2568 = vunpack.c.h.b16 %v1274
    %v2569 = vunpack.c.l.b16 %v1275
    %v2570 = vunpack.c.h.b16 %v1275
    %v2571 = vunpack.c.l.b16 %v1276
    %v2572 = vunpack.c.h.b16 %v1276
    %v2573 = vunpack.c.l.b16 %v1277
    %v2574 = vunpack.c.h.b16 %v1277
    %v2575 = vunpack.c.l.b16 %v1278
    %v2576 = vunpack.c.h.b16 %v1278
    %v2577 = vunpack.c.l.b16 %v1279
    %v2578 = vunpack.c.h.b16 %v1279
    %v2579 = vunpack.c.l.b16 %v1280
    %v2580 = vunpack.c.h.b16 %v1280
    %v2581 = vunpack.c.l.b16 %v1281
    %v2582 = vunpack.c.h.b16 %v1281
    %v2583 = vunpack.c.l.b16 %v1282
    %v2584 = vunpack.c.h.b16 %v1282
    %v2585 = vunpack.c.l.b16 %v1283
    %v2586 = vunpack.c.h.b16 %v1283
    %v2587 = vunpack.c.l.b16 %v1284
    %v2588 = vunpack.c.h.b16 %v1284
    %v2589 = vunpack.c.l.b16 %v1285
    %v2590 = vunpack.c.h.b16 %v1285
    %v2591 = vunpack.c.l.b16 %v1286
    %v2592 = vunpack.c.h.b16 %v1286
    %v2593 = vunpack.c.l.b16 %v1287
    %v2594 = vunpack.c.h.b16 %v1287
    %v2595 = vunpack.c.l.b16 %v1288
    %v2596 = vunpack.c.h.b16 %v1288
    %v2597 = vunpack.c.l.b16 %v1289
    %v2598 = vunpack.c.h.b16 %v1289
    %v2599 = vunpack.c.l.b16 %v1290
    %v2600 = vunpack.c.h.b16 %v1290
    %v2601 = vunpack.c.l.b16 %v1291
    %v2602 = vunpack.c.h.b16 %v1291
    %v2603 = vunpack.c.l.b16 %v1292
    %v2604 = vunpack.c.h.b16 %v1292
    %v2605 = vunpack.c.l.b16 %v1293
    %v2606 = vunpack.c.h.b16 %v1293
    %v2607 = vunpack.c.l.b16 %v1294
    %v2608 = vunpack.c.h.b16 %v1294
    %v2609 = vunpack.c.l.b16 %v1295
    %v2610 = vunpack.c.h.b16 %v1295
    %v2611 = vunpack.c.l.b16 %v1296
    %v2612 = vunpack.c.h.b16 %v1296
    %v2613 = vunpack.c.l.b16 %v1297
    %v2614 = vunpack.c.h.b16 %v1297
    %v2615 = vunpack.c.l.b16 %v1298
    %v2616 = vunpack.c.h.b16 %v1298
    %v2617 = vunpack.c.l.b16 %v1299
    %v2618 = vunpack.c.h.b16 %v1299
    %v2619 = vunpack.c.l.b16 %v1300
    %v2620 = vunpack.c.h.b16 %v1300
    %v2621 = vunpack.c.l.b16 %v1301
    %v2622 = vunpack.c.h.b16 %v1301
    %v2623 = vunpack.c.l.b16 %v1302
    %v2624 = vunpack.c.h.b16 %v1302
    %v2625 = vunpack.c.l.b16 %v1303
    %v2626 = vunpack.c.h.b16 %v1303
    %v2627 = vunpack.c.l.b16 %v1304
    %v2628 = vunpack.c.h.b16 %v1304
    %v2629 = vunpack.c.l.b16 %v1305
    %v2630 = vunpack.c.h.b16 %v1305
    %v2631 = vunpack.c.l.b16 %v1306
    %v2632 = vunpack.c.h.b16 %v1306
    %v2633 = vunpack.c.l.b16 %v1307
    %v2634 = vunpack.c.h.b16 %v1307
    %v2635 = vunpack.c.l.b16 %v1308
    %v2636 = vunpack.c.h.b16 %v1308
    %v2637 = vunpack.c.l.b16 %v1309
    %v2638 = vunpack.c.h.b16 %v1309
    %v2639 = vunpack.c.l.b16 %v1310
    %v2640 = vunpack.c.h.b16 %v1310
    %v2641 = vunpack.c.l.b16 %v1311
    %v2642 = vunpack.c.h.b16 %v1311
    %v2643 = vunpack.c.l.b16 %v1312
    %v2644 = vunpack.c.h.b16 %v1312
    %v2645 = vunpack.c.l.b16 %v1313
    %v2646 = vunpack.c.h.b16 %v1313
    %v2647 = vunpack.c.l.b16 %v1314
    %v2648 = vunpack.c.h.b16 %v1314
    %v2649 = vunpack.c.l.b16 %v1315
    %v2650 = vunpack.c.h.b16 %v1315
    %v2651 = vunpack.c.l.b16 %v1316
    %v2652 = vunpack.c.h.b16 %v1316
    %v2653 = vunpack.c.l.b16 %v1317
    %v2654 = vunpack.c.h.b16 %v1317
    %v2655 = vunpack.c.l.b16 %v1318
    %v2656 = vunpack.c.h.b16 %v1318
    %v2657 = vunpack.c.l.b16 %v1319
    %v2658 = vunpack.c.h.b16 %v1319
    %v2659 = vunpack.c.l.b16 %v1320
    %v2660 = vunpack.c.h.b16 %v1320
    %v2661 = vunpack.c.l.b16 %v1321
    %v2662 = vunpack.c.h.b16 %v1321
    %v2663 = vunpack.c.l.b16 %v1322
    %v2664 = vunpack.c.h.b16 %v1322
    %v2665 = vunpack.c.l.b16 %v1323
    %v2666 = vunpack.c.h.b16 %v1323
    %v2667 = vunpack.c.l.b16 %v1324
    %v2668 = vunpack.c.h.b16 %v1324
    %v2669 = vunpack.c.l.b16 %v1325
    %v2670 = vunpack.c.h.b16 %v1325
    %v2671 = vunpack.c.l.b16 %v1326
    %v2672 = vunpack.c.h.b16 %v1326
    %v2673 = vunpack.c.l.b16 %v1327
    %v2674 = vunpack.c.h.b16 %v1327
    %v2675 = vunpack.c.l.b16 %v1328
    %v2676 = vunpack.c.h.b16 %v1328
    %v2677 = vunpack.c.l.b16 %v1329
    %v2678 = vunpack.c.h.b16 %v1329
    %v2679 = vunpack.c.l.b16 %v1330
    %v2680 = vunpack.c.h.b16 %v1330
    %v2681 = vunpack.c.l.b16 %v1331
    %v2682 = vunpack.c.h.b16 %v1331
    %v2683 = vunpack.c.l.b16 %v1332
    %v2684 = vunpack.c.h.b16 %v1332
    %v2685 = vunpack.c.l.b16 %v1333
    %v2686 = vunpack.c.h.b16 %v1333
    %v2687 = vunpack.c.l.b16 %v1334
    %v2688 = vunpack.c.h.b16 %v1334
    %v2689 = vunpack.c.l.b16 %v1335
    %v2690 = vunpack.c.h.b16 %v1335
    %v2691 = vunpack.c.l.b16 %v1336
    %v2692 = vunpack.c.h.b16 %v1336
    %v2693 = vunpack.c.l.b16 %v1337
    %v2694 = vunpack.c.h.b16 %v1337
    %v2695 = vunpack.c.l.b16 %v1338
    %v2696 = vunpack.c.h.b16 %v1338
    %v2697 = vunpack.c.l.b16 %v1339
    %v2698 = vunpack.c.h.b16 %v1339
    %v2699 = vunpack.c.l.b16 %v1340
    %v2700 = vunpack.c.h.b16 %v1340
    %v2701 = vunpack.c.l.b16 %v1341
    %v2702 = vunpack.c.h.b16 %v1341
    %v2703 = vunpack.c.l.b16 %v1342
    %v2704 = vunpack.c.h.b16 %v1342
    %v2705 = vunpack.c.l.b16 %v1343
    %v2706 = vunpack.c.h.b16 %v1343
    %v2707 = vunpack.c.l.b16 %v1344
    %v2708 = vunpack.c.h.b16 %v1344
    %v2709 = vunpack.c.l.b16 %v1345
    %v2710 = vunpack.c.h.b16 %v1345
    %v2711 = vunpack.c.l.b16 %v1346
    %v2712 = vunpack.c.h.b16 %v1346
    %v2713 = vunpack.c.l.b16 %v1347
    %v2714 = vunpack.c.h.b16 %v1347
    %v2715 = vunpack.c.l.b16 %v1348
    %v2716 = vunpack.c.h.b16 %v1348
    %v2717 = vunpack.c.l.b16 %v1349
    %v2718 = vunpack.c.h.b16 %v1349
    %v2719 = vunpack.c.l.b16 %v1350
    %v2720 = vunpack.c.h.b16 %v1350
    %v2721 = vunpack.c.l.b16 %v1351
    %v2722 = vunpack.c.h.b16 %v1351
    %v2723 = vunpack.c.l.b16 %v1352
    %v2724 = vunpack.c.h.b16 %v1352
    %v2725 = vunpack.c.l.b16 %v1353
    %v2726 = vunpack.c.h.b16 %v1353
    %v2727 = vunpack.c.l.b16 %v1354
    %v2728 = vunpack.c.h.b16 %v1354
    %v2729 = vunpack.c.l.b16 %v1355
    %v2730 = vunpack.c.h.b16 %v1355
    %v2731 = vunpack.c.l.b16 %v1356
    %v2732 = vunpack.c.h.b16 %v1356
    %v2733 = vunpack.c.l.b16 %v1357
    %v2734 = vunpack.c.h.b16 %v1357
    %v2735 = vunpack.c.l.b16 %v1358
    %v2736 = vunpack.c.h.b16 %v1358
    %v2737 = vunpack.c.l.b16 %v1359
    %v2738 = vunpack.c.h.b16 %v1359
    %v2739 = vunpack.c.l.b16 %v1360
    %v2740 = vunpack.c.h.b16 %v1360
    %v2741 = vpack.c.b16 %v2505, %v2501
    %v2742 = vpack.c.b16 %v2506, %v2502
    %v2743 = vpack.c.b16 %v2507, %v2503
    %v2744 = vpack.c.b16 %v2508, %v2504
    %v2745 = vpack.c.b16 %v2513, %v2509
    %v2746 = vpack.c.b16 %v2514, %v2510
    %v2747 = vpack.c.b16 %v2515, %v2511
    %v2748 = vpack.c.b16 %v2516, %v2512
    %v2749 = vpack.c.b16 %v2521, %v2517
    %v2750 = vpack.c.b16 %v2522, %v2518
    %v2751 = vpack.c.b16 %v2523, %v2519
    %v2752 = vpack.c.b16 %v2524, %v2520
    %v2753 = vpack.c.b16 %v2529, %v2525
    %v2754 = vpack.c.b16 %v2530, %v2526
    %v2755 = vpack.c.b16 %v2531, %v2527
    %v2756 = vpack.c.b16 %v2532, %v2528
    %v2757 = vpack.c.b16 %v2537, %v2533
    %v2758 = vpack.c.b16 %v2538, %v2534
    %v2759 = vpack.c.b16 %v2539, %v2535
    %v2760 = vpack.c.b16 %v2540, %v2536
    %v2761 = vpack.c.b16 %v2545, %v2541
    %v2762 = vpack.c.b16 %v2546, %v2542
    %v2763 = vpack.c.b16 %v2547, %v2543
    %v2764 = vpack.c.b16 %v2548, %v2544
    %v2765 = vpack.c.b16 %v2553, %v2549
    %v2766 = vpack.c.b16 %v2554, %v2550
    %v2767 = vpack.c.b16 %v2555, %v2551
    %v2768 = vpack.c.b16 %v2556, %v2552
    %v2769 = vpack.c.b16 %v2561, %v2557
    %v2770 = vpack.c.b16 %v2562, %v2558
    %v2771 = vpack.c.b16 %v2563, %v2559
    %v2772 = vpack.c.b16 %v2564, %v2560
    %v2773 = vpack.c.b16 %v2569, %v2565
    %v2774 = vpack.c.b16 %v2570, %v2566
    %v2775 = vpack.c.b16 %v2571, %v2567
    %v2776 = vpack.c.b16 %v2572, %v2568
    %v2777 = vpack.c.b16 %v2577, %v2573
    %v2778 = vpack.c.b16 %v2578, %v2574
    %v2779 = vpack.c.b16 %v2579, %v2575
    %v2780 = vpack.c.b16 %v2580, %v2576
    %v2781 = vpack.c.b16 %v2585, %v2581
    %v2782 = vpack.c.b16 %v2586, %v2582
    %v2783 = vpack.c.b16 %v2587, %v2583
    %v2784 = vpack.c.b16 %v2588, %v2584
    %v2785 = vpack.c.b16 %v2593, %v2589
    %v2786 = vpack.c.b16 %v2594, %v2590
    %v2787 = vpack.c.b16 %v2595, %v2591
    %v2788 = vpack.c.b16 %v2596, %v2592
    %v2789 = vpack.c.b16 %v2601, %v2597
    %v2790 = vpack.c.b16 %v2602, %v2598
    %v2791 = vpack.c.b16 %v2603, %v2599
    %v2792 = vpack.c.b16 %v2604, %v2600
    %v2793 = vpack.c.b16 %v2609, %v2605
    %v2794 = vpack.c.b16 %v2610, %v2606
    %v2795 = vpack.c.b16 %v2611, %v2607
    %v2796 = vpack.c.b16 %v2612, %v2608
    %v2797 = vpack.c.b16 %v2617, %v2613
    %v2798 = vpack.c.b16 %v2618, %v2614
    %v2799 = vpack.c.b16 %v2619, %v2615
    %v2800 = vpack.c.b16 %v2620, %v2616
    %v2801 = vpack.c.b16 %v2625, %v2621
    %v2802 = vpack.c.b16 %v2626, %v2622
    %v2803 = vpack.c.b16 %v2627, %v2623
    %v2804 = vpack.c.b16 %v2628, %v2624
    %v2805 = vpack.c.b16 %v2633, %v2629
    %v2806 = vpack.c.b16 %v2634, %v2630
    %v2807 = vpack.c.b16 %v2635, %v2631
    %v2808 = vpack.c.b16 %v2636, %v2632
    %v2809 = vpack.c.b16 %v2641, %v2637
    %v2810 = vpack.c.b16 %v2642, %v2638
    %v2811 = vpack.c.b16 %v2643, %v2639
    %v2812 = vpack.c.b16 %v2644, %v2640
    %v2813 = vpack.c.b16 %v2649, %v2645
    %v2814 = vpack.c.b16 %v2650, %v2646
    %v2815 = vpack.c.b16 %v2651, %v2647
    %v2816 = vpack.c.b16 %v2652, %v2648
    %v2817 = vpack.c.b16 %v2657, %v2653
    %v2818 = vpack.c.b16 %v2658, %v2654
    %v2819 = vpack.c.b16 %v2659, %v2655
    %v2820 = vpack.c.b16 %v2660, %v2656
    %v2821 = vpack.c.b16 %v2665, %v2661
    %v2822 = vpack.c.b16 %v2666, %v2662
    %v2823 = vpack.c.b16 %v2667, %v2663
    %v2824 = vpack.c.b16 %v2668, %v2664
    %v2825 = vpack.c.b16 %v2673, %v2669
    %v2826 = vpack.c.b16 %v2674, %v2670
    %v2827 = vpack.c.b16 %v2675, %v2671
    %v2828 = vpack.c.b16 %v2676, %v2672
    %v2829 = vpack.c.b16 %v2681, %v2677
    %v2830 = vpack.c.b16 %v2682, %v2678
    %v2831 = vpack.c.b16 %v2683, %v2679
    %v2832 = vpack.c.b16 %v2684, %v2680
    %v2833 = vpack.c.b16 %v2689, %v2685
    %v2834 = vpack.c.b16 %v2690, %v2686
    %v2835 = vpack.c.b16 %v2691, %v2687
    %v2836 = vpack.c.b16 %v2692, %v2688
    %v2837 = vpack.c.b16 %v2697, %v2693
    %v2838 = vpack.c.b16 %v2698, %v2694
    %v2839 = vpack.c.b16 %v2699, %v2695
    %v2840 = vpack.c.b16 %v2700, %v2696
    %v2841 = vpack.c.b16 %v2705, %v2701
    %v2842 = vpack.c.b16 %v2706, %v2702
    %v2843 = vpack.c.b16 %v2707, %v2703
    %v2844 = vpack.c.b16 %v2708, %v2704
    %v2845 = vpack.c.b16 %v2713, %v2709
    %v2846 = vpack.c.b16 %v2714, %v2710
    %v2847 = vpack.c.b16 %v2715, %v2711
    %v2848 = vpack.c.b16 %v2716, %v2712
    %v2849 = vpack.c.b16 %v2721, %v2717
    %v2850 = vpack.c.b16 %v2722, %v2718
    %v2851 = vpack.c.b16 %v2723, %v2719
    %v2852 = vpack.c.b16 %v2724, %v2720
    %v2853 = vpack.c.b16 %v2729, %v2725
    %v2854 = vpack.c.b16 %v2730, %v2726
    %v2855 = vpack.c.b16 %v2731, %v2727
    %v2856 = vpack.c.b16 %v2732, %v2728
    %v2857 = vpack.c.b16 %v2737, %v2733
    %v2858 = vpack.c.b16 %v2738, %v2734
    %v2859 = vpack.c.b16 %v2739, %v2735
    %v2860 = vpack.c.b16 %v2740, %v2736
    %v2982 = vsel %vm2153, %v1240, 0
    %2984 = vmatpush.bf16.msra.mxu0 %v2769
    %2985 = vmatpush.bf16.msra.mxu0 %v2765
    %2986 = vmatpush.bf16.msra.mxu0 %v2761
    %2987 = vmatpush.bf16.msra.mxu0 %v2757
    %2988 = vmatpush.bf16.msra.mxu0 %v2753
    %2989 = vmatpush.bf16.msra.mxu0 %v2749
    %2990 = vmatpush.bf16.msra.mxu0 %v2745
    %2991 = vmatpush.bf16.msra.mxu0 %v2741
    %2992 = vmatmul.bf16.gmra.mxu0 %v1237
    %v2993 = vpop.f32.mrf.mxu0
    %v2994 = vadd.f32 %v2209, %v2993
    %v2995 = vpop.f32.mrf.mxu0
    %v2996 = vadd.f32 %v2211, %v2995
    %2997 = vdwg.mxu0
    %2998 = vmatpush.bf16.msra.mxu0 %v2801
    %2999 = vmatpush.bf16.msra.mxu0 %v2797
    %3000 = vmatpush.bf16.msra.mxu0 %v2793
    %3001 = vmatpush.bf16.msra.mxu0 %v2789
    %3002 = vmatpush.bf16.msra.mxu0 %v2785
    %3003 = vmatpush.bf16.msra.mxu0 %v2781
    %3004 = vmatpush.bf16.msra.mxu0 %v2777
    %3005 = vmatpush.bf16.msra.mxu0 %v2773
    %3006 = vmatmul.bf16.gmra.mxu0 %v1238
    %v3007 = vpop.f32.mrf.mxu0
    %v3008 = vadd.f32 %v2994, %v3007
    %v3009 = vpop.f32.mrf.mxu0
    %v3010 = vadd.f32 %v2996, %v3009
    %3011 = vdwg.mxu0
    %3012 = vmatpush.bf16.msra.mxu0 %v2833
    %3013 = vmatpush.bf16.msra.mxu0 %v2829
    %3014 = vmatpush.bf16.msra.mxu0 %v2825
    %3015 = vmatpush.bf16.msra.mxu0 %v2821
    %3016 = vmatpush.bf16.msra.mxu0 %v2817
    %3017 = vmatpush.bf16.msra.mxu0 %v2813
    %3018 = vmatpush.bf16.msra.mxu0 %v2809
    %3019 = vmatpush.bf16.msra.mxu0 %v2805
    %3020 = vmatmul.bf16.gmra.mxu0 %v1239
    %v3021 = vpop.f32.mrf.mxu0
    %v3022 = vadd.f32 %v3008, %v3021
    %v3023 = vpop.f32.mrf.mxu0
    %v3024 = vadd.f32 %v3010, %v3023
    %3025 = vdwg.mxu0
    %3026 = vmatpush.bf16.msra.mxu0 0
    %3027 = vmatpush.bf16.msra.mxu0 0
    %3028 = vmatpush.bf16.msra.mxu0 %v2857
    %3029 = vmatpush.bf16.msra.mxu0 %v2853
    %3030 = vmatpush.bf16.msra.mxu0 %v2849
    %3031 = vmatpush.bf16.msra.mxu0 %v2845
    %3032 = vmatpush.bf16.msra.mxu0 %v2841
    %3033 = vmatpush.bf16.msra.mxu0 %v2837
    %3034 = vmatmul.bf16.gmra.mxu0 %v2982
    %v3035 = vpop.f32.mrf.mxu0
    %v3036 = vadd.f32 %v3022, %v3035
    %v3037 = vpop.f32.mrf.mxu0
    %v3038 = vadd.f32 %v3024, %v3037
    %3039 = vdwg.mxu0
    %3040 = vmatpush.bf16.msra.mxu0 %v2770
    %3041 = vmatpush.bf16.msra.mxu0 %v2766
    %3042 = vmatpush.bf16.msra.mxu0 %v2762
    %3043 = vmatpush.bf16.msra.mxu0 %v2758
    %3044 = vmatpush.bf16.msra.mxu0 %v2754
    %3045 = vmatpush.bf16.msra.mxu0 %v2750
    %3046 = vmatpush.bf16.msra.mxu0 %v2746
    %3047 = vmatpush.bf16.msra.mxu0 %v2742
    %3048 = vmatmul.bf16.gmra.mxu0 %v1237
    %v3049 = vpop.f32.mrf.mxu0
    %v3050 = vadd.f32 %v2265, %v3049
    %v3051 = vpop.f32.mrf.mxu0
    %v3052 = vadd.f32 %v2267, %v3051
    %3053 = vdwg.mxu0
    %3054 = vmatpush.bf16.msra.mxu0 %v2802
    %3055 = vmatpush.bf16.msra.mxu0 %v2798
    %3056 = vmatpush.bf16.msra.mxu0 %v2794
    %3057 = vmatpush.bf16.msra.mxu0 %v2790
    %3058 = vmatpush.bf16.msra.mxu0 %v2786
    %3059 = vmatpush.bf16.msra.mxu0 %v2782
    %3060 = vmatpush.bf16.msra.mxu0 %v2778
    %3061 = vmatpush.bf16.msra.mxu0 %v2774
    %3062 = vmatmul.bf16.gmra.mxu0 %v1238
    %v3063 = vpop.f32.mrf.mxu0
    %v3064 = vadd.f32 %v3050, %v3063
    %v3065 = vpop.f32.mrf.mxu0
    %v3066 = vadd.f32 %v3052, %v3065
    %3067 = vdwg.mxu0
    %3068 = vmatpush.bf16.msra.mxu0 %v2834
    %3069 = vmatpush.bf16.msra.mxu0 %v2830
    %3070 = vmatpush.bf16.msra.mxu0 %v2826
    %3071 = vmatpush.bf16.msra.mxu0 %v2822
    %3072 = vmatpush.bf16.msra.mxu0 %v2818
    %3073 = vmatpush.bf16.msra.mxu0 %v2814
    %3074 = vmatpush.bf16.msra.mxu0 %v2810
    %3075 = vmatpush.bf16.msra.mxu0 %v2806
    %3076 = vmatmul.bf16.gmra.mxu0 %v1239
    %v3077 = vpop.f32.mrf.mxu0
    %v3078 = vadd.f32 %v3064, %v3077
    %v3079 = vpop.f32.mrf.mxu0
    %v3080 = vadd.f32 %v3066, %v3079
    %3081 = vdwg.mxu0
    %3082 = vmatpush.bf16.msra.mxu0 0
    %3083 = vmatpush.bf16.msra.mxu0 0
    %3084 = vmatpush.bf16.msra.mxu0 %v2858
    %3085 = vmatpush.bf16.msra.mxu0 %v2854
    %3086 = vmatpush.bf16.msra.mxu0 %v2850
    %3087 = vmatpush.bf16.msra.mxu0 %v2846
    %3088 = vmatpush.bf16.msra.mxu0 %v2842
    %3089 = vmatpush.bf16.msra.mxu0 %v2838
    %3090 = vmatmul.bf16.gmra.mxu0 %v2982
    %v3091 = vpop.f32.mrf.mxu0
    %v3092 = vadd.f32 %v3078, %v3091
    %v3093 = vpop.f32.mrf.mxu0
    %v3094 = vadd.f32 %v3080, %v3093
    %3095 = vdwg.mxu0
    %3096 = vmatpush.bf16.msra.mxu0 %v2771
    %3097 = vmatpush.bf16.msra.mxu0 %v2767
    %3098 = vmatpush.bf16.msra.mxu0 %v2763
    %3099 = vmatpush.bf16.msra.mxu0 %v2759
    %3100 = vmatpush.bf16.msra.mxu0 %v2755
    %3101 = vmatpush.bf16.msra.mxu0 %v2751
    %3102 = vmatpush.bf16.msra.mxu0 %v2747
    %3103 = vmatpush.bf16.msra.mxu0 %v2743
    %3104 = vmatmul.bf16.gmra.mxu0 %v1237
    %v3105 = vpop.f32.mrf.mxu0
    %v3106 = vadd.f32 %v2321, %v3105
    %v3107 = vpop.f32.mrf.mxu0
    %v3108 = vadd.f32 %v2323, %v3107
    %3109 = vdwg.mxu0
    %3110 = vmatpush.bf16.msra.mxu0 %v2803
    %3111 = vmatpush.bf16.msra.mxu0 %v2799
    %3112 = vmatpush.bf16.msra.mxu0 %v2795
    %3113 = vmatpush.bf16.msra.mxu0 %v2791
    %3114 = vmatpush.bf16.msra.mxu0 %v2787
    %3115 = vmatpush.bf16.msra.mxu0 %v2783
    %3116 = vmatpush.bf16.msra.mxu0 %v2779
    %3117 = vmatpush.bf16.msra.mxu0 %v2775
    %3118 = vmatmul.bf16.gmra.mxu0 %v1238
    %v3119 = vpop.f32.mrf.mxu0
    %v3120 = vadd.f32 %v3106, %v3119
    %v3121 = vpop.f32.mrf.mxu0
    %v3122 = vadd.f32 %v3108, %v3121
    %3123 = vdwg.mxu0
    %3124 = vmatpush.bf16.msra.mxu0 %v2835
    %3125 = vmatpush.bf16.msra.mxu0 %v2831
    %3126 = vmatpush.bf16.msra.mxu0 %v2827
    %3127 = vmatpush.bf16.msra.mxu0 %v2823
    %3128 = vmatpush.bf16.msra.mxu0 %v2819
    %3129 = vmatpush.bf16.msra.mxu0 %v2815
    %3130 = vmatpush.bf16.msra.mxu0 %v2811
    %3131 = vmatpush.bf16.msra.mxu0 %v2807
    %3132 = vmatmul.bf16.gmra.mxu0 %v1239
    %v3133 = vpop.f32.mrf.mxu0
    %v3134 = vadd.f32 %v3120, %v3133
    %v3135 = vpop.f32.mrf.mxu0
    %v3136 = vadd.f32 %v3122, %v3135
    %3137 = vdwg.mxu0
    %3138 = vmatpush.bf16.msra.mxu0 0
    %3139 = vmatpush.bf16.msra.mxu0 0
    %3140 = vmatpush.bf16.msra.mxu0 %v2859
    %3141 = vmatpush.bf16.msra.mxu0 %v2855
    %3142 = vmatpush.bf16.msra.mxu0 %v2851
    %3143 = vmatpush.bf16.msra.mxu0 %v2847
    %3144 = vmatpush.bf16.msra.mxu0 %v2843
    %3145 = vmatpush.bf16.msra.mxu0 %v2839
    %3146 = vmatmul.bf16.gmra.mxu0 %v2982
    %v3147 = vpop.f32.mrf.mxu0
    %v3148 = vadd.f32 %v3134, %v3147
    %v3149 = vpop.f32.mrf.mxu0
    %v3150 = vadd.f32 %v3136, %v3149
    %3151 = vdwg.mxu0
    %3152 = vmatpush.bf16.msra.mxu0 %v2772
    %3153 = vmatpush.bf16.msra.mxu0 %v2768
    %3154 = vmatpush.bf16.msra.mxu0 %v2764
    %3155 = vmatpush.bf16.msra.mxu0 %v2760
    %3156 = vmatpush.bf16.msra.mxu0 %v2756
    %3157 = vmatpush.bf16.msra.mxu0 %v2752
    %3158 = vmatpush.bf16.msra.mxu0 %v2748
    %3159 = vmatpush.bf16.msra.mxu0 %v2744
    %3160 = vmatmul.bf16.gmra.mxu0 %v1237
    %v3161 = vpop.f32.mrf.mxu0
    %v3162 = vadd.f32 %v2377, %v3161
    %v3163 = vpop.f32.mrf.mxu0
    %v3164 = vadd.f32 %v2379, %v3163
    %3165 = vdwg.mxu0
    %3166 = vmatpush.bf16.msra.mxu0 %v2804
    %3167 = vmatpush.bf16.msra.mxu0 %v2800
    %3168 = vmatpush.bf16.msra.mxu0 %v2796
    %3169 = vmatpush.bf16.msra.mxu0 %v2792
    %3170 = vmatpush.bf16.msra.mxu0 %v2788
    %3171 = vmatpush.bf16.msra.mxu0 %v2784
    %3172 = vmatpush.bf16.msra.mxu0 %v2780
    %3173 = vmatpush.bf16.msra.mxu0 %v2776
    %3174 = vmatmul.bf16.gmra.mxu0 %v1238
    %v3175 = vpop.f32.mrf.mxu0
    %v3176 = vadd.f32 %v3162, %v3175
    %v3177 = vpop.f32.mrf.mxu0
    %v3178 = vadd.f32 %v3164, %v3177
    %3179 = vdwg.mxu0
    %3180 = vmatpush.bf16.msra.mxu0 %v2836
    %3181 = vmatpush.bf16.msra.mxu0 %v2832
    %3182 = vmatpush.bf16.msra.mxu0 %v2828
    %3183 = vmatpush.bf16.msra.mxu0 %v2824
    %3184 = vmatpush.bf16.msra.mxu0 %v2820
    %3185 = vmatpush.bf16.msra.mxu0 %v2816
    %3186 = vmatpush.bf16.msra.mxu0 %v2812
    %3187 = vmatpush.bf16.msra.mxu0 %v2808
    %3188 = vmatmul.bf16.gmra.mxu0 %v1239
    %v3189 = vpop.f32.mrf.mxu0
    %v3190 = vadd.f32 %v3176, %v3189
    %v3191 = vpop.f32.mrf.mxu0
    %v3192 = vadd.f32 %v3178, %v3191
    %3193 = vdwg.mxu0
    %3194 = vmatpush.bf16.msra.mxu0 0
    %3195 = vmatpush.bf16.msra.mxu0 0
    %3196 = vmatpush.bf16.msra.mxu0 %v2860
    %3197 = vmatpush.bf16.msra.mxu0 %v2856
    %3198 = vmatpush.bf16.msra.mxu0 %v2852
    %3199 = vmatpush.bf16.msra.mxu0 %v2848
    %3200 = vmatpush.bf16.msra.mxu0 %v2844
    %3201 = vmatpush.bf16.msra.mxu0 %v2840
    %3202 = vmatmul.bf16.gmra.mxu0 %v2982
    %v3203 = vpop.f32.mrf.mxu0
    %v3204 = vadd.f32 %v3190, %v3203
    %v3205 = vpop.f32.mrf.mxu0
    %v3206 = vadd.f32 %v3192, %v3205
    %3207 = vdwg.mxu0
    %s3208 = scalar_lea.vmem %s4, 16
    %v3209 = vld [vmem:[%s3208] sm:$0xf]
    %v3210 = vld [vmem:[%s3208 + $0x4] sm:$0x7]
    %v3213 = vunpack.c.l.b16 %v3209
    %v3214 = vunpack.c.l.b16 %v3210
    %v3215 = vpack.c.b16 %v3214, %v3213
    %v3217 = vsel %vm1164, %v3215, 0
    %3219 = vmatpush.bf16.msra.mxu0 0
    %3220 = vmatpush.bf16.msra.mxu0 0
    %3221 = vmatpush.bf16.msra.mxu0 0
    %3222 = vmatpush.bf16.msra.mxu0 0
    %3223 = vmatpush.bf16.msra.mxu0 0
    %3224 = vmatpush.bf16.msra.mxu0 0
    %3225 = vmatpush.bf16.msra.mxu0 %v1170
    %3226 = vmatpush.bf16.msra.mxu0 %v1149
    %3227 = vmatmul.bf16.gmra.mxu0 %v3217
    %v3228 = vpop.f32.mrf.mxu0
    %v3229 = vadd.f32 0.0, %v3228
    %v3230 = vpop.f32.mrf.mxu0
    %v3231 = vadd.f32 0.0, %v3230
    %3232 = vdwg.mxu0
    %3233 = vmatpush.bf16.msra.mxu0 0
    %3234 = vmatpush.bf16.msra.mxu0 0
    %3235 = vmatpush.bf16.msra.mxu0 0
    %3236 = vmatpush.bf16.msra.mxu0 0
    %3237 = vmatpush.bf16.msra.mxu0 0
    %3238 = vmatpush.bf16.msra.mxu0 0
    %3239 = vmatpush.bf16.msra.mxu0 %v1173
    %3240 = vmatpush.bf16.msra.mxu0 %v1150
    %3241 = vmatmul.bf16.gmra.mxu0 %v3217
    %v3242 = vpop.f32.mrf.mxu0
    %v3243 = vadd.f32 0.0, %v3242
    %v3244 = vpop.f32.mrf.mxu0
    %v3245 = vadd.f32 0.0, %v3244
    %3246 = vdwg.mxu0
    %3247 = vmatpush.bf16.msra.mxu0 0
    %3248 = vmatpush.bf16.msra.mxu0 0
    %3249 = vmatpush.bf16.msra.mxu0 0
    %3250 = vmatpush.bf16.msra.mxu0 0
    %3251 = vmatpush.bf16.msra.mxu0 0
    %3252 = vmatpush.bf16.msra.mxu0 0
    %3253 = vmatpush.bf16.msra.mxu0 %v1176
    %3254 = vmatpush.bf16.msra.mxu0 %v1151
    %3255 = vmatmul.bf16.gmra.mxu0 %v3217
    %v3256 = vpop.f32.mrf.mxu0
    %v3257 = vadd.f32 0.0, %v3256
    %v3258 = vpop.f32.mrf.mxu0
    %v3259 = vadd.f32 0.0, %v3258
    %3260 = vdwg.mxu0
    %3261 = vmatpush.bf16.msra.mxu0 0
    %3262 = vmatpush.bf16.msra.mxu0 0
    %3263 = vmatpush.bf16.msra.mxu0 0
    %3264 = vmatpush.bf16.msra.mxu0 0
    %3265 = vmatpush.bf16.msra.mxu0 0
    %3266 = vmatpush.bf16.msra.mxu0 0
    %3267 = vmatpush.bf16.msra.mxu0 %v1179
    %3268 = vmatpush.bf16.msra.mxu0 %v1152
    %3269 = vmatmul.bf16.gmra.mxu0 %v3217
    %v3270 = vpop.f32.mrf.mxu0
    %v3271 = vadd.f32 0.0, %v3270
    %v3272 = vpop.f32.mrf.mxu0
    %v3273 = vadd.f32 0.0, %v3272
    %3274 = vdwg.mxu0
    %v3275 = vpack.c.bf16 %v3231, %v3229
    %v3276 = vpack.c.bf16 %v3245, %v3243
    %v3277 = vpack.c.bf16 %v3259, %v3257
    %v3278 = vpack.c.bf16 %v3273, %v3271
    %s3279 = scalar_lea.vmem %s5, 1920
    %v3280 = vld [vmem:[%s3279] sm:$0xff]
    %v3281 = vld [vmem:[%s3279 + $0x8] sm:$0xff]
    %v3282 = vld [vmem:[%s3279 + $0x10] sm:$0xff]
    %v3283 = vld [vmem:[%s3279 + $0x18] sm:$0xff]
    %v3284 = vld [vmem:[%s3279 + $0x20] sm:$0xff]
    %v3285 = vld [vmem:[%s3279 + $0x28] sm:$0xff]
    %v3286 = vld [vmem:[%s3279 + $0x30] sm:$0xff]
    %v3287 = vld [vmem:[%s3279 + $0x38] sm:$0xff]
    %v3288 = vld [vmem:[%s3279 + $0x40] sm:$0xff]
    %v3289 = vld [vmem:[%s3279 + $0x48] sm:$0xff]
    %v3290 = vld [vmem:[%s3279 + $0x50] sm:$0xff]
    %v3291 = vld [vmem:[%s3279 + $0x58] sm:$0xff]
    %v3292 = vld [vmem:[%s3279 + $0x60] sm:$0xff]
    %v3293 = vld [vmem:[%s3279 + $0x68] sm:$0xff]
    %v3294 = vld [vmem:[%s3279 + $0x70] sm:$0xff]
    %v3295 = vld [vmem:[%s3279 + $0x78] sm:$0xff]
    %v3296 = vld [vmem:[%s3279 + $0x80] sm:$0xff]
    %v3297 = vld [vmem:[%s3279 + $0x88] sm:$0xff]
    %v3298 = vld [vmem:[%s3279 + $0x90] sm:$0xff]
    %v3299 = vld [vmem:[%s3279 + $0x98] sm:$0xff]
    %v3300 = vld [vmem:[%s3279 + $0xa0] sm:$0xff]
    %v3301 = vld [vmem:[%s3279 + $0xa8] sm:$0xff]
    %v3302 = vld [vmem:[%s3279 + $0xb0] sm:$0xff]
    %v3303 = vld [vmem:[%s3279 + $0xb8] sm:$0xff]
    %v3304 = vld [vmem:[%s3279 + $0xc0] sm:$0xff]
    %v3305 = vld [vmem:[%s3279 + $0xc8] sm:$0xff]
    %v3306 = vld [vmem:[%s3279 + $0xd0] sm:$0xff]
    %v3307 = vld [vmem:[%s3279 + $0xd8] sm:$0xff]
    %v3308 = vld [vmem:[%s3279 + $0xe0] sm:$0xff]
    %v3309 = vld [vmem:[%s3279 + $0xe8] sm:$0xff]
    %v3310 = vld [vmem:[%s3279 + $0xf0] sm:$0xff]
    %v3311 = vld [vmem:[%s3279 + $0xf8] sm:$0xff]
    %v3312 = vld [vmem:[%s3279 + $0x100] sm:$0xff]
    %v3313 = vld [vmem:[%s3279 + $0x108] sm:$0xff]
    %v3314 = vld [vmem:[%s3279 + $0x110] sm:$0xff]
    %v3315 = vld [vmem:[%s3279 + $0x118] sm:$0xff]
    %v3316 = vld [vmem:[%s3279 + $0x120] sm:$0xff]
    %v3317 = vld [vmem:[%s3279 + $0x128] sm:$0xff]
    %v3318 = vld [vmem:[%s3279 + $0x130] sm:$0xff]
    %v3319 = vld [vmem:[%s3279 + $0x138] sm:$0xff]
    %v3320 = vld [vmem:[%s3279 + $0x140] sm:$0xff]
    %v3321 = vld [vmem:[%s3279 + $0x148] sm:$0xff]
    %v3322 = vld [vmem:[%s3279 + $0x150] sm:$0xff]
    %v3323 = vld [vmem:[%s3279 + $0x158] sm:$0xff]
    %v3324 = vld [vmem:[%s3279 + $0x160] sm:$0xff]
    %v3325 = vld [vmem:[%s3279 + $0x168] sm:$0xff]
    %v3326 = vld [vmem:[%s3279 + $0x170] sm:$0xff]
    %v3327 = vld [vmem:[%s3279 + $0x178] sm:$0xff]
    %v3328 = vld [vmem:[%s3279 + $0x180] sm:$0xff]
    %v3329 = vld [vmem:[%s3279 + $0x188] sm:$0xff]
    %v3330 = vld [vmem:[%s3279 + $0x190] sm:$0xff]
    %v3331 = vld [vmem:[%s3279 + $0x198] sm:$0xff]
    %v3332 = vld [vmem:[%s3279 + $0x1a0] sm:$0xff]
    %v3333 = vld [vmem:[%s3279 + $0x1a8] sm:$0xff]
    %v3334 = vld [vmem:[%s3279 + $0x1b0] sm:$0xff]
    %v3335 = vld [vmem:[%s3279 + $0x1b8] sm:$0xff]
    %v3336 = vld [vmem:[%s3279 + $0x1c0] sm:$0xff]
    %v3337 = vld [vmem:[%s3279 + $0x1c8] sm:$0xff]
    %v3338 = vld [vmem:[%s3279 + $0x1d0] sm:$0xff]
    %v3339 = vld [vmem:[%s3279 + $0x1d8] sm:$0xff]
    %v3340 = vld [vmem:[%s3279 + $0x1e0] sm:$0xff]
    %v3341 = vld [vmem:[%s3279 + $0x1e8] sm:$0xff]
    %v3342 = vld [vmem:[%s3279 + $0x1f0] sm:$0xff]
    %v3343 = vld [vmem:[%s3279 + $0x1f8] sm:$0xff]
    %v3344 = vld [vmem:[%s3279 + $0x200] sm:$0xff]
    %v3345 = vld [vmem:[%s3279 + $0x208] sm:$0xff]
    %v3346 = vld [vmem:[%s3279 + $0x210] sm:$0xff]
    %v3347 = vld [vmem:[%s3279 + $0x218] sm:$0xff]
    %v3348 = vld [vmem:[%s3279 + $0x220] sm:$0xff]
    %v3349 = vld [vmem:[%s3279 + $0x228] sm:$0xff]
    %v3350 = vld [vmem:[%s3279 + $0x230] sm:$0xff]
    %v3351 = vld [vmem:[%s3279 + $0x238] sm:$0xff]
    %v3352 = vld [vmem:[%s3279 + $0x240] sm:$0xff]
    %v3353 = vld [vmem:[%s3279 + $0x248] sm:$0xff]
    %v3354 = vld [vmem:[%s3279 + $0x250] sm:$0xff]
    %v3355 = vld [vmem:[%s3279 + $0x258] sm:$0xff]
    %v3356 = vld [vmem:[%s3279 + $0x260] sm:$0xff]
    %v3357 = vld [vmem:[%s3279 + $0x268] sm:$0xff]
    %v3358 = vld [vmem:[%s3279 + $0x270] sm:$0xff]
    %v3359 = vld [vmem:[%s3279 + $0x278] sm:$0xff]
    %v3360 = vld [vmem:[%s3279 + $0x280] sm:$0xff]
    %v3361 = vld [vmem:[%s3279 + $0x288] sm:$0xff]
    %v3362 = vld [vmem:[%s3279 + $0x290] sm:$0xff]
    %v3363 = vld [vmem:[%s3279 + $0x298] sm:$0xff]
    %v3364 = vld [vmem:[%s3279 + $0x2a0] sm:$0xff]
    %v3365 = vld [vmem:[%s3279 + $0x2a8] sm:$0xff]
    %v3366 = vld [vmem:[%s3279 + $0x2b0] sm:$0xff]
    %v3367 = vld [vmem:[%s3279 + $0x2b8] sm:$0xff]
    %v3368 = vld [vmem:[%s3279 + $0x2c0] sm:$0xff]
    %v3369 = vld [vmem:[%s3279 + $0x2c8] sm:$0xff]
    %v3370 = vld [vmem:[%s3279 + $0x2d0] sm:$0xff]
    %v3371 = vld [vmem:[%s3279 + $0x2d8] sm:$0xff]
    %v3372 = vld [vmem:[%s3279 + $0x2e0] sm:$0xff]
    %v3373 = vld [vmem:[%s3279 + $0x2e8] sm:$0xff]
    %v3374 = vld [vmem:[%s3279 + $0x2f0] sm:$0xff]
    %v3375 = vld [vmem:[%s3279 + $0x2f8] sm:$0xff]
    %v3376 = vld [vmem:[%s3279 + $0x300] sm:$0xff]
    %v3377 = vld [vmem:[%s3279 + $0x308] sm:$0xff]
    %v3378 = vld [vmem:[%s3279 + $0x310] sm:$0xff]
    %v3379 = vld [vmem:[%s3279 + $0x318] sm:$0xff]
    %v3380 = vld [vmem:[%s3279 + $0x320] sm:$0xff]
    %v3381 = vld [vmem:[%s3279 + $0x328] sm:$0xff]
    %v3382 = vld [vmem:[%s3279 + $0x330] sm:$0xff]
    %v3383 = vld [vmem:[%s3279 + $0x338] sm:$0xff]
    %v3384 = vld [vmem:[%s3279 + $0x340] sm:$0xff]
    %v3385 = vld [vmem:[%s3279 + $0x348] sm:$0xff]
    %v3386 = vld [vmem:[%s3279 + $0x350] sm:$0xff]
    %v3387 = vld [vmem:[%s3279 + $0x358] sm:$0xff]
    %v3388 = vld [vmem:[%s3279 + $0x360] sm:$0xff]
    %v3389 = vld [vmem:[%s3279 + $0x368] sm:$0xff]
    %v3390 = vld [vmem:[%s3279 + $0x370] sm:$0xff]
    %v3391 = vld [vmem:[%s3279 + $0x378] sm:$0xff]
    %v3392 = vld [vmem:[%s3279 + $0x380] sm:$0xff]
    %v3393 = vld [vmem:[%s3279 + $0x388] sm:$0xff]
    %v3394 = vld [vmem:[%s3279 + $0x390] sm:$0xff]
    %v3395 = vld [vmem:[%s3279 + $0x398] sm:$0xff]
    %v3396 = vld [vmem:[%s3279 + $0x3a0] sm:$0xff]
    %v3397 = vld [vmem:[%s3279 + $0x3a8] sm:$0xff]
    %v3398 = vld [vmem:[%s3279 + $0x3b0] sm:$0xff]
    %v3399 = vld [vmem:[%s3279 + $0x3b8] sm:$0xff]
    %v3520 = vunpack.c.l.b16 %v3280
    %v3521 = vunpack.c.h.b16 %v3280
    %v3522 = vunpack.c.l.b16 %v3281
    %v3523 = vunpack.c.h.b16 %v3281
    %v3524 = vunpack.c.l.b16 %v3282
    %v3525 = vunpack.c.h.b16 %v3282
    %v3526 = vunpack.c.l.b16 %v3283
    %v3527 = vunpack.c.h.b16 %v3283
    %v3528 = vunpack.c.l.b16 %v3284
    %v3529 = vunpack.c.h.b16 %v3284
    %v3530 = vunpack.c.l.b16 %v3285
    %v3531 = vunpack.c.h.b16 %v3285
    %v3532 = vunpack.c.l.b16 %v3286
    %v3533 = vunpack.c.h.b16 %v3286
    %v3534 = vunpack.c.l.b16 %v3287
    %v3535 = vunpack.c.h.b16 %v3287
    %v3536 = vunpack.c.l.b16 %v3288
    %v3537 = vunpack.c.h.b16 %v3288
    %v3538 = vunpack.c.l.b16 %v3289
    %v3539 = vunpack.c.h.b16 %v3289
    %v3540 = vunpack.c.l.b16 %v3290
    %v3541 = vunpack.c.h.b16 %v3290
    %v3542 = vunpack.c.l.b16 %v3291
    %v3543 = vunpack.c.h.b16 %v3291
    %v3544 = vunpack.c.l.b16 %v3292
    %v3545 = vunpack.c.h.b16 %v3292
    %v3546 = vunpack.c.l.b16 %v3293
    %v3547 = vunpack.c.h.b16 %v3293
    %v3548 = vunpack.c.l.b16 %v3294
    %v3549 = vunpack.c.h.b16 %v3294
    %v3550 = vunpack.c.l.b16 %v3295
    %v3551 = vunpack.c.h.b16 %v3295
    %v3552 = vunpack.c.l.b16 %v3296
    %v3553 = vunpack.c.h.b16 %v3296
    %v3554 = vunpack.c.l.b16 %v3297
    %v3555 = vunpack.c.h.b16 %v3297
    %v3556 = vunpack.c.l.b16 %v3298
    %v3557 = vunpack.c.h.b16 %v3298
    %v3558 = vunpack.c.l.b16 %v3299
    %v3559 = vunpack.c.h.b16 %v3299
    %v3560 = vunpack.c.l.b16 %v3300
    %v3561 = vunpack.c.h.b16 %v3300
    %v3562 = vunpack.c.l.b16 %v3301
    %v3563 = vunpack.c.h.b16 %v3301
    %v3564 = vunpack.c.l.b16 %v3302
    %v3565 = vunpack.c.h.b16 %v3302
    %v3566 = vunpack.c.l.b16 %v3303
    %v3567 = vunpack.c.h.b16 %v3303
    %v3568 = vunpack.c.l.b16 %v3304
    %v3569 = vunpack.c.h.b16 %v3304
    %v3570 = vunpack.c.l.b16 %v3305
    %v3571 = vunpack.c.h.b16 %v3305
    %v3572 = vunpack.c.l.b16 %v3306
    %v3573 = vunpack.c.h.b16 %v3306
    %v3574 = vunpack.c.l.b16 %v3307
    %v3575 = vunpack.c.h.b16 %v3307
    %v3576 = vunpack.c.l.b16 %v3308
    %v3577 = vunpack.c.h.b16 %v3308
    %v3578 = vunpack.c.l.b16 %v3309
    %v3579 = vunpack.c.h.b16 %v3309
    %v3580 = vunpack.c.l.b16 %v3310
    %v3581 = vunpack.c.h.b16 %v3310
    %v3582 = vunpack.c.l.b16 %v3311
    %v3583 = vunpack.c.h.b16 %v3311
    %v3584 = vunpack.c.l.b16 %v3312
    %v3585 = vunpack.c.h.b16 %v3312
    %v3586 = vunpack.c.l.b16 %v3313
    %v3587 = vunpack.c.h.b16 %v3313
    %v3588 = vunpack.c.l.b16 %v3314
    %v3589 = vunpack.c.h.b16 %v3314
    %v3590 = vunpack.c.l.b16 %v3315
    %v3591 = vunpack.c.h.b16 %v3315
    %v3592 = vunpack.c.l.b16 %v3316
    %v3593 = vunpack.c.h.b16 %v3316
    %v3594 = vunpack.c.l.b16 %v3317
    %v3595 = vunpack.c.h.b16 %v3317
    %v3596 = vunpack.c.l.b16 %v3318
    %v3597 = vunpack.c.h.b16 %v3318
    %v3598 = vunpack.c.l.b16 %v3319
    %v3599 = vunpack.c.h.b16 %v3319
    %v3600 = vunpack.c.l.b16 %v3320
    %v3601 = vunpack.c.h.b16 %v3320
    %v3602 = vunpack.c.l.b16 %v3321
    %v3603 = vunpack.c.h.b16 %v3321
    %v3604 = vunpack.c.l.b16 %v3322
    %v3605 = vunpack.c.h.b16 %v3322
    %v3606 = vunpack.c.l.b16 %v3323
    %v3607 = vunpack.c.h.b16 %v3323
    %v3608 = vunpack.c.l.b16 %v3324
    %v3609 = vunpack.c.h.b16 %v3324
    %v3610 = vunpack.c.l.b16 %v3325
    %v3611 = vunpack.c.h.b16 %v3325
    %v3612 = vunpack.c.l.b16 %v3326
    %v3613 = vunpack.c.h.b16 %v3326
    %v3614 = vunpack.c.l.b16 %v3327
    %v3615 = vunpack.c.h.b16 %v3327
    %v3616 = vunpack.c.l.b16 %v3328
    %v3617 = vunpack.c.h.b16 %v3328
    %v3618 = vunpack.c.l.b16 %v3329
    %v3619 = vunpack.c.h.b16 %v3329
    %v3620 = vunpack.c.l.b16 %v3330
    %v3621 = vunpack.c.h.b16 %v3330
    %v3622 = vunpack.c.l.b16 %v3331
    %v3623 = vunpack.c.h.b16 %v3331
    %v3624 = vunpack.c.l.b16 %v3332
    %v3625 = vunpack.c.h.b16 %v3332
    %v3626 = vunpack.c.l.b16 %v3333
    %v3627 = vunpack.c.h.b16 %v3333
    %v3628 = vunpack.c.l.b16 %v3334
    %v3629 = vunpack.c.h.b16 %v3334
    %v3630 = vunpack.c.l.b16 %v3335
    %v3631 = vunpack.c.h.b16 %v3335
    %v3632 = vunpack.c.l.b16 %v3336
    %v3633 = vunpack.c.h.b16 %v3336
    %v3634 = vunpack.c.l.b16 %v3337
    %v3635 = vunpack.c.h.b16 %v3337
    %v3636 = vunpack.c.l.b16 %v3338
    %v3637 = vunpack.c.h.b16 %v3338
    %v3638 = vunpack.c.l.b16 %v3339
    %v3639 = vunpack.c.h.b16 %v3339
    %v3640 = vunpack.c.l.b16 %v3340
    %v3641 = vunpack.c.h.b16 %v3340
    %v3642 = vunpack.c.l.b16 %v3341
    %v3643 = vunpack.c.h.b16 %v3341
    %v3644 = vunpack.c.l.b16 %v3342
    %v3645 = vunpack.c.h.b16 %v3342
    %v3646 = vunpack.c.l.b16 %v3343
    %v3647 = vunpack.c.h.b16 %v3343
    %v3648 = vunpack.c.l.b16 %v3344
    %v3649 = vunpack.c.h.b16 %v3344
    %v3650 = vunpack.c.l.b16 %v3345
    %v3651 = vunpack.c.h.b16 %v3345
    %v3652 = vunpack.c.l.b16 %v3346
    %v3653 = vunpack.c.h.b16 %v3346
    %v3654 = vunpack.c.l.b16 %v3347
    %v3655 = vunpack.c.h.b16 %v3347
    %v3656 = vunpack.c.l.b16 %v3348
    %v3657 = vunpack.c.h.b16 %v3348
    %v3658 = vunpack.c.l.b16 %v3349
    %v3659 = vunpack.c.h.b16 %v3349
    %v3660 = vunpack.c.l.b16 %v3350
    %v3661 = vunpack.c.h.b16 %v3350
    %v3662 = vunpack.c.l.b16 %v3351
    %v3663 = vunpack.c.h.b16 %v3351
    %v3664 = vunpack.c.l.b16 %v3352
    %v3665 = vunpack.c.h.b16 %v3352
    %v3666 = vunpack.c.l.b16 %v3353
    %v3667 = vunpack.c.h.b16 %v3353
    %v3668 = vunpack.c.l.b16 %v3354
    %v3669 = vunpack.c.h.b16 %v3354
    %v3670 = vunpack.c.l.b16 %v3355
    %v3671 = vunpack.c.h.b16 %v3355
    %v3672 = vunpack.c.l.b16 %v3356
    %v3673 = vunpack.c.h.b16 %v3356
    %v3674 = vunpack.c.l.b16 %v3357
    %v3675 = vunpack.c.h.b16 %v3357
    %v3676 = vunpack.c.l.b16 %v3358
    %v3677 = vunpack.c.h.b16 %v3358
    %v3678 = vunpack.c.l.b16 %v3359
    %v3679 = vunpack.c.h.b16 %v3359
    %v3680 = vunpack.c.l.b16 %v3360
    %v3681 = vunpack.c.h.b16 %v3360
    %v3682 = vunpack.c.l.b16 %v3361
    %v3683 = vunpack.c.h.b16 %v3361
    %v3684 = vunpack.c.l.b16 %v3362
    %v3685 = vunpack.c.h.b16 %v3362
    %v3686 = vunpack.c.l.b16 %v3363
    %v3687 = vunpack.c.h.b16 %v3363
    %v3688 = vunpack.c.l.b16 %v3364
    %v3689 = vunpack.c.h.b16 %v3364
    %v3690 = vunpack.c.l.b16 %v3365
    %v3691 = vunpack.c.h.b16 %v3365
    %v3692 = vunpack.c.l.b16 %v3366
    %v3693 = vunpack.c.h.b16 %v3366
    %v3694 = vunpack.c.l.b16 %v3367
    %v3695 = vunpack.c.h.b16 %v3367
    %v3696 = vunpack.c.l.b16 %v3368
    %v3697 = vunpack.c.h.b16 %v3368
    %v3698 = vunpack.c.l.b16 %v3369
    %v3699 = vunpack.c.h.b16 %v3369
    %v3700 = vunpack.c.l.b16 %v3370
    %v3701 = vunpack.c.h.b16 %v3370
    %v3702 = vunpack.c.l.b16 %v3371
    %v3703 = vunpack.c.h.b16 %v3371
    %v3704 = vunpack.c.l.b16 %v3372
    %v3705 = vunpack.c.h.b16 %v3372
    %v3706 = vunpack.c.l.b16 %v3373
    %v3707 = vunpack.c.h.b16 %v3373
    %v3708 = vunpack.c.l.b16 %v3374
    %v3709 = vunpack.c.h.b16 %v3374
    %v3710 = vunpack.c.l.b16 %v3375
    %v3711 = vunpack.c.h.b16 %v3375
    %v3712 = vunpack.c.l.b16 %v3376
    %v3713 = vunpack.c.h.b16 %v3376
    %v3714 = vunpack.c.l.b16 %v3377
    %v3715 = vunpack.c.h.b16 %v3377
    %v3716 = vunpack.c.l.b16 %v3378
    %v3717 = vunpack.c.h.b16 %v3378
    %v3718 = vunpack.c.l.b16 %v3379
    %v3719 = vunpack.c.h.b16 %v3379
    %v3720 = vunpack.c.l.b16 %v3380
    %v3721 = vunpack.c.h.b16 %v3380
    %v3722 = vunpack.c.l.b16 %v3381
    %v3723 = vunpack.c.h.b16 %v3381
    %v3724 = vunpack.c.l.b16 %v3382
    %v3725 = vunpack.c.h.b16 %v3382
    %v3726 = vunpack.c.l.b16 %v3383
    %v3727 = vunpack.c.h.b16 %v3383
    %v3728 = vunpack.c.l.b16 %v3384
    %v3729 = vunpack.c.h.b16 %v3384
    %v3730 = vunpack.c.l.b16 %v3385
    %v3731 = vunpack.c.h.b16 %v3385
    %v3732 = vunpack.c.l.b16 %v3386
    %v3733 = vunpack.c.h.b16 %v3386
    %v3734 = vunpack.c.l.b16 %v3387
    %v3735 = vunpack.c.h.b16 %v3387
    %v3736 = vunpack.c.l.b16 %v3388
    %v3737 = vunpack.c.h.b16 %v3388
    %v3738 = vunpack.c.l.b16 %v3389
    %v3739 = vunpack.c.h.b16 %v3389
    %v3740 = vunpack.c.l.b16 %v3390
    %v3741 = vunpack.c.h.b16 %v3390
    %v3742 = vunpack.c.l.b16 %v3391
    %v3743 = vunpack.c.h.b16 %v3391
    %v3744 = vunpack.c.l.b16 %v3392
    %v3745 = vunpack.c.h.b16 %v3392
    %v3746 = vunpack.c.l.b16 %v3393
    %v3747 = vunpack.c.h.b16 %v3393
    %v3748 = vunpack.c.l.b16 %v3394
    %v3749 = vunpack.c.h.b16 %v3394
    %v3750 = vunpack.c.l.b16 %v3395
    %v3751 = vunpack.c.h.b16 %v3395
    %v3752 = vunpack.c.l.b16 %v3396
    %v3753 = vunpack.c.h.b16 %v3396
    %v3754 = vunpack.c.l.b16 %v3397
    %v3755 = vunpack.c.h.b16 %v3397
    %v3756 = vunpack.c.l.b16 %v3398
    %v3757 = vunpack.c.h.b16 %v3398
    %v3758 = vunpack.c.l.b16 %v3399
    %v3759 = vunpack.c.h.b16 %v3399
    %v3760 = vpack.c.b16 %v3524, %v3520
    %v3761 = vpack.c.b16 %v3525, %v3521
    %v3762 = vpack.c.b16 %v3526, %v3522
    %v3763 = vpack.c.b16 %v3527, %v3523
    %v3764 = vpack.c.b16 %v3532, %v3528
    %v3765 = vpack.c.b16 %v3533, %v3529
    %v3766 = vpack.c.b16 %v3534, %v3530
    %v3767 = vpack.c.b16 %v3535, %v3531
    %v3768 = vpack.c.b16 %v3540, %v3536
    %v3769 = vpack.c.b16 %v3541, %v3537
    %v3770 = vpack.c.b16 %v3542, %v3538
    %v3771 = vpack.c.b16 %v3543, %v3539
    %v3772 = vpack.c.b16 %v3548, %v3544
    %v3773 = vpack.c.b16 %v3549, %v3545
    %v3774 = vpack.c.b16 %v3550, %v3546
    %v3775 = vpack.c.b16 %v3551, %v3547
    %v3776 = vpack.c.b16 %v3556, %v3552
    %v3777 = vpack.c.b16 %v3557, %v3553
    %v3778 = vpack.c.b16 %v3558, %v3554
    %v3779 = vpack.c.b16 %v3559, %v3555
    %v3780 = vpack.c.b16 %v3564, %v3560
    %v3781 = vpack.c.b16 %v3565, %v3561
    %v3782 = vpack.c.b16 %v3566, %v3562
    %v3783 = vpack.c.b16 %v3567, %v3563
    %v3784 = vpack.c.b16 %v3572, %v3568
    %v3785 = vpack.c.b16 %v3573, %v3569
    %v3786 = vpack.c.b16 %v3574, %v3570
    %v3787 = vpack.c.b16 %v3575, %v3571
    %v3788 = vpack.c.b16 %v3580, %v3576
    %v3789 = vpack.c.b16 %v3581, %v3577
    %v3790 = vpack.c.b16 %v3582, %v3578
    %v3791 = vpack.c.b16 %v3583, %v3579
    %v3792 = vpack.c.b16 %v3588, %v3584
    %v3793 = vpack.c.b16 %v3589, %v3585
    %v3794 = vpack.c.b16 %v3590, %v3586
    %v3795 = vpack.c.b16 %v3591, %v3587
    %v3796 = vpack.c.b16 %v3596, %v3592
    %v3797 = vpack.c.b16 %v3597, %v3593
    %v3798 = vpack.c.b16 %v3598, %v3594
    %v3799 = vpack.c.b16 %v3599, %v3595
    %v3800 = vpack.c.b16 %v3604, %v3600
    %v3801 = vpack.c.b16 %v3605, %v3601
    %v3802 = vpack.c.b16 %v3606, %v3602
    %v3803 = vpack.c.b16 %v3607, %v3603
    %v3804 = vpack.c.b16 %v3612, %v3608
    %v3805 = vpack.c.b16 %v3613, %v3609
    %v3806 = vpack.c.b16 %v3614, %v3610
    %v3807 = vpack.c.b16 %v3615, %v3611
    %v3808 = vpack.c.b16 %v3620, %v3616
    %v3809 = vpack.c.b16 %v3621, %v3617
    %v3810 = vpack.c.b16 %v3622, %v3618
    %v3811 = vpack.c.b16 %v3623, %v3619
    %v3812 = vpack.c.b16 %v3628, %v3624
    %v3813 = vpack.c.b16 %v3629, %v3625
    %v3814 = vpack.c.b16 %v3630, %v3626
    %v3815 = vpack.c.b16 %v3631, %v3627
    %v3816 = vpack.c.b16 %v3636, %v3632
    %v3817 = vpack.c.b16 %v3637, %v3633
    %v3818 = vpack.c.b16 %v3638, %v3634
    %v3819 = vpack.c.b16 %v3639, %v3635
    %v3820 = vpack.c.b16 %v3644, %v3640
    %v3821 = vpack.c.b16 %v3645, %v3641
    %v3822 = vpack.c.b16 %v3646, %v3642
    %v3823 = vpack.c.b16 %v3647, %v3643
    %v3824 = vpack.c.b16 %v3652, %v3648
    %v3825 = vpack.c.b16 %v3653, %v3649
    %v3826 = vpack.c.b16 %v3654, %v3650
    %v3827 = vpack.c.b16 %v3655, %v3651
    %v3828 = vpack.c.b16 %v3660, %v3656
    %v3829 = vpack.c.b16 %v3661, %v3657
    %v3830 = vpack.c.b16 %v3662, %v3658
    %v3831 = vpack.c.b16 %v3663, %v3659
    %v3832 = vpack.c.b16 %v3668, %v3664
    %v3833 = vpack.c.b16 %v3669, %v3665
    %v3834 = vpack.c.b16 %v3670, %v3666
    %v3835 = vpack.c.b16 %v3671, %v3667
    %v3836 = vpack.c.b16 %v3676, %v3672
    %v3837 = vpack.c.b16 %v3677, %v3673
    %v3838 = vpack.c.b16 %v3678, %v3674
    %v3839 = vpack.c.b16 %v3679, %v3675
    %v3840 = vpack.c.b16 %v3684, %v3680
    %v3841 = vpack.c.b16 %v3685, %v3681
    %v3842 = vpack.c.b16 %v3686, %v3682
    %v3843 = vpack.c.b16 %v3687, %v3683
    %v3844 = vpack.c.b16 %v3692, %v3688
    %v3845 = vpack.c.b16 %v3693, %v3689
    %v3846 = vpack.c.b16 %v3694, %v3690
    %v3847 = vpack.c.b16 %v3695, %v3691
    %v3848 = vpack.c.b16 %v3700, %v3696
    %v3849 = vpack.c.b16 %v3701, %v3697
    %v3850 = vpack.c.b16 %v3702, %v3698
    %v3851 = vpack.c.b16 %v3703, %v3699
    %v3852 = vpack.c.b16 %v3708, %v3704
    %v3853 = vpack.c.b16 %v3709, %v3705
    %v3854 = vpack.c.b16 %v3710, %v3706
    %v3855 = vpack.c.b16 %v3711, %v3707
    %v3856 = vpack.c.b16 %v3716, %v3712
    %v3857 = vpack.c.b16 %v3717, %v3713
    %v3858 = vpack.c.b16 %v3718, %v3714
    %v3859 = vpack.c.b16 %v3719, %v3715
    %v3860 = vpack.c.b16 %v3724, %v3720
    %v3861 = vpack.c.b16 %v3725, %v3721
    %v3862 = vpack.c.b16 %v3726, %v3722
    %v3863 = vpack.c.b16 %v3727, %v3723
    %v3864 = vpack.c.b16 %v3732, %v3728
    %v3865 = vpack.c.b16 %v3733, %v3729
    %v3866 = vpack.c.b16 %v3734, %v3730
    %v3867 = vpack.c.b16 %v3735, %v3731
    %v3868 = vpack.c.b16 %v3740, %v3736
    %v3869 = vpack.c.b16 %v3741, %v3737
    %v3870 = vpack.c.b16 %v3742, %v3738
    %v3871 = vpack.c.b16 %v3743, %v3739
    %v3872 = vpack.c.b16 %v3748, %v3744
    %v3873 = vpack.c.b16 %v3749, %v3745
    %v3874 = vpack.c.b16 %v3750, %v3746
    %v3875 = vpack.c.b16 %v3751, %v3747
    %v3876 = vpack.c.b16 %v3756, %v3752
    %v3877 = vpack.c.b16 %v3757, %v3753
    %v3878 = vpack.c.b16 %v3758, %v3754
    %v3879 = vpack.c.b16 %v3759, %v3755
    %v4001 = vsel %vm2153, %v3278, 0
    %4003 = vmatpush.bf16.msra.mxu0 %v3788
    %4004 = vmatpush.bf16.msra.mxu0 %v3784
    %4005 = vmatpush.bf16.msra.mxu0 %v3780
    %4006 = vmatpush.bf16.msra.mxu0 %v3776
    %4007 = vmatpush.bf16.msra.mxu0 %v3772
    %4008 = vmatpush.bf16.msra.mxu0 %v3768
    %4009 = vmatpush.bf16.msra.mxu0 %v3764
    %4010 = vmatpush.bf16.msra.mxu0 %v3760
    %4011 = vmatmul.bf16.gmra.mxu0 %v3275
    %v4012 = vpop.f32.mrf.mxu0
    %v4013 = vadd.f32 0.0, %v4012
    %v4014 = vpop.f32.mrf.mxu0
    %v4015 = vadd.f32 0.0, %v4014
    %4016 = vdwg.mxu0
    %4017 = vmatpush.bf16.msra.mxu0 %v3820
    %4018 = vmatpush.bf16.msra.mxu0 %v3816
    %4019 = vmatpush.bf16.msra.mxu0 %v3812
    %4020 = vmatpush.bf16.msra.mxu0 %v3808
    %4021 = vmatpush.bf16.msra.mxu0 %v3804
    %4022 = vmatpush.bf16.msra.mxu0 %v3800
    %4023 = vmatpush.bf16.msra.mxu0 %v3796
    %4024 = vmatpush.bf16.msra.mxu0 %v3792
    %4025 = vmatmul.bf16.gmra.mxu0 %v3276
    %v4026 = vpop.f32.mrf.mxu0
    %v4027 = vadd.f32 %v4013, %v4026
    %v4028 = vpop.f32.mrf.mxu0
    %v4029 = vadd.f32 %v4015, %v4028
    %4030 = vdwg.mxu0
    %4031 = vmatpush.bf16.msra.mxu0 %v3852
    %4032 = vmatpush.bf16.msra.mxu0 %v3848
    %4033 = vmatpush.bf16.msra.mxu0 %v3844
    %4034 = vmatpush.bf16.msra.mxu0 %v3840
    %4035 = vmatpush.bf16.msra.mxu0 %v3836
    %4036 = vmatpush.bf16.msra.mxu0 %v3832
    %4037 = vmatpush.bf16.msra.mxu0 %v3828
    %4038 = vmatpush.bf16.msra.mxu0 %v3824
    %4039 = vmatmul.bf16.gmra.mxu0 %v3277
    %v4040 = vpop.f32.mrf.mxu0
    %v4041 = vadd.f32 %v4027, %v4040
    %v4042 = vpop.f32.mrf.mxu0
    %v4043 = vadd.f32 %v4029, %v4042
    %4044 = vdwg.mxu0
    %4045 = vmatpush.bf16.msra.mxu0 0
    %4046 = vmatpush.bf16.msra.mxu0 0
    %4047 = vmatpush.bf16.msra.mxu0 %v3876
    %4048 = vmatpush.bf16.msra.mxu0 %v3872
    %4049 = vmatpush.bf16.msra.mxu0 %v3868
    %4050 = vmatpush.bf16.msra.mxu0 %v3864
    %4051 = vmatpush.bf16.msra.mxu0 %v3860
    %4052 = vmatpush.bf16.msra.mxu0 %v3856
    %4053 = vmatmul.bf16.gmra.mxu0 %v4001
    %v4054 = vpop.f32.mrf.mxu0
    %v4055 = vadd.f32 %v4041, %v4054
    %v4056 = vpop.f32.mrf.mxu0
    %v4057 = vadd.f32 %v4043, %v4056
    %4058 = vdwg.mxu0
    %4059 = vmatpush.bf16.msra.mxu0 %v3789
    %4060 = vmatpush.bf16.msra.mxu0 %v3785
    %4061 = vmatpush.bf16.msra.mxu0 %v3781
    %4062 = vmatpush.bf16.msra.mxu0 %v3777
    %4063 = vmatpush.bf16.msra.mxu0 %v3773
    %4064 = vmatpush.bf16.msra.mxu0 %v3769
    %4065 = vmatpush.bf16.msra.mxu0 %v3765
    %4066 = vmatpush.bf16.msra.mxu0 %v3761
    %4067 = vmatmul.bf16.gmra.mxu0 %v3275
    %v4068 = vpop.f32.mrf.mxu0
    %v4069 = vadd.f32 0.0, %v4068
    %v4070 = vpop.f32.mrf.mxu0
    %v4071 = vadd.f32 0.0, %v4070
    %4072 = vdwg.mxu0
    %4073 = vmatpush.bf16.msra.mxu0 %v3821
    %4074 = vmatpush.bf16.msra.mxu0 %v3817
    %4075 = vmatpush.bf16.msra.mxu0 %v3813
    %4076 = vmatpush.bf16.msra.mxu0 %v3809
    %4077 = vmatpush.bf16.msra.mxu0 %v3805
    %4078 = vmatpush.bf16.msra.mxu0 %v3801
    %4079 = vmatpush.bf16.msra.mxu0 %v3797
    %4080 = vmatpush.bf16.msra.mxu0 %v3793
    %4081 = vmatmul.bf16.gmra.mxu0 %v3276
    %v4082 = vpop.f32.mrf.mxu0
    %v4083 = vadd.f32 %v4069, %v4082
    %v4084 = vpop.f32.mrf.mxu0
    %v4085 = vadd.f32 %v4071, %v4084
    %4086 = vdwg.mxu0
    %4087 = vmatpush.bf16.msra.mxu0 %v3853
    %4088 = vmatpush.bf16.msra.mxu0 %v3849
    %4089 = vmatpush.bf16.msra.mxu0 %v3845
    %4090 = vmatpush.bf16.msra.mxu0 %v3841
    %4091 = vmatpush.bf16.msra.mxu0 %v3837
    %4092 = vmatpush.bf16.msra.mxu0 %v3833
    %4093 = vmatpush.bf16.msra.mxu0 %v3829
    %4094 = vmatpush.bf16.msra.mxu0 %v3825
    %4095 = vmatmul.bf16.gmra.mxu0 %v3277
    %v4096 = vpop.f32.mrf.mxu0
    %v4097 = vadd.f32 %v4083, %v4096
    %v4098 = vpop.f32.mrf.mxu0
    %v4099 = vadd.f32 %v4085, %v4098
    %4100 = vdwg.mxu0
    %4101 = vmatpush.bf16.msra.mxu0 0
    %4102 = vmatpush.bf16.msra.mxu0 0
    %4103 = vmatpush.bf16.msra.mxu0 %v3877
    %4104 = vmatpush.bf16.msra.mxu0 %v3873
    %4105 = vmatpush.bf16.msra.mxu0 %v3869
    %4106 = vmatpush.bf16.msra.mxu0 %v3865
    %4107 = vmatpush.bf16.msra.mxu0 %v3861
    %4108 = vmatpush.bf16.msra.mxu0 %v3857
    %4109 = vmatmul.bf16.gmra.mxu0 %v4001
    %v4110 = vpop.f32.mrf.mxu0
    %v4111 = vadd.f32 %v4097, %v4110
    %v4112 = vpop.f32.mrf.mxu0
    %v4113 = vadd.f32 %v4099, %v4112
    %4114 = vdwg.mxu0
    %4115 = vmatpush.bf16.msra.mxu0 %v3790
    %4116 = vmatpush.bf16.msra.mxu0 %v3786
    %4117 = vmatpush.bf16.msra.mxu0 %v3782
    %4118 = vmatpush.bf16.msra.mxu0 %v3778
    %4119 = vmatpush.bf16.msra.mxu0 %v3774
    %4120 = vmatpush.bf16.msra.mxu0 %v3770
    %4121 = vmatpush.bf16.msra.mxu0 %v3766
    %4122 = vmatpush.bf16.msra.mxu0 %v3762
    %4123 = vmatmul.bf16.gmra.mxu0 %v3275
    %v4124 = vpop.f32.mrf.mxu0
    %v4125 = vadd.f32 0.0, %v4124
    %v4126 = vpop.f32.mrf.mxu0
    %v4127 = vadd.f32 0.0, %v4126
    %4128 = vdwg.mxu0
    %4129 = vmatpush.bf16.msra.mxu0 %v3822
    %4130 = vmatpush.bf16.msra.mxu0 %v3818
    %4131 = vmatpush.bf16.msra.mxu0 %v3814
    %4132 = vmatpush.bf16.msra.mxu0 %v3810
    %4133 = vmatpush.bf16.msra.mxu0 %v3806
    %4134 = vmatpush.bf16.msra.mxu0 %v3802
    %4135 = vmatpush.bf16.msra.mxu0 %v3798
    %4136 = vmatpush.bf16.msra.mxu0 %v3794
    %4137 = vmatmul.bf16.gmra.mxu0 %v3276
    %v4138 = vpop.f32.mrf.mxu0
    %v4139 = vadd.f32 %v4125, %v4138
    %v4140 = vpop.f32.mrf.mxu0
    %v4141 = vadd.f32 %v4127, %v4140
    %4142 = vdwg.mxu0
    %4143 = vmatpush.bf16.msra.mxu0 %v3854
    %4144 = vmatpush.bf16.msra.mxu0 %v3850
    %4145 = vmatpush.bf16.msra.mxu0 %v3846
    %4146 = vmatpush.bf16.msra.mxu0 %v3842
    %4147 = vmatpush.bf16.msra.mxu0 %v3838
    %4148 = vmatpush.bf16.msra.mxu0 %v3834
    %4149 = vmatpush.bf16.msra.mxu0 %v3830
    %4150 = vmatpush.bf16.msra.mxu0 %v3826
    %4151 = vmatmul.bf16.gmra.mxu0 %v3277
    %v4152 = vpop.f32.mrf.mxu0
    %v4153 = vadd.f32 %v4139, %v4152
    %v4154 = vpop.f32.mrf.mxu0
    %v4155 = vadd.f32 %v4141, %v4154
    %4156 = vdwg.mxu0
    %4157 = vmatpush.bf16.msra.mxu0 0
    %4158 = vmatpush.bf16.msra.mxu0 0
    %4159 = vmatpush.bf16.msra.mxu0 %v3878
    %4160 = vmatpush.bf16.msra.mxu0 %v3874
    %4161 = vmatpush.bf16.msra.mxu0 %v3870
    %4162 = vmatpush.bf16.msra.mxu0 %v3866
    %4163 = vmatpush.bf16.msra.mxu0 %v3862
    %4164 = vmatpush.bf16.msra.mxu0 %v3858
    %4165 = vmatmul.bf16.gmra.mxu0 %v4001
    %v4166 = vpop.f32.mrf.mxu0
    %v4167 = vadd.f32 %v4153, %v4166
    %v4168 = vpop.f32.mrf.mxu0
    %v4169 = vadd.f32 %v4155, %v4168
    %4170 = vdwg.mxu0
    %4171 = vmatpush.bf16.msra.mxu0 %v3791
    %4172 = vmatpush.bf16.msra.mxu0 %v3787
    %4173 = vmatpush.bf16.msra.mxu0 %v3783
    %4174 = vmatpush.bf16.msra.mxu0 %v3779
    %4175 = vmatpush.bf16.msra.mxu0 %v3775
    %4176 = vmatpush.bf16.msra.mxu0 %v3771
    %4177 = vmatpush.bf16.msra.mxu0 %v3767
    %4178 = vmatpush.bf16.msra.mxu0 %v3763
    %4179 = vmatmul.bf16.gmra.mxu0 %v3275
    %v4180 = vpop.f32.mrf.mxu0
    %v4181 = vadd.f32 0.0, %v4180
    %v4182 = vpop.f32.mrf.mxu0
    %v4183 = vadd.f32 0.0, %v4182
    %4184 = vdwg.mxu0
    %4185 = vmatpush.bf16.msra.mxu0 %v3823
    %4186 = vmatpush.bf16.msra.mxu0 %v3819
    %4187 = vmatpush.bf16.msra.mxu0 %v3815
    %4188 = vmatpush.bf16.msra.mxu0 %v3811
    %4189 = vmatpush.bf16.msra.mxu0 %v3807
    %4190 = vmatpush.bf16.msra.mxu0 %v3803
    %4191 = vmatpush.bf16.msra.mxu0 %v3799
    %4192 = vmatpush.bf16.msra.mxu0 %v3795
    %4193 = vmatmul.bf16.gmra.mxu0 %v3276
    %v4194 = vpop.f32.mrf.mxu0
    %v4195 = vadd.f32 %v4181, %v4194
    %v4196 = vpop.f32.mrf.mxu0
    %v4197 = vadd.f32 %v4183, %v4196
    %4198 = vdwg.mxu0
    %4199 = vmatpush.bf16.msra.mxu0 %v3855
    %4200 = vmatpush.bf16.msra.mxu0 %v3851
    %4201 = vmatpush.bf16.msra.mxu0 %v3847
    %4202 = vmatpush.bf16.msra.mxu0 %v3843
    %4203 = vmatpush.bf16.msra.mxu0 %v3839
    %4204 = vmatpush.bf16.msra.mxu0 %v3835
    %4205 = vmatpush.bf16.msra.mxu0 %v3831
    %4206 = vmatpush.bf16.msra.mxu0 %v3827
    %4207 = vmatmul.bf16.gmra.mxu0 %v3277
    %v4208 = vpop.f32.mrf.mxu0
    %v4209 = vadd.f32 %v4195, %v4208
    %v4210 = vpop.f32.mrf.mxu0
    %v4211 = vadd.f32 %v4197, %v4210
    %4212 = vdwg.mxu0
    %4213 = vmatpush.bf16.msra.mxu0 0
    %4214 = vmatpush.bf16.msra.mxu0 0
    %4215 = vmatpush.bf16.msra.mxu0 %v3879
    %4216 = vmatpush.bf16.msra.mxu0 %v3875
    %4217 = vmatpush.bf16.msra.mxu0 %v3871
    %4218 = vmatpush.bf16.msra.mxu0 %v3867
    %4219 = vmatpush.bf16.msra.mxu0 %v3863
    %4220 = vmatpush.bf16.msra.mxu0 %v3859
    %4221 = vmatmul.bf16.gmra.mxu0 %v4001
    %v4222 = vpop.f32.mrf.mxu0
    %v4223 = vadd.f32 %v4209, %v4222
    %v4224 = vpop.f32.mrf.mxu0
    %v4225 = vadd.f32 %v4211, %v4224
    %4226 = vdwg.mxu0
    %v4227 = vadd.f32 %v3036, %v4055
    %v4228 = vadd.f32 %v3092, %v4111
    %v4229 = vadd.f32 %v3148, %v4167
    %v4230 = vadd.f32 %v3204, %v4223
    %v4231 = vadd.f32 %v3038, %v4057
    %v4232 = vadd.f32 %v3094, %v4113
    %v4233 = vadd.f32 %v3150, %v4169
    %v4234 = vadd.f32 %v3206, %v4225
    %v4235 = vld [vmem:[%s6] sm:$0xf]
    %v4237 = vperm.slane %v4235, 0
    %v4238 = vperm.slane %v4235, 1
    %v4239 = vperm.slane %v4235, 2
    %v4240 = vperm.slane %v4235, 3
    %v4245 = vadd.f32 %v4227, %v4237
    %v4246 = vadd.f32 %v4228, %v4238
    %v4247 = vadd.f32 %v4229, %v4239
    %v4248 = vadd.f32 %v4230, %v4240
    %v4249 = vadd.f32 %v4231, %v4237
    %v4250 = vadd.f32 %v4232, %v4238
    %v4251 = vadd.f32 %v4233, %v4239
    %v4252 = vadd.f32 %v4234, %v4240
    %vm4253 = vcmp.ge.f32.partialorder %v4245, 0.0
    %vm4254 = vcmp.ge.f32.partialorder %v4246, 0.0
    %vm4255 = vcmp.ge.f32.partialorder %v4247, 0.0
    %vm4256 = vcmp.ge.f32.partialorder %v4248, 0.0
    %vm4257 = vcmp.ge.f32.partialorder %v4249, 0.0
    %vm4258 = vcmp.ge.f32.partialorder %v4250, 0.0
    %vm4259 = vcmp.ge.f32.partialorder %v4251, 0.0
    %vm4260 = vcmp.ge.f32.partialorder %v4252, 0.0
    %v4261 = vmul.f32 %v4245, 0.1
    %v4262 = vmul.f32 %v4246, 0.1
    %v4263 = vmul.f32 %v4247, 0.1
    %v4264 = vmul.f32 %v4248, 0.1
    %v4265 = vmul.f32 %v4249, 0.1
    %v4266 = vmul.f32 %v4250, 0.1
    %v4267 = vmul.f32 %v4251, 0.1
    %v4268 = vmul.f32 %v4252, 0.1
    %v4269 = vsel %vm4253, %v4245, %v4261
    %v4270 = vsel %vm4254, %v4246, %v4262
    %v4271 = vsel %vm4255, %v4247, %v4263
    %v4272 = vsel %vm4256, %v4248, %v4264
    %v4273 = vsel %vm4257, %v4249, %v4265
    %v4274 = vsel %vm4258, %v4250, %v4266
    %v4275 = vsel %vm4259, %v4251, %v4267
    %v4276 = vsel %vm4260, %v4252, %v4268
    %s4277 = scalar_lea.vmem %s6, 4
    %v4278 = vld [vmem:[%s4277] sm:$0xf]
    %v4280 = vperm.slane %v4278, 0
    %v4281 = vperm.slane %v4278, 1
    %v4282 = vperm.slane %v4278, 2
    %v4283 = vperm.slane %v4278, 3
    %v4288 = vmul.f32 %v4269, %v4280
    %v4289 = vmul.f32 %v4270, %v4281
    %v4290 = vmul.f32 %v4271, %v4282
    %v4291 = vmul.f32 %v4272, %v4283
    %v4292 = vmul.f32 %v4273, %v4280
    %v4293 = vmul.f32 %v4274, %v4281
    %v4294 = vmul.f32 %v4275, %v4282
    %v4295 = vmul.f32 %v4276, %v4283
    %s4296 = scalar_lea.vmem %s6, 8
    %v4297 = vld [vmem:[%s4296] sm:$0xf]
    %v4299 = vperm.slane %v4297, 0
    %v4300 = vperm.slane %v4297, 1
    %v4301 = vperm.slane %v4297, 2
    %v4302 = vperm.slane %v4297, 3
    %v4307 = vadd.f32 %v4288, %v4299
    %v4308 = vadd.f32 %v4289, %v4300
    %v4309 = vadd.f32 %v4290, %v4301
    %v4310 = vadd.f32 %v4291, %v4302
    %v4311 = vadd.f32 %v4292, %v4299
    %v4312 = vadd.f32 %v4293, %v4300
    %v4313 = vadd.f32 %v4294, %v4301
    %v4314 = vadd.f32 %v4295, %v4302
    %v4315 = vpack.c.bf16 %v4311, %v4307
    %v4316 = vpack.c.bf16 %v4312, %v4308
    %v4317 = vpack.c.bf16 %v4313, %v4309
    %v4318 = vpack.c.bf16 %v4314, %v4310
    %v4319 = vld [vmem:[%s7] sm:$0x7]
    %vm4320 = vcmask 113664
    %v4322 = vsel %vm4320, %v4319, 0
    %v4325 = vsel %vm1168, %v4315, 0
    %v4328 = vsel %vm1168, %v4316, 0
    %v4331 = vsel %vm1168, %v4317, 0
    %v4334 = vsel %vm1168, %v4318, 0
    %4336 = vmatpush.bf16.msra.mxu0 0
    %4337 = vmatpush.bf16.msra.mxu0 0
    %4338 = vmatpush.bf16.msra.mxu0 0
    %4339 = vmatpush.bf16.msra.mxu0 0
    %4340 = vmatpush.bf16.msra.mxu0 0
    %4341 = vmatpush.bf16.msra.mxu0 0
    %4342 = vmatpush.bf16.msra.mxu0 0
    %4343 = vmatpush.bf16.msra.mxu0 %v4325
    %4344 = vmatmul.bf16.gmra.mxu0 %v4322
    %v4345 = vpop.f32.mrf.mxu0
    %v4346 = vadd.f32 0.0, %v4345
    %v4347 = vpop.f32.mrf.mxu0
    %4348 = vdwg.mxu0
    %4349 = vmatpush.bf16.msra.mxu0 0
    %4350 = vmatpush.bf16.msra.mxu0 0
    %4351 = vmatpush.bf16.msra.mxu0 0
    %4352 = vmatpush.bf16.msra.mxu0 0
    %4353 = vmatpush.bf16.msra.mxu0 0
    %4354 = vmatpush.bf16.msra.mxu0 0
    %4355 = vmatpush.bf16.msra.mxu0 0
    %4356 = vmatpush.bf16.msra.mxu0 %v4328
    %4357 = vmatmul.bf16.gmra.mxu0 %v4322
    %v4358 = vpop.f32.mrf.mxu0
    %v4359 = vadd.f32 0.0, %v4358
    %v4360 = vpop.f32.mrf.mxu0
    %4361 = vdwg.mxu0
    %4362 = vmatpush.bf16.msra.mxu0 0
    %4363 = vmatpush.bf16.msra.mxu0 0
    %4364 = vmatpush.bf16.msra.mxu0 0
    %4365 = vmatpush.bf16.msra.mxu0 0
    %4366 = vmatpush.bf16.msra.mxu0 0
    %4367 = vmatpush.bf16.msra.mxu0 0
    %4368 = vmatpush.bf16.msra.mxu0 0
    %4369 = vmatpush.bf16.msra.mxu0 %v4331
    %4370 = vmatmul.bf16.gmra.mxu0 %v4322
    %v4371 = vpop.f32.mrf.mxu0
    %v4372 = vadd.f32 0.0, %v4371
    %v4373 = vpop.f32.mrf.mxu0
    %4374 = vdwg.mxu0
    %4375 = vmatpush.bf16.msra.mxu0 0
    %4376 = vmatpush.bf16.msra.mxu0 0
    %4377 = vmatpush.bf16.msra.mxu0 0
    %4378 = vmatpush.bf16.msra.mxu0 0
    %4379 = vmatpush.bf16.msra.mxu0 0
    %4380 = vmatpush.bf16.msra.mxu0 0
    %4381 = vmatpush.bf16.msra.mxu0 0
    %4382 = vmatpush.bf16.msra.mxu0 %v4334
    %4383 = vmatmul.bf16.gmra.mxu0 %v4322
    %v4384 = vpop.f32.mrf.mxu0
    %v4385 = vadd.f32 0.0, %v4384
    %v4386 = vpop.f32.mrf.mxu0
    %4387 = vdwg.mxu0
    %v4388 = vpack.c.bf16 %v4346, %v4346
    %v4389 = vpack.c.bf16 %v4359, %v4359
    %v4390 = vpack.c.bf16 %v4372, %v4372
    %v4391 = vpack.c.bf16 %v4385, %v4385
    %v4392 = vld [vmem:[%s8] sm:$0xff]
    %v4393 = vld [vmem:[%s8 + $0x8] sm:$0xff]
    %v4394 = vld [vmem:[%s8 + $0x10] sm:$0xff]
    %v4395 = vld [vmem:[%s8 + $0x18] sm:$0xff]
    %v4396 = vld [vmem:[%s8 + $0x20] sm:$0xff]
    %v4397 = vld [vmem:[%s8 + $0x28] sm:$0xff]
    %v4398 = vld [vmem:[%s8 + $0x30] sm:$0xff]
    %v4399 = vld [vmem:[%s8 + $0x38] sm:$0xff]
    %v4400 = vld [vmem:[%s8 + $0x40] sm:$0xff]
    %v4401 = vld [vmem:[%s8 + $0x48] sm:$0xff]
    %v4402 = vld [vmem:[%s8 + $0x50] sm:$0xff]
    %v4403 = vld [vmem:[%s8 + $0x58] sm:$0xff]
    %v4404 = vld [vmem:[%s8 + $0x60] sm:$0xff]
    %v4405 = vld [vmem:[%s8 + $0x68] sm:$0xff]
    %v4406 = vld [vmem:[%s8 + $0x70] sm:$0xff]
    %v4407 = vld [vmem:[%s8 + $0x78] sm:$0xff]
    %v4408 = vld [vmem:[%s8 + $0x80] sm:$0xff]
    %v4409 = vld [vmem:[%s8 + $0x88] sm:$0xff]
    %v4410 = vld [vmem:[%s8 + $0x90] sm:$0xff]
    %v4411 = vld [vmem:[%s8 + $0x98] sm:$0xff]
    %v4412 = vld [vmem:[%s8 + $0xa0] sm:$0xff]
    %v4413 = vld [vmem:[%s8 + $0xa8] sm:$0xff]
    %v4414 = vld [vmem:[%s8 + $0xb0] sm:$0xff]
    %v4415 = vld [vmem:[%s8 + $0xb8] sm:$0xff]
    %v4416 = vld [vmem:[%s8 + $0xc0] sm:$0xff]
    %v4417 = vld [vmem:[%s8 + $0xc8] sm:$0xff]
    %v4418 = vld [vmem:[%s8 + $0xd0] sm:$0xff]
    %v4419 = vld [vmem:[%s8 + $0xd8] sm:$0xff]
    %v4420 = vld [vmem:[%s8 + $0xe0] sm:$0xff]
    %v4421 = vld [vmem:[%s8 + $0xe8] sm:$0xff]
    %v4422 = vld [vmem:[%s8 + $0xf0] sm:$0xff]
    %v4423 = vld [vmem:[%s8 + $0xf8] sm:$0xff]
    %v4424 = vld [vmem:[%s8 + $0x100] sm:$0xff]
    %v4425 = vld [vmem:[%s8 + $0x108] sm:$0xff]
    %v4426 = vld [vmem:[%s8 + $0x110] sm:$0xff]
    %v4427 = vld [vmem:[%s8 + $0x118] sm:$0xff]
    %v4428 = vld [vmem:[%s8 + $0x120] sm:$0xff]
    %v4429 = vld [vmem:[%s8 + $0x128] sm:$0xff]
    %v4430 = vld [vmem:[%s8 + $0x130] sm:$0xff]
    %v4431 = vld [vmem:[%s8 + $0x138] sm:$0xff]
    %v4432 = vld [vmem:[%s8 + $0x140] sm:$0xff]
    %v4433 = vld [vmem:[%s8 + $0x148] sm:$0xff]
    %v4434 = vld [vmem:[%s8 + $0x150] sm:$0xff]
    %v4435 = vld [vmem:[%s8 + $0x158] sm:$0xff]
    %v4436 = vld [vmem:[%s8 + $0x160] sm:$0xff]
    %v4437 = vld [vmem:[%s8 + $0x168] sm:$0xff]
    %v4438 = vld [vmem:[%s8 + $0x170] sm:$0xff]
    %v4439 = vld [vmem:[%s8 + $0x178] sm:$0xff]
    %v4440 = vld [vmem:[%s8 + $0x180] sm:$0xff]
    %v4441 = vld [vmem:[%s8 + $0x188] sm:$0xff]
    %v4442 = vld [vmem:[%s8 + $0x190] sm:$0xff]
    %v4443 = vld [vmem:[%s8 + $0x198] sm:$0xff]
    %v4444 = vld [vmem:[%s8 + $0x1a0] sm:$0xff]
    %v4445 = vld [vmem:[%s8 + $0x1a8] sm:$0xff]
    %v4446 = vld [vmem:[%s8 + $0x1b0] sm:$0xff]
    %v4447 = vld [vmem:[%s8 + $0x1b8] sm:$0xff]
    %s4448 = scalar_lea.vmem %s7, 4
    %v4449 = vld [vmem:[%s4448] sm:$0x7]
    %v4451 = vsel %vm4320, %v4449, 0
    %4453 = vmatpush.bf16.msra.mxu0 0
    %4454 = vmatpush.bf16.msra.mxu0 0
    %4455 = vmatpush.bf16.msra.mxu0 0
    %4456 = vmatpush.bf16.msra.mxu0 0
    %4457 = vmatpush.bf16.msra.mxu0 0
    %4458 = vmatpush.bf16.msra.mxu0 0
    %4459 = vmatpush.bf16.msra.mxu0 0
    %4460 = vmatpush.bf16.msra.mxu0 %v4325
    %4461 = vmatmul.bf16.gmra.mxu0 %v4451
    %v4462 = vpop.f32.mrf.mxu0
    %v4463 = vadd.f32 0.0, %v4462
    %v4464 = vpop.f32.mrf.mxu0
    %4465 = vdwg.mxu0
    %4466 = vmatpush.bf16.msra.mxu0 0
    %4467 = vmatpush.bf16.msra.mxu0 0
    %4468 = vmatpush.bf16.msra.mxu0 0
    %4469 = vmatpush.bf16.msra.mxu0 0
    %4470 = vmatpush.bf16.msra.mxu0 0
    %4471 = vmatpush.bf16.msra.mxu0 0
    %4472 = vmatpush.bf16.msra.mxu0 0
    %4473 = vmatpush.bf16.msra.mxu0 %v4328
    %4474 = vmatmul.bf16.gmra.mxu0 %v4451
    %v4475 = vpop.f32.mrf.mxu0
    %v4476 = vadd.f32 0.0, %v4475
    %v4477 = vpop.f32.mrf.mxu0
    %4478 = vdwg.mxu0
    %4479 = vmatpush.bf16.msra.mxu0 0
    %4480 = vmatpush.bf16.msra.mxu0 0
    %4481 = vmatpush.bf16.msra.mxu0 0
    %4482 = vmatpush.bf16.msra.mxu0 0
    %4483 = vmatpush.bf16.msra.mxu0 0
    %4484 = vmatpush.bf16.msra.mxu0 0
    %4485 = vmatpush.bf16.msra.mxu0 0
    %4486 = vmatpush.bf16.msra.mxu0 %v4331
    %4487 = vmatmul.bf16.gmra.mxu0 %v4451
    %v4488 = vpop.f32.mrf.mxu0
    %v4489 = vadd.f32 0.0, %v4488
    %v4490 = vpop.f32.mrf.mxu0
    %4491 = vdwg.mxu0
    %4492 = vmatpush.bf16.msra.mxu0 0
    %4493 = vmatpush.bf16.msra.mxu0 0
    %4494 = vmatpush.bf16.msra.mxu0 0
    %4495 = vmatpush.bf16.msra.mxu0 0
    %4496 = vmatpush.bf16.msra.mxu0 0
    %4497 = vmatpush.bf16.msra.mxu0 0
    %4498 = vmatpush.bf16.msra.mxu0 0
    %4499 = vmatpush.bf16.msra.mxu0 %v4334
    %4500 = vmatmul.bf16.gmra.mxu0 %v4451
    %v4501 = vpop.f32.mrf.mxu0
    %v4502 = vadd.f32 0.0, %v4501
    %v4503 = vpop.f32.mrf.mxu0
    %4504 = vdwg.mxu0
    %v4505 = vpack.c.bf16 %v4463, %v4463
    %v4506 = vpack.c.bf16 %v4476, %v4476
    %v4507 = vpack.c.bf16 %v4489, %v4489
    %v4508 = vpack.c.bf16 %v4502, %v4502
    %s4509 = scalar_lea.vmem %s8, 448
    %v4510 = vld [vmem:[%s4509] sm:$0xff]
    %v4511 = vld [vmem:[%s4509 + $0x8] sm:$0xff]
    %v4512 = vld [vmem:[%s4509 + $0x10] sm:$0xff]
    %v4513 = vld [vmem:[%s4509 + $0x18] sm:$0xff]
    %v4514 = vld [vmem:[%s4509 + $0x20] sm:$0xff]
    %v4515 = vld [vmem:[%s4509 + $0x28] sm:$0xff]
    %v4516 = vld [vmem:[%s4509 + $0x30] sm:$0xff]
    %v4517 = vld [vmem:[%s4509 + $0x38] sm:$0xff]
    %v4518 = vld [vmem:[%s4509 + $0x40] sm:$0xff]
    %v4519 = vld [vmem:[%s4509 + $0x48] sm:$0xff]
    %v4520 = vld [vmem:[%s4509 + $0x50] sm:$0xff]
    %v4521 = vld [vmem:[%s4509 + $0x58] sm:$0xff]
    %v4522 = vld [vmem:[%s4509 + $0x60] sm:$0xff]
    %v4523 = vld [vmem:[%s4509 + $0x68] sm:$0xff]
    %v4524 = vld [vmem:[%s4509 + $0x70] sm:$0xff]
    %v4525 = vld [vmem:[%s4509 + $0x78] sm:$0xff]
    %v4526 = vld [vmem:[%s4509 + $0x80] sm:$0xff]
    %v4527 = vld [vmem:[%s4509 + $0x88] sm:$0xff]
    %v4528 = vld [vmem:[%s4509 + $0x90] sm:$0xff]
    %v4529 = vld [vmem:[%s4509 + $0x98] sm:$0xff]
    %v4530 = vld [vmem:[%s4509 + $0xa0] sm:$0xff]
    %v4531 = vld [vmem:[%s4509 + $0xa8] sm:$0xff]
    %v4532 = vld [vmem:[%s4509 + $0xb0] sm:$0xff]
    %v4533 = vld [vmem:[%s4509 + $0xb8] sm:$0xff]
    %v4534 = vld [vmem:[%s4509 + $0xc0] sm:$0xff]
    %v4535 = vld [vmem:[%s4509 + $0xc8] sm:$0xff]
    %v4536 = vld [vmem:[%s4509 + $0xd0] sm:$0xff]
    %v4537 = vld [vmem:[%s4509 + $0xd8] sm:$0xff]
    %v4538 = vld [vmem:[%s4509 + $0xe0] sm:$0xff]
    %v4539 = vld [vmem:[%s4509 + $0xe8] sm:$0xff]
    %v4540 = vld [vmem:[%s4509 + $0xf0] sm:$0xff]
    %v4541 = vld [vmem:[%s4509 + $0xf8] sm:$0xff]
    %v4542 = vld [vmem:[%s4509 + $0x100] sm:$0xff]
    %v4543 = vld [vmem:[%s4509 + $0x108] sm:$0xff]
    %v4544 = vld [vmem:[%s4509 + $0x110] sm:$0xff]
    %v4545 = vld [vmem:[%s4509 + $0x118] sm:$0xff]
    %v4546 = vld [vmem:[%s4509 + $0x120] sm:$0xff]
    %v4547 = vld [vmem:[%s4509 + $0x128] sm:$0xff]
    %v4548 = vld [vmem:[%s4509 + $0x130] sm:$0xff]
    %v4549 = vld [vmem:[%s4509 + $0x138] sm:$0xff]
    %v4550 = vld [vmem:[%s4509 + $0x140] sm:$0xff]
    %v4551 = vld [vmem:[%s4509 + $0x148] sm:$0xff]
    %v4552 = vld [vmem:[%s4509 + $0x150] sm:$0xff]
    %v4553 = vld [vmem:[%s4509 + $0x158] sm:$0xff]
    %v4554 = vld [vmem:[%s4509 + $0x160] sm:$0xff]
    %v4555 = vld [vmem:[%s4509 + $0x168] sm:$0xff]
    %v4556 = vld [vmem:[%s4509 + $0x170] sm:$0xff]
    %v4557 = vld [vmem:[%s4509 + $0x178] sm:$0xff]
    %v4558 = vld [vmem:[%s4509 + $0x180] sm:$0xff]
    %v4559 = vld [vmem:[%s4509 + $0x188] sm:$0xff]
    %v4560 = vld [vmem:[%s4509 + $0x190] sm:$0xff]
    %v4561 = vld [vmem:[%s4509 + $0x198] sm:$0xff]
    %v4562 = vld [vmem:[%s4509 + $0x1a0] sm:$0xff]
    %v4563 = vld [vmem:[%s4509 + $0x1a8] sm:$0xff]
    %v4564 = vld [vmem:[%s4509 + $0x1b0] sm:$0xff]
    %v4565 = vld [vmem:[%s4509 + $0x1b8] sm:$0xff]
    %v4622 = vunpack.c.l.b16 %v4510
    %v4623 = vunpack.c.h.b16 %v4510
    %v4624 = vunpack.c.l.b16 %v4511
    %v4625 = vunpack.c.h.b16 %v4511
    %v4626 = vunpack.c.l.b16 %v4512
    %v4627 = vunpack.c.h.b16 %v4512
    %v4628 = vunpack.c.l.b16 %v4513
    %v4629 = vunpack.c.h.b16 %v4513
    %v4630 = vunpack.c.l.b16 %v4514
    %v4631 = vunpack.c.h.b16 %v4514
    %v4632 = vunpack.c.l.b16 %v4515
    %v4633 = vunpack.c.h.b16 %v4515
    %v4634 = vunpack.c.l.b16 %v4516
    %v4635 = vunpack.c.h.b16 %v4516
    %v4636 = vunpack.c.l.b16 %v4517
    %v4637 = vunpack.c.h.b16 %v4517
    %v4638 = vunpack.c.l.b16 %v4518
    %v4639 = vunpack.c.h.b16 %v4518
    %v4640 = vunpack.c.l.b16 %v4519
    %v4641 = vunpack.c.h.b16 %v4519
    %v4642 = vunpack.c.l.b16 %v4520
    %v4643 = vunpack.c.h.b16 %v4520
    %v4644 = vunpack.c.l.b16 %v4521
    %v4645 = vunpack.c.h.b16 %v4521
    %v4646 = vunpack.c.l.b16 %v4522
    %v4647 = vunpack.c.h.b16 %v4522
    %v4648 = vunpack.c.l.b16 %v4523
    %v4649 = vunpack.c.h.b16 %v4523
    %v4650 = vunpack.c.l.b16 %v4524
    %v4651 = vunpack.c.h.b16 %v4524
    %v4652 = vunpack.c.l.b16 %v4525
    %v4653 = vunpack.c.h.b16 %v4525
    %v4654 = vunpack.c.l.b16 %v4526
    %v4655 = vunpack.c.h.b16 %v4526
    %v4656 = vunpack.c.l.b16 %v4527
    %v4657 = vunpack.c.h.b16 %v4527
    %v4658 = vunpack.c.l.b16 %v4528
    %v4659 = vunpack.c.h.b16 %v4528
    %v4660 = vunpack.c.l.b16 %v4529
    %v4661 = vunpack.c.h.b16 %v4529
    %v4662 = vunpack.c.l.b16 %v4530
    %v4663 = vunpack.c.h.b16 %v4530
    %v4664 = vunpack.c.l.b16 %v4531
    %v4665 = vunpack.c.h.b16 %v4531
    %v4666 = vunpack.c.l.b16 %v4532
    %v4667 = vunpack.c.h.b16 %v4532
    %v4668 = vunpack.c.l.b16 %v4533
    %v4669 = vunpack.c.h.b16 %v4533
    %v4670 = vunpack.c.l.b16 %v4534
    %v4671 = vunpack.c.h.b16 %v4534
    %v4672 = vunpack.c.l.b16 %v4535
    %v4673 = vunpack.c.h.b16 %v4535
    %v4674 = vunpack.c.l.b16 %v4536
    %v4675 = vunpack.c.h.b16 %v4536
    %v4676 = vunpack.c.l.b16 %v4537
    %v4677 = vunpack.c.h.b16 %v4537
    %v4678 = vunpack.c.l.b16 %v4538
    %v4679 = vunpack.c.h.b16 %v4538
    %v4680 = vunpack.c.l.b16 %v4539
    %v4681 = vunpack.c.h.b16 %v4539
    %v4682 = vunpack.c.l.b16 %v4540
    %v4683 = vunpack.c.h.b16 %v4540
    %v4684 = vunpack.c.l.b16 %v4541
    %v4685 = vunpack.c.h.b16 %v4541
    %v4686 = vunpack.c.l.b16 %v4542
    %v4687 = vunpack.c.h.b16 %v4542
    %v4688 = vunpack.c.l.b16 %v4543
    %v4689 = vunpack.c.h.b16 %v4543
    %v4690 = vunpack.c.l.b16 %v4544
    %v4691 = vunpack.c.h.b16 %v4544
    %v4692 = vunpack.c.l.b16 %v4545
    %v4693 = vunpack.c.h.b16 %v4545
    %v4694 = vunpack.c.l.b16 %v4546
    %v4695 = vunpack.c.h.b16 %v4546
    %v4696 = vunpack.c.l.b16 %v4547
    %v4697 = vunpack.c.h.b16 %v4547
    %v4698 = vunpack.c.l.b16 %v4548
    %v4699 = vunpack.c.h.b16 %v4548
    %v4700 = vunpack.c.l.b16 %v4549
    %v4701 = vunpack.c.h.b16 %v4549
    %v4702 = vunpack.c.l.b16 %v4550
    %v4703 = vunpack.c.h.b16 %v4550
    %v4704 = vunpack.c.l.b16 %v4551
    %v4705 = vunpack.c.h.b16 %v4551
    %v4706 = vunpack.c.l.b16 %v4552
    %v4707 = vunpack.c.h.b16 %v4552
    %v4708 = vunpack.c.l.b16 %v4553
    %v4709 = vunpack.c.h.b16 %v4553
    %v4710 = vunpack.c.l.b16 %v4554
    %v4711 = vunpack.c.h.b16 %v4554
    %v4712 = vunpack.c.l.b16 %v4555
    %v4713 = vunpack.c.h.b16 %v4555
    %v4714 = vunpack.c.l.b16 %v4556
    %v4715 = vunpack.c.h.b16 %v4556
    %v4716 = vunpack.c.l.b16 %v4557
    %v4717 = vunpack.c.h.b16 %v4557
    %v4718 = vunpack.c.l.b16 %v4558
    %v4719 = vunpack.c.h.b16 %v4558
    %v4720 = vunpack.c.l.b16 %v4559
    %v4721 = vunpack.c.h.b16 %v4559
    %v4722 = vunpack.c.l.b16 %v4560
    %v4723 = vunpack.c.h.b16 %v4560
    %v4724 = vunpack.c.l.b16 %v4561
    %v4725 = vunpack.c.h.b16 %v4561
    %v4726 = vunpack.c.l.b16 %v4562
    %v4727 = vunpack.c.h.b16 %v4562
    %v4728 = vunpack.c.l.b16 %v4563
    %v4729 = vunpack.c.h.b16 %v4563
    %v4730 = vunpack.c.l.b16 %v4564
    %v4731 = vunpack.c.h.b16 %v4564
    %v4732 = vunpack.c.l.b16 %v4565
    %v4733 = vunpack.c.h.b16 %v4565
    %v4734 = vpack.c.b16 %v4624, %v4622
    %v4735 = vpack.c.b16 %v4625, %v4623
    %v4736 = vpack.c.b16 %v4628, %v4626
    %v4737 = vpack.c.b16 %v4629, %v4627
    %v4738 = vpack.c.b16 %v4632, %v4630
    %v4739 = vpack.c.b16 %v4633, %v4631
    %v4740 = vpack.c.b16 %v4636, %v4634
    %v4741 = vpack.c.b16 %v4637, %v4635
    %v4742 = vpack.c.b16 %v4640, %v4638
    %v4743 = vpack.c.b16 %v4641, %v4639
    %v4744 = vpack.c.b16 %v4644, %v4642
    %v4745 = vpack.c.b16 %v4645, %v4643
    %v4746 = vpack.c.b16 %v4648, %v4646
    %v4747 = vpack.c.b16 %v4649, %v4647
    %v4748 = vpack.c.b16 %v4652, %v4650
    %v4749 = vpack.c.b16 %v4653, %v4651
    %v4750 = vpack.c.b16 %v4656, %v4654
    %v4751 = vpack.c.b16 %v4657, %v4655
    %v4752 = vpack.c.b16 %v4660, %v4658
    %v4753 = vpack.c.b16 %v4661, %v4659
    %v4754 = vpack.c.b16 %v4664, %v4662
    %v4755 = vpack.c.b16 %v4665, %v4663
    %v4756 = vpack.c.b16 %v4668, %v4666
    %v4757 = vpack.c.b16 %v4669, %v4667
    %v4758 = vpack.c.b16 %v4672, %v4670
    %v4759 = vpack.c.b16 %v4673, %v4671
    %v4760 = vpack.c.b16 %v4676, %v4674
    %v4761 = vpack.c.b16 %v4677, %v4675
    %v4762 = vpack.c.b16 %v4680, %v4678
    %v4763 = vpack.c.b16 %v4681, %v4679
    %v4764 = vpack.c.b16 %v4684, %v4682
    %v4765 = vpack.c.b16 %v4685, %v4683
    %v4766 = vpack.c.b16 %v4688, %v4686
    %v4767 = vpack.c.b16 %v4689, %v4687
    %v4768 = vpack.c.b16 %v4692, %v4690
    %v4769 = vpack.c.b16 %v4693, %v4691
    %v4770 = vpack.c.b16 %v4696, %v4694
    %v4771 = vpack.c.b16 %v4697, %v4695
    %v4772 = vpack.c.b16 %v4700, %v4698
    %v4773 = vpack.c.b16 %v4701, %v4699
    %v4774 = vpack.c.b16 %v4704, %v4702
    %v4775 = vpack.c.b16 %v4705, %v4703
    %v4776 = vpack.c.b16 %v4708, %v4706
    %v4777 = vpack.c.b16 %v4709, %v4707
    %v4778 = vpack.c.b16 %v4712, %v4710
    %v4779 = vpack.c.b16 %v4713, %v4711
    %v4780 = vpack.c.b16 %v4716, %v4714
    %v4781 = vpack.c.b16 %v4717, %v4715
    %v4782 = vpack.c.b16 %v4720, %v4718
    %v4783 = vpack.c.b16 %v4721, %v4719
    %v4784 = vpack.c.b16 %v4724, %v4722
    %v4785 = vpack.c.b16 %v4725, %v4723
    %v4786 = vpack.c.b16 %v4728, %v4726
    %v4787 = vpack.c.b16 %v4729, %v4727
    %v4788 = vpack.c.b16 %v4732, %v4730
    %v4789 = vpack.c.b16 %v4733, %v4731
    %v4847 = vsel %vm87, %v4508, 0
    %4849 = vmatpush.bf16.msra.mxu0 %v4748
    %4850 = vmatpush.bf16.msra.mxu0 %v4746
    %4851 = vmatpush.bf16.msra.mxu0 %v4744
    %4852 = vmatpush.bf16.msra.mxu0 %v4742
    %4853 = vmatpush.bf16.msra.mxu0 %v4740
    %4854 = vmatpush.bf16.msra.mxu0 %v4738
    %4855 = vmatpush.bf16.msra.mxu0 %v4736
    %4856 = vmatpush.bf16.msra.mxu0 %v4734
    %4857 = vmatmul.bf16.gmra.mxu0 %v4505
    %v4858 = vpop.f32.mrf.mxu0
    %v4859 = vadd.f32 0.0, %v4858
    %v4860 = vpop.f32.mrf.mxu0
    %4861 = vdwg.mxu0
    %4862 = vmatpush.bf16.msra.mxu0 %v4764
    %4863 = vmatpush.bf16.msra.mxu0 %v4762
    %4864 = vmatpush.bf16.msra.mxu0 %v4760
    %4865 = vmatpush.bf16.msra.mxu0 %v4758
    %4866 = vmatpush.bf16.msra.mxu0 %v4756
    %4867 = vmatpush.bf16.msra.mxu0 %v4754
    %4868 = vmatpush.bf16.msra.mxu0 %v4752
    %4869 = vmatpush.bf16.msra.mxu0 %v4750
    %4870 = vmatmul.bf16.gmra.mxu0 %v4506
    %v4871 = vpop.f32.mrf.mxu0
    %v4872 = vadd.f32 %v4859, %v4871
    %v4873 = vpop.f32.mrf.mxu0
    %4874 = vdwg.mxu0
    %4875 = vmatpush.bf16.msra.mxu0 %v4780
    %4876 = vmatpush.bf16.msra.mxu0 %v4778
    %4877 = vmatpush.bf16.msra.mxu0 %v4776
    %4878 = vmatpush.bf16.msra.mxu0 %v4774
    %4879 = vmatpush.bf16.msra.mxu0 %v4772
    %4880 = vmatpush.bf16.msra.mxu0 %v4770
    %4881 = vmatpush.bf16.msra.mxu0 %v4768
    %4882 = vmatpush.bf16.msra.mxu0 %v4766
    %4883 = vmatmul.bf16.gmra.mxu0 %v4507
    %v4884 = vpop.f32.mrf.mxu0
    %v4885 = vadd.f32 %v4872, %v4884
    %v4886 = vpop.f32.mrf.mxu0
    %4887 = vdwg.mxu0
    %4888 = vmatpush.bf16.msra.mxu0 0
    %4889 = vmatpush.bf16.msra.mxu0 0
    %4890 = vmatpush.bf16.msra.mxu0 0
    %4891 = vmatpush.bf16.msra.mxu0 0
    %4892 = vmatpush.bf16.msra.mxu0 %v4788
    %4893 = vmatpush.bf16.msra.mxu0 %v4786
    %4894 = vmatpush.bf16.msra.mxu0 %v4784
    %4895 = vmatpush.bf16.msra.mxu0 %v4782
    %4896 = vmatmul.bf16.gmra.mxu0 %v4847
    %v4897 = vpop.f32.mrf.mxu0
    %v4898 = vadd.f32 %v4885, %v4897
    %v4899 = vpop.f32.mrf.mxu0
    %4900 = vdwg.mxu0
    %4901 = vmatpush.bf16.msra.mxu0 %v4749
    %4902 = vmatpush.bf16.msra.mxu0 %v4747
    %4903 = vmatpush.bf16.msra.mxu0 %v4745
    %4904 = vmatpush.bf16.msra.mxu0 %v4743
    %4905 = vmatpush.bf16.msra.mxu0 %v4741
    %4906 = vmatpush.bf16.msra.mxu0 %v4739
    %4907 = vmatpush.bf16.msra.mxu0 %v4737
    %4908 = vmatpush.bf16.msra.mxu0 %v4735
    %4909 = vmatmul.bf16.gmra.mxu0 %v4505
    %v4910 = vpop.f32.mrf.mxu0
    %v4911 = vadd.f32 0.0, %v4910
    %v4912 = vpop.f32.mrf.mxu0
    %4913 = vdwg.mxu0
    %4914 = vmatpush.bf16.msra.mxu0 %v4765
    %4915 = vmatpush.bf16.msra.mxu0 %v4763
    %4916 = vmatpush.bf16.msra.mxu0 %v4761
    %4917 = vmatpush.bf16.msra.mxu0 %v4759
    %4918 = vmatpush.bf16.msra.mxu0 %v4757
    %4919 = vmatpush.bf16.msra.mxu0 %v4755
    %4920 = vmatpush.bf16.msra.mxu0 %v4753
    %4921 = vmatpush.bf16.msra.mxu0 %v4751
    %4922 = vmatmul.bf16.gmra.mxu0 %v4506
    %v4923 = vpop.f32.mrf.mxu0
    %v4924 = vadd.f32 %v4911, %v4923
    %v4925 = vpop.f32.mrf.mxu0
    %4926 = vdwg.mxu0
    %4927 = vmatpush.bf16.msra.mxu0 %v4781
    %4928 = vmatpush.bf16.msra.mxu0 %v4779
    %4929 = vmatpush.bf16.msra.mxu0 %v4777
    %4930 = vmatpush.bf16.msra.mxu0 %v4775
    %4931 = vmatpush.bf16.msra.mxu0 %v4773
    %4932 = vmatpush.bf16.msra.mxu0 %v4771
    %4933 = vmatpush.bf16.msra.mxu0 %v4769
    %4934 = vmatpush.bf16.msra.mxu0 %v4767
    %4935 = vmatmul.bf16.gmra.mxu0 %v4507
    %v4936 = vpop.f32.mrf.mxu0
    %v4937 = vadd.f32 %v4924, %v4936
    %v4938 = vpop.f32.mrf.mxu0
    %4939 = vdwg.mxu0
    %4940 = vmatpush.bf16.msra.mxu0 0
    %4941 = vmatpush.bf16.msra.mxu0 0
    %4942 = vmatpush.bf16.msra.mxu0 0
    %4943 = vmatpush.bf16.msra.mxu0 0
    %4944 = vmatpush.bf16.msra.mxu0 %v4789
    %4945 = vmatpush.bf16.msra.mxu0 %v4787
    %4946 = vmatpush.bf16.msra.mxu0 %v4785
    %4947 = vmatpush.bf16.msra.mxu0 %v4783
    %4948 = vmatmul.bf16.gmra.mxu0 %v4847
    %v4949 = vpop.f32.mrf.mxu0
    %v4950 = vadd.f32 %v4937, %v4949
    %v4951 = vpop.f32.mrf.mxu0
    %4952 = vdwg.mxu0
    %v5009 = vunpack.c.l.b16 %v4392
    %v5010 = vunpack.c.h.b16 %v4392
    %v5011 = vunpack.c.l.b16 %v4393
    %v5012 = vunpack.c.h.b16 %v4393
    %v5013 = vunpack.c.l.b16 %v4394
    %v5014 = vunpack.c.h.b16 %v4394
    %v5015 = vunpack.c.l.b16 %v4395
    %v5016 = vunpack.c.h.b16 %v4395
    %v5017 = vunpack.c.l.b16 %v4396
    %v5018 = vunpack.c.h.b16 %v4396
    %v5019 = vunpack.c.l.b16 %v4397
    %v5020 = vunpack.c.h.b16 %v4397
    %v5021 = vunpack.c.l.b16 %v4398
    %v5022 = vunpack.c.h.b16 %v4398
    %v5023 = vunpack.c.l.b16 %v4399
    %v5024 = vunpack.c.h.b16 %v4399
    %v5025 = vunpack.c.l.b16 %v4400
    %v5026 = vunpack.c.h.b16 %v4400
    %v5027 = vunpack.c.l.b16 %v4401
    %v5028 = vunpack.c.h.b16 %v4401
    %v5029 = vunpack.c.l.b16 %v4402
    %v5030 = vunpack.c.h.b16 %v4402
    %v5031 = vunpack.c.l.b16 %v4403
    %v5032 = vunpack.c.h.b16 %v4403
    %v5033 = vunpack.c.l.b16 %v4404
    %v5034 = vunpack.c.h.b16 %v4404
    %v5035 = vunpack.c.l.b16 %v4405
    %v5036 = vunpack.c.h.b16 %v4405
    %v5037 = vunpack.c.l.b16 %v4406
    %v5038 = vunpack.c.h.b16 %v4406
    %v5039 = vunpack.c.l.b16 %v4407
    %v5040 = vunpack.c.h.b16 %v4407
    %v5041 = vunpack.c.l.b16 %v4408
    %v5042 = vunpack.c.h.b16 %v4408
    %v5043 = vunpack.c.l.b16 %v4409
    %v5044 = vunpack.c.h.b16 %v4409
    %v5045 = vunpack.c.l.b16 %v4410
    %v5046 = vunpack.c.h.b16 %v4410
    %v5047 = vunpack.c.l.b16 %v4411
    %v5048 = vunpack.c.h.b16 %v4411
    %v5049 = vunpack.c.l.b16 %v4412
    %v5050 = vunpack.c.h.b16 %v4412
    %v5051 = vunpack.c.l.b16 %v4413
    %v5052 = vunpack.c.h.b16 %v4413
    %v5053 = vunpack.c.l.b16 %v4414
    %v5054 = vunpack.c.h.b16 %v4414
    %v5055 = vunpack.c.l.b16 %v4415
    %v5056 = vunpack.c.h.b16 %v4415
    %v5057 = vunpack.c.l.b16 %v4416
    %v5058 = vunpack.c.h.b16 %v4416
    %v5059 = vunpack.c.l.b16 %v4417
    %v5060 = vunpack.c.h.b16 %v4417
    %v5061 = vunpack.c.l.b16 %v4418
    %v5062 = vunpack.c.h.b16 %v4418
    %v5063 = vunpack.c.l.b16 %v4419
    %v5064 = vunpack.c.h.b16 %v4419
    %v5065 = vunpack.c.l.b16 %v4420
    %v5066 = vunpack.c.h.b16 %v4420
    %v5067 = vunpack.c.l.b16 %v4421
    %v5068 = vunpack.c.h.b16 %v4421
    %v5069 = vunpack.c.l.b16 %v4422
    %v5070 = vunpack.c.h.b16 %v4422
    %v5071 = vunpack.c.l.b16 %v4423
    %v5072 = vunpack.c.h.b16 %v4423
    %v5073 = vunpack.c.l.b16 %v4424
    %v5074 = vunpack.c.h.b16 %v4424
    %v5075 = vunpack.c.l.b16 %v4425
    %v5076 = vunpack.c.h.b16 %v4425
    %v5077 = vunpack.c.l.b16 %v4426
    %v5078 = vunpack.c.h.b16 %v4426
    %v5079 = vunpack.c.l.b16 %v4427
    %v5080 = vunpack.c.h.b16 %v4427
    %v5081 = vunpack.c.l.b16 %v4428
    %v5082 = vunpack.c.h.b16 %v4428
    %v5083 = vunpack.c.l.b16 %v4429
    %v5084 = vunpack.c.h.b16 %v4429
    %v5085 = vunpack.c.l.b16 %v4430
    %v5086 = vunpack.c.h.b16 %v4430
    %v5087 = vunpack.c.l.b16 %v4431
    %v5088 = vunpack.c.h.b16 %v4431
    %v5089 = vunpack.c.l.b16 %v4432
    %v5090 = vunpack.c.h.b16 %v4432
    %v5091 = vunpack.c.l.b16 %v4433
    %v5092 = vunpack.c.h.b16 %v4433
    %v5093 = vunpack.c.l.b16 %v4434
    %v5094 = vunpack.c.h.b16 %v4434
    %v5095 = vunpack.c.l.b16 %v4435
    %v5096 = vunpack.c.h.b16 %v4435
    %v5097 = vunpack.c.l.b16 %v4436
    %v5098 = vunpack.c.h.b16 %v4436
    %v5099 = vunpack.c.l.b16 %v4437
    %v5100 = vunpack.c.h.b16 %v4437
    %v5101 = vunpack.c.l.b16 %v4438
    %v5102 = vunpack.c.h.b16 %v4438
    %v5103 = vunpack.c.l.b16 %v4439
    %v5104 = vunpack.c.h.b16 %v4439
    %v5105 = vunpack.c.l.b16 %v4440
    %v5106 = vunpack.c.h.b16 %v4440
    %v5107 = vunpack.c.l.b16 %v4441
    %v5108 = vunpack.c.h.b16 %v4441
    %v5109 = vunpack.c.l.b16 %v4442
    %v5110 = vunpack.c.h.b16 %v4442
    %v5111 = vunpack.c.l.b16 %v4443
    %v5112 = vunpack.c.h.b16 %v4443
    %v5113 = vunpack.c.l.b16 %v4444
    %v5114 = vunpack.c.h.b16 %v4444
    %v5115 = vunpack.c.l.b16 %v4445
    %v5116 = vunpack.c.h.b16 %v4445
    %v5117 = vunpack.c.l.b16 %v4446
    %v5118 = vunpack.c.h.b16 %v4446
    %v5119 = vunpack.c.l.b16 %v4447
    %v5120 = vunpack.c.h.b16 %v4447
    %v5121 = vpack.c.b16 %v5011, %v5009
    %v5122 = vpack.c.b16 %v5012, %v5010
    %v5123 = vpack.c.b16 %v5015, %v5013
    %v5124 = vpack.c.b16 %v5016, %v5014
    %v5125 = vpack.c.b16 %v5019, %v5017
    %v5126 = vpack.c.b16 %v5020, %v5018
    %v5127 = vpack.c.b16 %v5023, %v5021
    %v5128 = vpack.c.b16 %v5024, %v5022
    %v5129 = vpack.c.b16 %v5027, %v5025
    %v5130 = vpack.c.b16 %v5028, %v5026
    %v5131 = vpack.c.b16 %v5031, %v5029
    %v5132 = vpack.c.b16 %v5032, %v5030
    %v5133 = vpack.c.b16 %v5035, %v5033
    %v5134 = vpack.c.b16 %v5036, %v5034
    %v5135 = vpack.c.b16 %v5039, %v5037
    %v5136 = vpack.c.b16 %v5040, %v5038
    %v5137 = vpack.c.b16 %v5043, %v5041
    %v5138 = vpack.c.b16 %v5044, %v5042
    %v5139 = vpack.c.b16 %v5047, %v5045
    %v5140 = vpack.c.b16 %v5048, %v5046
    %v5141 = vpack.c.b16 %v5051, %v5049
    %v5142 = vpack.c.b16 %v5052, %v5050
    %v5143 = vpack.c.b16 %v5055, %v5053
    %v5144 = vpack.c.b16 %v5056, %v5054
    %v5145 = vpack.c.b16 %v5059, %v5057
    %v5146 = vpack.c.b16 %v5060, %v5058
    %v5147 = vpack.c.b16 %v5063, %v5061
    %v5148 = vpack.c.b16 %v5064, %v5062
    %v5149 = vpack.c.b16 %v5067, %v5065
    %v5150 = vpack.c.b16 %v5068, %v5066
    %v5151 = vpack.c.b16 %v5071, %v5069
    %v5152 = vpack.c.b16 %v5072, %v5070
    %v5153 = vpack.c.b16 %v5075, %v5073
    %v5154 = vpack.c.b16 %v5076, %v5074
    %v5155 = vpack.c.b16 %v5079, %v5077
    %v5156 = vpack.c.b16 %v5080, %v5078
    %v5157 = vpack.c.b16 %v5083, %v5081
    %v5158 = vpack.c.b16 %v5084, %v5082
    %v5159 = vpack.c.b16 %v5087, %v5085
    %v5160 = vpack.c.b16 %v5088, %v5086
    %v5161 = vpack.c.b16 %v5091, %v5089
    %v5162 = vpack.c.b16 %v5092, %v5090
    %v5163 = vpack.c.b16 %v5095, %v5093
    %v5164 = vpack.c.b16 %v5096, %v5094
    %v5165 = vpack.c.b16 %v5099, %v5097
    %v5166 = vpack.c.b16 %v5100, %v5098
    %v5167 = vpack.c.b16 %v5103, %v5101
    %v5168 = vpack.c.b16 %v5104, %v5102
    %v5169 = vpack.c.b16 %v5107, %v5105
    %v5170 = vpack.c.b16 %v5108, %v5106
    %v5171 = vpack.c.b16 %v5111, %v5109
    %v5172 = vpack.c.b16 %v5112, %v5110
    %v5173 = vpack.c.b16 %v5115, %v5113
    %v5174 = vpack.c.b16 %v5116, %v5114
    %v5175 = vpack.c.b16 %v5119, %v5117
    %v5176 = vpack.c.b16 %v5120, %v5118
    %v5234 = vsel %vm87, %v4391, 0
    %5236 = vmatpush.bf16.msra.mxu0 %v5135
    %5237 = vmatpush.bf16.msra.mxu0 %v5133
    %5238 = vmatpush.bf16.msra.mxu0 %v5131
    %5239 = vmatpush.bf16.msra.mxu0 %v5129
    %5240 = vmatpush.bf16.msra.mxu0 %v5127
    %5241 = vmatpush.bf16.msra.mxu0 %v5125
    %5242 = vmatpush.bf16.msra.mxu0 %v5123
    %5243 = vmatpush.bf16.msra.mxu0 %v5121
    %5244 = vmatmul.bf16.gmra.mxu0 %v4388
    %v5245 = vpop.f32.mrf.mxu0
    %v5246 = vadd.f32 %v4898, %v5245
    %v5247 = vpop.f32.mrf.mxu0
    %5248 = vdwg.mxu0
    %5249 = vmatpush.bf16.msra.mxu0 %v5151
    %5250 = vmatpush.bf16.msra.mxu0 %v5149
    %5251 = vmatpush.bf16.msra.mxu0 %v5147
    %5252 = vmatpush.bf16.msra.mxu0 %v5145
    %5253 = vmatpush.bf16.msra.mxu0 %v5143
    %5254 = vmatpush.bf16.msra.mxu0 %v5141
    %5255 = vmatpush.bf16.msra.mxu0 %v5139
    %5256 = vmatpush.bf16.msra.mxu0 %v5137
    %5257 = vmatmul.bf16.gmra.mxu0 %v4389
    %v5258 = vpop.f32.mrf.mxu0
    %v5259 = vadd.f32 %v5246, %v5258
    %v5260 = vpop.f32.mrf.mxu0
    %5261 = vdwg.mxu0
    %5262 = vmatpush.bf16.msra.mxu0 %v5167
    %5263 = vmatpush.bf16.msra.mxu0 %v5165
    %5264 = vmatpush.bf16.msra.mxu0 %v5163
    %5265 = vmatpush.bf16.msra.mxu0 %v5161
    %5266 = vmatpush.bf16.msra.mxu0 %v5159
    %5267 = vmatpush.bf16.msra.mxu0 %v5157
    %5268 = vmatpush.bf16.msra.mxu0 %v5155
    %5269 = vmatpush.bf16.msra.mxu0 %v5153
    %5270 = vmatmul.bf16.gmra.mxu0 %v4390
    %v5271 = vpop.f32.mrf.mxu0
    %v5272 = vadd.f32 %v5259, %v5271
    %v5273 = vpop.f32.mrf.mxu0
    %5274 = vdwg.mxu0
    %5275 = vmatpush.bf16.msra.mxu0 0
    %5276 = vmatpush.bf16.msra.mxu0 0
    %5277 = vmatpush.bf16.msra.mxu0 0
    %5278 = vmatpush.bf16.msra.mxu0 0
    %5279 = vmatpush.bf16.msra.mxu0 %v5175
    %5280 = vmatpush.bf16.msra.mxu0 %v5173
    %5281 = vmatpush.bf16.msra.mxu0 %v5171
    %5282 = vmatpush.bf16.msra.mxu0 %v5169
    %5283 = vmatmul.bf16.gmra.mxu0 %v5234
    %v5284 = vpop.f32.mrf.mxu0
    %v5285 = vadd.f32 %v5272, %v5284
    %v5286 = vpop.f32.mrf.mxu0
    %5287 = vdwg.mxu0
    %5288 = vmatpush.bf16.msra.mxu0 %v5136
    %5289 = vmatpush.bf16.msra.mxu0 %v5134
    %5290 = vmatpush.bf16.msra.mxu0 %v5132
    %5291 = vmatpush.bf16.msra.mxu0 %v5130
    %5292 = vmatpush.bf16.msra.mxu0 %v5128
    %5293 = vmatpush.bf16.msra.mxu0 %v5126
    %5294 = vmatpush.bf16.msra.mxu0 %v5124
    %5295 = vmatpush.bf16.msra.mxu0 %v5122
    %5296 = vmatmul.bf16.gmra.mxu0 %v4388
    %v5297 = vpop.f32.mrf.mxu0
    %v5298 = vadd.f32 %v4950, %v5297
    %v5299 = vpop.f32.mrf.mxu0
    %5300 = vdwg.mxu0
    %5301 = vmatpush.bf16.msra.mxu0 %v5152
    %5302 = vmatpush.bf16.msra.mxu0 %v5150
    %5303 = vmatpush.bf16.msra.mxu0 %v5148
    %5304 = vmatpush.bf16.msra.mxu0 %v5146
    %5305 = vmatpush.bf16.msra.mxu0 %v5144
    %5306 = vmatpush.bf16.msra.mxu0 %v5142
    %5307 = vmatpush.bf16.msra.mxu0 %v5140
    %5308 = vmatpush.bf16.msra.mxu0 %v5138
    %5309 = vmatmul.bf16.gmra.mxu0 %v4389
    %v5310 = vpop.f32.mrf.mxu0
    %v5311 = vadd.f32 %v5298, %v5310
    %v5312 = vpop.f32.mrf.mxu0
    %5313 = vdwg.mxu0
    %5314 = vmatpush.bf16.msra.mxu0 %v5168
    %5315 = vmatpush.bf16.msra.mxu0 %v5166
    %5316 = vmatpush.bf16.msra.mxu0 %v5164
    %5317 = vmatpush.bf16.msra.mxu0 %v5162
    %5318 = vmatpush.bf16.msra.mxu0 %v5160
    %5319 = vmatpush.bf16.msra.mxu0 %v5158
    %5320 = vmatpush.bf16.msra.mxu0 %v5156
    %5321 = vmatpush.bf16.msra.mxu0 %v5154
    %5322 = vmatmul.bf16.gmra.mxu0 %v4390
    %v5323 = vpop.f32.mrf.mxu0
    %v5324 = vadd.f32 %v5311, %v5323
    %v5325 = vpop.f32.mrf.mxu0
    %5326 = vdwg.mxu0
    %5327 = vmatpush.bf16.msra.mxu0 0
    %5328 = vmatpush.bf16.msra.mxu0 0
    %5329 = vmatpush.bf16.msra.mxu0 0
    %5330 = vmatpush.bf16.msra.mxu0 0
    %5331 = vmatpush.bf16.msra.mxu0 %v5176
    %5332 = vmatpush.bf16.msra.mxu0 %v5174
    %5333 = vmatpush.bf16.msra.mxu0 %v5172
    %5334 = vmatpush.bf16.msra.mxu0 %v5170
    %5335 = vmatmul.bf16.gmra.mxu0 %v5234
    %v5336 = vpop.f32.mrf.mxu0
    %v5337 = vadd.f32 %v5324, %v5336
    %v5338 = vpop.f32.mrf.mxu0
    %5339 = vdwg.mxu0
    %s5340 = scalar_lea.vmem %s7, 8
    %v5341 = vld [vmem:[%s5340] sm:$0x7]
    %v5343 = vsel %vm4320, %v5341, 0
    %5345 = vmatpush.bf16.msra.mxu0 0
    %5346 = vmatpush.bf16.msra.mxu0 0
    %5347 = vmatpush.bf16.msra.mxu0 0
    %5348 = vmatpush.bf16.msra.mxu0 0
    %5349 = vmatpush.bf16.msra.mxu0 0
    %5350 = vmatpush.bf16.msra.mxu0 0
    %5351 = vmatpush.bf16.msra.mxu0 0
    %5352 = vmatpush.bf16.msra.mxu0 %v4325
    %5353 = vmatmul.bf16.gmra.mxu0 %v5343
    %v5354 = vpop.f32.mrf.mxu0
    %v5355 = vadd.f32 0.0, %v5354
    %v5356 = vpop.f32.mrf.mxu0
    %5357 = vdwg.mxu0
    %5358 = vmatpush.bf16.msra.mxu0 0
    %5359 = vmatpush.bf16.msra.mxu0 0
    %5360 = vmatpush.bf16.msra.mxu0 0
    %5361 = vmatpush.bf16.msra.mxu0 0
    %5362 = vmatpush.bf16.msra.mxu0 0
    %5363 = vmatpush.bf16.msra.mxu0 0
    %5364 = vmatpush.bf16.msra.mxu0 0
    %5365 = vmatpush.bf16.msra.mxu0 %v4328
    %5366 = vmatmul.bf16.gmra.mxu0 %v5343
    %v5367 = vpop.f32.mrf.mxu0
    %v5368 = vadd.f32 0.0, %v5367
    %v5369 = vpop.f32.mrf.mxu0
    %5370 = vdwg.mxu0
    %5371 = vmatpush.bf16.msra.mxu0 0
    %5372 = vmatpush.bf16.msra.mxu0 0
    %5373 = vmatpush.bf16.msra.mxu0 0
    %5374 = vmatpush.bf16.msra.mxu0 0
    %5375 = vmatpush.bf16.msra.mxu0 0
    %5376 = vmatpush.bf16.msra.mxu0 0
    %5377 = vmatpush.bf16.msra.mxu0 0
    %5378 = vmatpush.bf16.msra.mxu0 %v4331
    %5379 = vmatmul.bf16.gmra.mxu0 %v5343
    %v5380 = vpop.f32.mrf.mxu0
    %v5381 = vadd.f32 0.0, %v5380
    %v5382 = vpop.f32.mrf.mxu0
    %5383 = vdwg.mxu0
    %5384 = vmatpush.bf16.msra.mxu0 0
    %5385 = vmatpush.bf16.msra.mxu0 0
    %5386 = vmatpush.bf16.msra.mxu0 0
    %5387 = vmatpush.bf16.msra.mxu0 0
    %5388 = vmatpush.bf16.msra.mxu0 0
    %5389 = vmatpush.bf16.msra.mxu0 0
    %5390 = vmatpush.bf16.msra.mxu0 0
    %5391 = vmatpush.bf16.msra.mxu0 %v4334
    %5392 = vmatmul.bf16.gmra.mxu0 %v5343
    %v5393 = vpop.f32.mrf.mxu0
    %v5394 = vadd.f32 0.0, %v5393
    %v5395 = vpop.f32.mrf.mxu0
    %5396 = vdwg.mxu0
    %v5397 = vpack.c.bf16 %v5355, %v5355
    %v5398 = vpack.c.bf16 %v5368, %v5368
    %v5399 = vpack.c.bf16 %v5381, %v5381
    %v5400 = vpack.c.bf16 %v5394, %v5394
    %s5401 = scalar_lea.vmem %s8, 896
    %v5402 = vld [vmem:[%s5401] sm:$0xff]
    %v5403 = vld [vmem:[%s5401 + $0x8] sm:$0xff]
    %v5404 = vld [vmem:[%s5401 + $0x10] sm:$0xff]
    %v5405 = vld [vmem:[%s5401 + $0x18] sm:$0xff]
    %v5406 = vld [vmem:[%s5401 + $0x20] sm:$0xff]
    %v5407 = vld [vmem:[%s5401 + $0x28] sm:$0xff]
    %v5408 = vld [vmem:[%s5401 + $0x30] sm:$0xff]
    %v5409 = vld [vmem:[%s5401 + $0x38] sm:$0xff]
    %v5410 = vld [vmem:[%s5401 + $0x40] sm:$0xff]
    %v5411 = vld [vmem:[%s5401 + $0x48] sm:$0xff]
    %v5412 = vld [vmem:[%s5401 + $0x50] sm:$0xff]
    %v5413 = vld [vmem:[%s5401 + $0x58] sm:$0xff]
    %v5414 = vld [vmem:[%s5401 + $0x60] sm:$0xff]
    %v5415 = vld [vmem:[%s5401 + $0x68] sm:$0xff]
    %v5416 = vld [vmem:[%s5401 + $0x70] sm:$0xff]
    %v5417 = vld [vmem:[%s5401 + $0x78] sm:$0xff]
    %v5418 = vld [vmem:[%s5401 + $0x80] sm:$0xff]
    %v5419 = vld [vmem:[%s5401 + $0x88] sm:$0xff]
    %v5420 = vld [vmem:[%s5401 + $0x90] sm:$0xff]
    %v5421 = vld [vmem:[%s5401 + $0x98] sm:$0xff]
    %v5422 = vld [vmem:[%s5401 + $0xa0] sm:$0xff]
    %v5423 = vld [vmem:[%s5401 + $0xa8] sm:$0xff]
    %v5424 = vld [vmem:[%s5401 + $0xb0] sm:$0xff]
    %v5425 = vld [vmem:[%s5401 + $0xb8] sm:$0xff]
    %v5426 = vld [vmem:[%s5401 + $0xc0] sm:$0xff]
    %v5427 = vld [vmem:[%s5401 + $0xc8] sm:$0xff]
    %v5428 = vld [vmem:[%s5401 + $0xd0] sm:$0xff]
    %v5429 = vld [vmem:[%s5401 + $0xd8] sm:$0xff]
    %v5430 = vld [vmem:[%s5401 + $0xe0] sm:$0xff]
    %v5431 = vld [vmem:[%s5401 + $0xe8] sm:$0xff]
    %v5432 = vld [vmem:[%s5401 + $0xf0] sm:$0xff]
    %v5433 = vld [vmem:[%s5401 + $0xf8] sm:$0xff]
    %v5434 = vld [vmem:[%s5401 + $0x100] sm:$0xff]
    %v5435 = vld [vmem:[%s5401 + $0x108] sm:$0xff]
    %v5436 = vld [vmem:[%s5401 + $0x110] sm:$0xff]
    %v5437 = vld [vmem:[%s5401 + $0x118] sm:$0xff]
    %v5438 = vld [vmem:[%s5401 + $0x120] sm:$0xff]
    %v5439 = vld [vmem:[%s5401 + $0x128] sm:$0xff]
    %v5440 = vld [vmem:[%s5401 + $0x130] sm:$0xff]
    %v5441 = vld [vmem:[%s5401 + $0x138] sm:$0xff]
    %v5442 = vld [vmem:[%s5401 + $0x140] sm:$0xff]
    %v5443 = vld [vmem:[%s5401 + $0x148] sm:$0xff]
    %v5444 = vld [vmem:[%s5401 + $0x150] sm:$0xff]
    %v5445 = vld [vmem:[%s5401 + $0x158] sm:$0xff]
    %v5446 = vld [vmem:[%s5401 + $0x160] sm:$0xff]
    %v5447 = vld [vmem:[%s5401 + $0x168] sm:$0xff]
    %v5448 = vld [vmem:[%s5401 + $0x170] sm:$0xff]
    %v5449 = vld [vmem:[%s5401 + $0x178] sm:$0xff]
    %v5450 = vld [vmem:[%s5401 + $0x180] sm:$0xff]
    %v5451 = vld [vmem:[%s5401 + $0x188] sm:$0xff]
    %v5452 = vld [vmem:[%s5401 + $0x190] sm:$0xff]
    %v5453 = vld [vmem:[%s5401 + $0x198] sm:$0xff]
    %v5454 = vld [vmem:[%s5401 + $0x1a0] sm:$0xff]
    %v5455 = vld [vmem:[%s5401 + $0x1a8] sm:$0xff]
    %v5456 = vld [vmem:[%s5401 + $0x1b0] sm:$0xff]
    %v5457 = vld [vmem:[%s5401 + $0x1b8] sm:$0xff]
    %v5514 = vunpack.c.l.b16 %v5402
    %v5515 = vunpack.c.h.b16 %v5402
    %v5516 = vunpack.c.l.b16 %v5403
    %v5517 = vunpack.c.h.b16 %v5403
    %v5518 = vunpack.c.l.b16 %v5404
    %v5519 = vunpack.c.h.b16 %v5404
    %v5520 = vunpack.c.l.b16 %v5405
    %v5521 = vunpack.c.h.b16 %v5405
    %v5522 = vunpack.c.l.b16 %v5406
    %v5523 = vunpack.c.h.b16 %v5406
    %v5524 = vunpack.c.l.b16 %v5407
    %v5525 = vunpack.c.h.b16 %v5407
    %v5526 = vunpack.c.l.b16 %v5408
    %v5527 = vunpack.c.h.b16 %v5408
    %v5528 = vunpack.c.l.b16 %v5409
    %v5529 = vunpack.c.h.b16 %v5409
    %v5530 = vunpack.c.l.b16 %v5410
    %v5531 = vunpack.c.h.b16 %v5410
    %v5532 = vunpack.c.l.b16 %v5411
    %v5533 = vunpack.c.h.b16 %v5411
    %v5534 = vunpack.c.l.b16 %v5412
    %v5535 = vunpack.c.h.b16 %v5412
    %v5536 = vunpack.c.l.b16 %v5413
    %v5537 = vunpack.c.h.b16 %v5413
    %v5538 = vunpack.c.l.b16 %v5414
    %v5539 = vunpack.c.h.b16 %v5414
    %v5540 = vunpack.c.l.b16 %v5415
    %v5541 = vunpack.c.h.b16 %v5415
    %v5542 = vunpack.c.l.b16 %v5416
    %v5543 = vunpack.c.h.b16 %v5416
    %v5544 = vunpack.c.l.b16 %v5417
    %v5545 = vunpack.c.h.b16 %v5417
    %v5546 = vunpack.c.l.b16 %v5418
    %v5547 = vunpack.c.h.b16 %v5418
    %v5548 = vunpack.c.l.b16 %v5419
    %v5549 = vunpack.c.h.b16 %v5419
    %v5550 = vunpack.c.l.b16 %v5420
    %v5551 = vunpack.c.h.b16 %v5420
    %v5552 = vunpack.c.l.b16 %v5421
    %v5553 = vunpack.c.h.b16 %v5421
    %v5554 = vunpack.c.l.b16 %v5422
    %v5555 = vunpack.c.h.b16 %v5422
    %v5556 = vunpack.c.l.b16 %v5423
    %v5557 = vunpack.c.h.b16 %v5423
    %v5558 = vunpack.c.l.b16 %v5424
    %v5559 = vunpack.c.h.b16 %v5424
    %v5560 = vunpack.c.l.b16 %v5425
    %v5561 = vunpack.c.h.b16 %v5425
    %v5562 = vunpack.c.l.b16 %v5426
    %v5563 = vunpack.c.h.b16 %v5426
    %v5564 = vunpack.c.l.b16 %v5427
    %v5565 = vunpack.c.h.b16 %v5427
    %v5566 = vunpack.c.l.b16 %v5428
    %v5567 = vunpack.c.h.b16 %v5428
    %v5568 = vunpack.c.l.b16 %v5429
    %v5569 = vunpack.c.h.b16 %v5429
    %v5570 = vunpack.c.l.b16 %v5430
    %v5571 = vunpack.c.h.b16 %v5430
    %v5572 = vunpack.c.l.b16 %v5431
    %v5573 = vunpack.c.h.b16 %v5431
    %v5574 = vunpack.c.l.b16 %v5432
    %v5575 = vunpack.c.h.b16 %v5432
    %v5576 = vunpack.c.l.b16 %v5433
    %v5577 = vunpack.c.h.b16 %v5433
    %v5578 = vunpack.c.l.b16 %v5434
    %v5579 = vunpack.c.h.b16 %v5434
    %v5580 = vunpack.c.l.b16 %v5435
    %v5581 = vunpack.c.h.b16 %v5435
    %v5582 = vunpack.c.l.b16 %v5436
    %v5583 = vunpack.c.h.b16 %v5436
    %v5584 = vunpack.c.l.b16 %v5437
    %v5585 = vunpack.c.h.b16 %v5437
    %v5586 = vunpack.c.l.b16 %v5438
    %v5587 = vunpack.c.h.b16 %v5438
    %v5588 = vunpack.c.l.b16 %v5439
    %v5589 = vunpack.c.h.b16 %v5439
    %v5590 = vunpack.c.l.b16 %v5440
    %v5591 = vunpack.c.h.b16 %v5440
    %v5592 = vunpack.c.l.b16 %v5441
    %v5593 = vunpack.c.h.b16 %v5441
    %v5594 = vunpack.c.l.b16 %v5442
    %v5595 = vunpack.c.h.b16 %v5442
    %v5596 = vunpack.c.l.b16 %v5443
    %v5597 = vunpack.c.h.b16 %v5443
    %v5598 = vunpack.c.l.b16 %v5444
    %v5599 = vunpack.c.h.b16 %v5444
    %v5600 = vunpack.c.l.b16 %v5445
    %v5601 = vunpack.c.h.b16 %v5445
    %v5602 = vunpack.c.l.b16 %v5446
    %v5603 = vunpack.c.h.b16 %v5446
    %v5604 = vunpack.c.l.b16 %v5447
    %v5605 = vunpack.c.h.b16 %v5447
    %v5606 = vunpack.c.l.b16 %v5448
    %v5607 = vunpack.c.h.b16 %v5448
    %v5608 = vunpack.c.l.b16 %v5449
    %v5609 = vunpack.c.h.b16 %v5449
    %v5610 = vunpack.c.l.b16 %v5450
    %v5611 = vunpack.c.h.b16 %v5450
    %v5612 = vunpack.c.l.b16 %v5451
    %v5613 = vunpack.c.h.b16 %v5451
    %v5614 = vunpack.c.l.b16 %v5452
    %v5615 = vunpack.c.h.b16 %v5452
    %v5616 = vunpack.c.l.b16 %v5453
    %v5617 = vunpack.c.h.b16 %v5453
    %v5618 = vunpack.c.l.b16 %v5454
    %v5619 = vunpack.c.h.b16 %v5454
    %v5620 = vunpack.c.l.b16 %v5455
    %v5621 = vunpack.c.h.b16 %v5455
    %v5622 = vunpack.c.l.b16 %v5456
    %v5623 = vunpack.c.h.b16 %v5456
    %v5624 = vunpack.c.l.b16 %v5457
    %v5625 = vunpack.c.h.b16 %v5457
    %v5626 = vpack.c.b16 %v5516, %v5514
    %v5627 = vpack.c.b16 %v5517, %v5515
    %v5628 = vpack.c.b16 %v5520, %v5518
    %v5629 = vpack.c.b16 %v5521, %v5519
    %v5630 = vpack.c.b16 %v5524, %v5522
    %v5631 = vpack.c.b16 %v5525, %v5523
    %v5632 = vpack.c.b16 %v5528, %v5526
    %v5633 = vpack.c.b16 %v5529, %v5527
    %v5634 = vpack.c.b16 %v5532, %v5530
    %v5635 = vpack.c.b16 %v5533, %v5531
    %v5636 = vpack.c.b16 %v5536, %v5534
    %v5637 = vpack.c.b16 %v5537, %v5535
    %v5638 = vpack.c.b16 %v5540, %v5538
    %v5639 = vpack.c.b16 %v5541, %v5539
    %v5640 = vpack.c.b16 %v5544, %v5542
    %v5641 = vpack.c.b16 %v5545, %v5543
    %v5642 = vpack.c.b16 %v5548, %v5546
    %v5643 = vpack.c.b16 %v5549, %v5547
    %v5644 = vpack.c.b16 %v5552, %v5550
    %v5645 = vpack.c.b16 %v5553, %v5551
    %v5646 = vpack.c.b16 %v5556, %v5554
    %v5647 = vpack.c.b16 %v5557, %v5555
    %v5648 = vpack.c.b16 %v5560, %v5558
    %v5649 = vpack.c.b16 %v5561, %v5559
    %v5650 = vpack.c.b16 %v5564, %v5562
    %v5651 = vpack.c.b16 %v5565, %v5563
    %v5652 = vpack.c.b16 %v5568, %v5566
    %v5653 = vpack.c.b16 %v5569, %v5567
    %v5654 = vpack.c.b16 %v5572, %v5570
    %v5655 = vpack.c.b16 %v5573, %v5571
    %v5656 = vpack.c.b16 %v5576, %v5574
    %v5657 = vpack.c.b16 %v5577, %v5575
    %v5658 = vpack.c.b16 %v5580, %v5578
    %v5659 = vpack.c.b16 %v5581, %v5579
    %v5660 = vpack.c.b16 %v5584, %v5582
    %v5661 = vpack.c.b16 %v5585, %v5583
    %v5662 = vpack.c.b16 %v5588, %v5586
    %v5663 = vpack.c.b16 %v5589, %v5587
    %v5664 = vpack.c.b16 %v5592, %v5590
    %v5665 = vpack.c.b16 %v5593, %v5591
    %v5666 = vpack.c.b16 %v5596, %v5594
    %v5667 = vpack.c.b16 %v5597, %v5595
    %v5668 = vpack.c.b16 %v5600, %v5598
    %v5669 = vpack.c.b16 %v5601, %v5599
    %v5670 = vpack.c.b16 %v5604, %v5602
    %v5671 = vpack.c.b16 %v5605, %v5603
    %v5672 = vpack.c.b16 %v5608, %v5606
    %v5673 = vpack.c.b16 %v5609, %v5607
    %v5674 = vpack.c.b16 %v5612, %v5610
    %v5675 = vpack.c.b16 %v5613, %v5611
    %v5676 = vpack.c.b16 %v5616, %v5614
    %v5677 = vpack.c.b16 %v5617, %v5615
    %v5678 = vpack.c.b16 %v5620, %v5618
    %v5679 = vpack.c.b16 %v5621, %v5619
    %v5680 = vpack.c.b16 %v5624, %v5622
    %v5681 = vpack.c.b16 %v5625, %v5623
    %v5739 = vsel %vm87, %v5400, 0
    %5741 = vmatpush.bf16.msra.mxu0 %v5640
    %5742 = vmatpush.bf16.msra.mxu0 %v5638
    %5743 = vmatpush.bf16.msra.mxu0 %v5636
    %5744 = vmatpush.bf16.msra.mxu0 %v5634
    %5745 = vmatpush.bf16.msra.mxu0 %v5632
    %5746 = vmatpush.bf16.msra.mxu0 %v5630
    %5747 = vmatpush.bf16.msra.mxu0 %v5628
    %5748 = vmatpush.bf16.msra.mxu0 %v5626
    %5749 = vmatmul.bf16.gmra.mxu0 %v5397
    %v5750 = vpop.f32.mrf.mxu0
    %v5751 = vadd.f32 0.0, %v5750
    %v5752 = vpop.f32.mrf.mxu0
    %5753 = vdwg.mxu0
    %5754 = vmatpush.bf16.msra.mxu0 %v5656
    %5755 = vmatpush.bf16.msra.mxu0 %v5654
    %5756 = vmatpush.bf16.msra.mxu0 %v5652
    %5757 = vmatpush.bf16.msra.mxu0 %v5650
    %5758 = vmatpush.bf16.msra.mxu0 %v5648
    %5759 = vmatpush.bf16.msra.mxu0 %v5646
    %5760 = vmatpush.bf16.msra.mxu0 %v5644
    %5761 = vmatpush.bf16.msra.mxu0 %v5642
    %5762 = vmatmul.bf16.gmra.mxu0 %v5398
    %v5763 = vpop.f32.mrf.mxu0
    %v5764 = vadd.f32 %v5751, %v5763
    %v5765 = vpop.f32.mrf.mxu0
    %5766 = vdwg.mxu0
    %5767 = vmatpush.bf16.msra.mxu0 %v5672
    %5768 = vmatpush.bf16.msra.mxu0 %v5670
    %5769 = vmatpush.bf16.msra.mxu0 %v5668
    %5770 = vmatpush.bf16.msra.mxu0 %v5666
    %5771 = vmatpush.bf16.msra.mxu0 %v5664
    %5772 = vmatpush.bf16.msra.mxu0 %v5662
    %5773 = vmatpush.bf16.msra.mxu0 %v5660
    %5774 = vmatpush.bf16.msra.mxu0 %v5658
    %5775 = vmatmul.bf16.gmra.mxu0 %v5399
    %v5776 = vpop.f32.mrf.mxu0
    %v5777 = vadd.f32 %v5764, %v5776
    %v5778 = vpop.f32.mrf.mxu0
    %5779 = vdwg.mxu0
    %5780 = vmatpush.bf16.msra.mxu0 0
    %5781 = vmatpush.bf16.msra.mxu0 0
    %5782 = vmatpush.bf16.msra.mxu0 0
    %5783 = vmatpush.bf16.msra.mxu0 0
    %5784 = vmatpush.bf16.msra.mxu0 %v5680
    %5785 = vmatpush.bf16.msra.mxu0 %v5678
    %5786 = vmatpush.bf16.msra.mxu0 %v5676
    %5787 = vmatpush.bf16.msra.mxu0 %v5674
    %5788 = vmatmul.bf16.gmra.mxu0 %v5739
    %v5789 = vpop.f32.mrf.mxu0
    %v5790 = vadd.f32 %v5777, %v5789
    %v5791 = vpop.f32.mrf.mxu0
    %5792 = vdwg.mxu0
    %5793 = vmatpush.bf16.msra.mxu0 %v5641
    %5794 = vmatpush.bf16.msra.mxu0 %v5639
    %5795 = vmatpush.bf16.msra.mxu0 %v5637
    %5796 = vmatpush.bf16.msra.mxu0 %v5635
    %5797 = vmatpush.bf16.msra.mxu0 %v5633
    %5798 = vmatpush.bf16.msra.mxu0 %v5631
    %5799 = vmatpush.bf16.msra.mxu0 %v5629
    %5800 = vmatpush.bf16.msra.mxu0 %v5627
    %5801 = vmatmul.bf16.gmra.mxu0 %v5397
    %v5802 = vpop.f32.mrf.mxu0
    %v5803 = vadd.f32 0.0, %v5802
    %v5804 = vpop.f32.mrf.mxu0
    %5805 = vdwg.mxu0
    %5806 = vmatpush.bf16.msra.mxu0 %v5657
    %5807 = vmatpush.bf16.msra.mxu0 %v5655
    %5808 = vmatpush.bf16.msra.mxu0 %v5653
    %5809 = vmatpush.bf16.msra.mxu0 %v5651
    %5810 = vmatpush.bf16.msra.mxu0 %v5649
    %5811 = vmatpush.bf16.msra.mxu0 %v5647
    %5812 = vmatpush.bf16.msra.mxu0 %v5645
    %5813 = vmatpush.bf16.msra.mxu0 %v5643
    %5814 = vmatmul.bf16.gmra.mxu0 %v5398
    %v5815 = vpop.f32.mrf.mxu0
    %v5816 = vadd.f32 %v5803, %v5815
    %v5817 = vpop.f32.mrf.mxu0
    %5818 = vdwg.mxu0
    %5819 = vmatpush.bf16.msra.mxu0 %v5673
    %5820 = vmatpush.bf16.msra.mxu0 %v5671
    %5821 = vmatpush.bf16.msra.mxu0 %v5669
    %5822 = vmatpush.bf16.msra.mxu0 %v5667
    %5823 = vmatpush.bf16.msra.mxu0 %v5665
    %5824 = vmatpush.bf16.msra.mxu0 %v5663
    %5825 = vmatpush.bf16.msra.mxu0 %v5661
    %5826 = vmatpush.bf16.msra.mxu0 %v5659
    %5827 = vmatmul.bf16.gmra.mxu0 %v5399
    %v5828 = vpop.f32.mrf.mxu0
    %v5829 = vadd.f32 %v5816, %v5828
    %v5830 = vpop.f32.mrf.mxu0
    %5831 = vdwg.mxu0
    %5832 = vmatpush.bf16.msra.mxu0 0
    %5833 = vmatpush.bf16.msra.mxu0 0
    %5834 = vmatpush.bf16.msra.mxu0 0
    %5835 = vmatpush.bf16.msra.mxu0 0
    %5836 = vmatpush.bf16.msra.mxu0 %v5681
    %5837 = vmatpush.bf16.msra.mxu0 %v5679
    %5838 = vmatpush.bf16.msra.mxu0 %v5677
    %5839 = vmatpush.bf16.msra.mxu0 %v5675
    %5840 = vmatmul.bf16.gmra.mxu0 %v5739
    %v5841 = vpop.f32.mrf.mxu0
    %v5842 = vadd.f32 %v5829, %v5841
    %v5843 = vpop.f32.mrf.mxu0
    %5844 = vdwg.mxu0
    %v5845 = vadd.f32 %v5285, %v5790
    %v5846 = vadd.f32 %v5337, %v5842
    %v5847 = vld [vmem:[%s9] sm:$0x3]
    %v5849 = vperm.slane %v5847, 0
    %v5850 = vperm.slane %v5847, 1
    %v5853 = vadd.f32 %v5845, %v5849
    %v5854 = vadd.f32 %v5846, %v5850
    %vm5855 = vcmp.ge.f32.partialorder %v5853, 0.0
    %vm5856 = vcmp.ge.f32.partialorder %v5854, 0.0
    %v5857 = vmul.f32 %v5853, 0.1
    %v5858 = vmul.f32 %v5854, 0.1
    %v5859 = vsel %vm5855, %v5853, %v5857
    %v5860 = vsel %vm5856, %v5854, %v5858
    %s5861 = scalar_lea.vmem %s9, 2
    %v5862 = vld [vmem:[%s5861] sm:$0x3]
    %v5864 = vperm.slane %v5862, 0
    %v5865 = vperm.slane %v5862, 1
    %v5868 = vmul.f32 %v5859, %v5864
    %v5869 = vmul.f32 %v5860, %v5865
    %s5870 = scalar_lea.vmem %s9, 4
    %v5871 = vld [vmem:[%s5870] sm:$0x3]
    %v5873 = vperm.slane %v5871, 0
    %v5874 = vperm.slane %v5871, 1
    %v5877 = vadd.f32 %v5868, %v5873
    %v5878 = vadd.f32 %v5869, %v5874
    %v5879 = vpack.c.bf16 %v5877, %v5877
    %v5880 = vpack.c.bf16 %v5878, %v5878
    %v5881 = vld [vmem:[%s10] sm:$0x1]
    %vm5882 = vcmask 48128
    %v5884 = vsel %vm5882, %v5881, 0
    %vm5886 = vcmask 1042432
    %v5888 = vsel %vm5886, %v5879, 0
    %v5891 = vsel %vm5886, %v5880, 0
    %5893 = vmatpush.bf16.msra.mxu0 0
    %5894 = vmatpush.bf16.msra.mxu0 0
    %5895 = vmatpush.bf16.msra.mxu0 0
    %5896 = vmatpush.bf16.msra.mxu0 0
    %5897 = vmatpush.bf16.msra.mxu0 0
    %5898 = vmatpush.bf16.msra.mxu0 0
    %5899 = vmatpush.bf16.msra.mxu0 0
    %5900 = vmatpush.bf16.msra.mxu0 %v5888
    %5901 = vmatmul.bf16.gmra.mxu0 %v5884
    %v5902 = vpop.f32.mrf.mxu0
    %v5903 = vadd.f32 0.0, %v5902
    %v5904 = vpop.f32.mrf.mxu0
    %5905 = vdwg.mxu0
    %5906 = vmatpush.bf16.msra.mxu0 0
    %5907 = vmatpush.bf16.msra.mxu0 0
    %5908 = vmatpush.bf16.msra.mxu0 0
    %5909 = vmatpush.bf16.msra.mxu0 0
    %5910 = vmatpush.bf16.msra.mxu0 0
    %5911 = vmatpush.bf16.msra.mxu0 0
    %5912 = vmatpush.bf16.msra.mxu0 0
    %5913 = vmatpush.bf16.msra.mxu0 %v5891
    %5914 = vmatmul.bf16.gmra.mxu0 %v5884
    %v5915 = vpop.f32.mrf.mxu0
    %v5916 = vadd.f32 0.0, %v5915
    %v5917 = vpop.f32.mrf.mxu0
    %5918 = vdwg.mxu0
    %v5919 = vpack.c.bf16 %v5903, %v5903
    %v5920 = vpack.c.bf16 %v5916, %v5916
    %v5921 = vld [vmem:[%s11] sm:$0xf]
    %v5922 = vld [vmem:[%s11 + $0x4] sm:$0xf]
    %v5923 = vld [vmem:[%s11 + $0x8] sm:$0xf]
    %v5924 = vld [vmem:[%s11 + $0xc] sm:$0xf]
    %v5925 = vld [vmem:[%s11 + $0x10] sm:$0xf]
    %v5926 = vld [vmem:[%s11 + $0x14] sm:$0xf]
    %v5927 = vld [vmem:[%s11 + $0x18] sm:$0xf]
    %v5928 = vld [vmem:[%s11 + $0x1c] sm:$0xf]
    %v5929 = vld [vmem:[%s11 + $0x20] sm:$0xf]
    %v5930 = vld [vmem:[%s11 + $0x24] sm:$0xf]
    %v5931 = vld [vmem:[%s11 + $0x28] sm:$0xf]
    %v5932 = vld [vmem:[%s11 + $0x2c] sm:$0xf]
    %v5933 = vld [vmem:[%s11 + $0x30] sm:$0xf]
    %v5934 = vld [vmem:[%s11 + $0x34] sm:$0xf]
    %v5935 = vld [vmem:[%s11 + $0x38] sm:$0xf]
    %v5936 = vld [vmem:[%s11 + $0x3c] sm:$0xf]
    %v5937 = vld [vmem:[%s11 + $0x40] sm:$0xf]
    %v5938 = vld [vmem:[%s11 + $0x44] sm:$0xf]
    %v5939 = vld [vmem:[%s11 + $0x48] sm:$0xf]
    %v5940 = vld [vmem:[%s11 + $0x4c] sm:$0xf]
    %v5941 = vld [vmem:[%s11 + $0x50] sm:$0xf]
    %v5942 = vld [vmem:[%s11 + $0x54] sm:$0xf]
    %v5943 = vld [vmem:[%s11 + $0x58] sm:$0xf]
    %v5944 = vld [vmem:[%s11 + $0x5c] sm:$0xf]
    %s5945 = scalar_lea.vmem %s10, 1
    %v5946 = vld [vmem:[%s5945] sm:$0x1]
    %v5948 = vsel %vm5882, %v5946, 0
    %5950 = vmatpush.bf16.msra.mxu0 0
    %5951 = vmatpush.bf16.msra.mxu0 0
    %5952 = vmatpush.bf16.msra.mxu0 0
    %5953 = vmatpush.bf16.msra.mxu0 0
    %5954 = vmatpush.bf16.msra.mxu0 0
    %5955 = vmatpush.bf16.msra.mxu0 0
    %5956 = vmatpush.bf16.msra.mxu0 0
    %5957 = vmatpush.bf16.msra.mxu0 %v5888
    %5958 = vmatmul.bf16.gmra.mxu0 %v5948
    %v5959 = vpop.f32.mrf.mxu0
    %v5960 = vadd.f32 0.0, %v5959
    %v5961 = vpop.f32.mrf.mxu0
    %5962 = vdwg.mxu0
    %5963 = vmatpush.bf16.msra.mxu0 0
    %5964 = vmatpush.bf16.msra.mxu0 0
    %5965 = vmatpush.bf16.msra.mxu0 0
    %5966 = vmatpush.bf16.msra.mxu0 0
    %5967 = vmatpush.bf16.msra.mxu0 0
    %5968 = vmatpush.bf16.msra.mxu0 0
    %5969 = vmatpush.bf16.msra.mxu0 0
    %5970 = vmatpush.bf16.msra.mxu0 %v5891
    %5971 = vmatmul.bf16.gmra.mxu0 %v5948
    %v5972 = vpop.f32.mrf.mxu0
    %v5973 = vadd.f32 0.0, %v5972
    %v5974 = vpop.f32.mrf.mxu0
    %5975 = vdwg.mxu0
    %v5976 = vpack.c.bf16 %v5960, %v5960
    %v5977 = vpack.c.bf16 %v5973, %v5973
    %s5978 = scalar_lea.vmem %s11, 96
    %v5979 = vld [vmem:[%s5978] sm:$0xf]
    %v5980 = vld [vmem:[%s5978 + $0x4] sm:$0xf]
    %v5981 = vld [vmem:[%s5978 + $0x8] sm:$0xf]
    %v5982 = vld [vmem:[%s5978 + $0xc] sm:$0xf]
    %v5983 = vld [vmem:[%s5978 + $0x10] sm:$0xf]
    %v5984 = vld [vmem:[%s5978 + $0x14] sm:$0xf]
    %v5985 = vld [vmem:[%s5978 + $0x18] sm:$0xf]
    %v5986 = vld [vmem:[%s5978 + $0x1c] sm:$0xf]
    %v5987 = vld [vmem:[%s5978 + $0x20] sm:$0xf]
    %v5988 = vld [vmem:[%s5978 + $0x24] sm:$0xf]
    %v5989 = vld [vmem:[%s5978 + $0x28] sm:$0xf]
    %v5990 = vld [vmem:[%s5978 + $0x2c] sm:$0xf]
    %v5991 = vld [vmem:[%s5978 + $0x30] sm:$0xf]
    %v5992 = vld [vmem:[%s5978 + $0x34] sm:$0xf]
    %v5993 = vld [vmem:[%s5978 + $0x38] sm:$0xf]
    %v5994 = vld [vmem:[%s5978 + $0x3c] sm:$0xf]
    %v5995 = vld [vmem:[%s5978 + $0x40] sm:$0xf]
    %v5996 = vld [vmem:[%s5978 + $0x44] sm:$0xf]
    %v5997 = vld [vmem:[%s5978 + $0x48] sm:$0xf]
    %v5998 = vld [vmem:[%s5978 + $0x4c] sm:$0xf]
    %v5999 = vld [vmem:[%s5978 + $0x50] sm:$0xf]
    %v6000 = vld [vmem:[%s5978 + $0x54] sm:$0xf]
    %v6001 = vld [vmem:[%s5978 + $0x58] sm:$0xf]
    %v6002 = vld [vmem:[%s5978 + $0x5c] sm:$0xf]
    %v6027 = vunpack.c.l.b16 %v5979
    %v6028 = vunpack.c.l.b16 %v5980
    %v6029 = vunpack.c.l.b16 %v5981
    %v6030 = vunpack.c.l.b16 %v5982
    %v6031 = vunpack.c.l.b16 %v5983
    %v6032 = vunpack.c.l.b16 %v5984
    %v6033 = vunpack.c.l.b16 %v5985
    %v6034 = vunpack.c.l.b16 %v5986
    %v6035 = vunpack.c.l.b16 %v5987
    %v6036 = vunpack.c.l.b16 %v5988
    %v6037 = vunpack.c.l.b16 %v5989
    %v6038 = vunpack.c.l.b16 %v5990
    %v6039 = vunpack.c.l.b16 %v5991
    %v6040 = vunpack.c.l.b16 %v5992
    %v6041 = vunpack.c.l.b16 %v5993
    %v6042 = vunpack.c.l.b16 %v5994
    %v6043 = vunpack.c.l.b16 %v5995
    %v6044 = vunpack.c.l.b16 %v5996
    %v6045 = vunpack.c.l.b16 %v5997
    %v6046 = vunpack.c.l.b16 %v5998
    %v6047 = vunpack.c.l.b16 %v5999
    %v6048 = vunpack.c.l.b16 %v6000
    %v6049 = vunpack.c.l.b16 %v6001
    %v6050 = vunpack.c.l.b16 %v6002
    %v6051 = vpack.c.b16 %v6028, %v6027
    %v6052 = vpack.c.b16 %v6030, %v6029
    %v6053 = vpack.c.b16 %v6032, %v6031
    %v6054 = vpack.c.b16 %v6034, %v6033
    %v6055 = vpack.c.b16 %v6036, %v6035
    %v6056 = vpack.c.b16 %v6038, %v6037
    %v6057 = vpack.c.b16 %v6040, %v6039
    %v6058 = vpack.c.b16 %v6042, %v6041
    %v6059 = vpack.c.b16 %v6044, %v6043
    %v6060 = vpack.c.b16 %v6046, %v6045
    %v6061 = vpack.c.b16 %v6048, %v6047
    %v6062 = vpack.c.b16 %v6050, %v6049
    %v6076 = vsel %vm87, %v5977, 0
    %6078 = vmatpush.bf16.msra.mxu0 %v6058
    %6079 = vmatpush.bf16.msra.mxu0 %v6057
    %6080 = vmatpush.bf16.msra.mxu0 %v6056
    %6081 = vmatpush.bf16.msra.mxu0 %v6055
    %6082 = vmatpush.bf16.msra.mxu0 %v6054
    %6083 = vmatpush.bf16.msra.mxu0 %v6053
    %6084 = vmatpush.bf16.msra.mxu0 %v6052
    %6085 = vmatpush.bf16.msra.mxu0 %v6051
    %6086 = vmatmul.bf16.gmra.mxu0 %v5976
    %v6087 = vpop.f32.mrf.mxu0
    %v6088 = vadd.f32 0.0, %v6087
    %v6089 = vpop.f32.mrf.mxu0
    %6090 = vdwg.mxu0
    %6091 = vmatpush.bf16.msra.mxu0 0
    %6092 = vmatpush.bf16.msra.mxu0 0
    %6093 = vmatpush.bf16.msra.mxu0 0
    %6094 = vmatpush.bf16.msra.mxu0 0
    %6095 = vmatpush.bf16.msra.mxu0 %v6062
    %6096 = vmatpush.bf16.msra.mxu0 %v6061
    %6097 = vmatpush.bf16.msra.mxu0 %v6060
    %6098 = vmatpush.bf16.msra.mxu0 %v6059
    %6099 = vmatmul.bf16.gmra.mxu0 %v6076
    %v6100 = vpop.f32.mrf.mxu0
    %v6101 = vadd.f32 %v6088, %v6100
    %v6102 = vpop.f32.mrf.mxu0
    %6103 = vdwg.mxu0
    %v6128 = vunpack.c.l.b16 %v5921
    %v6129 = vunpack.c.l.b16 %v5922
    %v6130 = vunpack.c.l.b16 %v5923
    %v6131 = vunpack.c.l.b16 %v5924
    %v6132 = vunpack.c.l.b16 %v5925
    %v6133 = vunpack.c.l.b16 %v5926
    %v6134 = vunpack.c.l.b16 %v5927
    %v6135 = vunpack.c.l.b16 %v5928
    %v6136 = vunpack.c.l.b16 %v5929
    %v6137 = vunpack.c.l.b16 %v5930
    %v6138 = vunpack.c.l.b16 %v5931
    %v6139 = vunpack.c.l.b16 %v5932
    %v6140 = vunpack.c.l.b16 %v5933
    %v6141 = vunpack.c.l.b16 %v5934
    %v6142 = vunpack.c.l.b16 %v5935
    %v6143 = vunpack.c.l.b16 %v5936
    %v6144 = vunpack.c.l.b16 %v5937
    %v6145 = vunpack.c.l.b16 %v5938
    %v6146 = vunpack.c.l.b16 %v5939
    %v6147 = vunpack.c.l.b16 %v5940
    %v6148 = vunpack.c.l.b16 %v5941
    %v6149 = vunpack.c.l.b16 %v5942
    %v6150 = vunpack.c.l.b16 %v5943
    %v6151 = vunpack.c.l.b16 %v5944
    %v6152 = vpack.c.b16 %v6129, %v6128
    %v6153 = vpack.c.b16 %v6131, %v6130
    %v6154 = vpack.c.b16 %v6133, %v6132
    %v6155 = vpack.c.b16 %v6135, %v6134
    %v6156 = vpack.c.b16 %v6137, %v6136
    %v6157 = vpack.c.b16 %v6139, %v6138
    %v6158 = vpack.c.b16 %v6141, %v6140
    %v6159 = vpack.c.b16 %v6143, %v6142
    %v6160 = vpack.c.b16 %v6145, %v6144
    %v6161 = vpack.c.b16 %v6147, %v6146
    %v6162 = vpack.c.b16 %v6149, %v6148
    %v6163 = vpack.c.b16 %v6151, %v6150
    %v6177 = vsel %vm87, %v5920, 0
    %6179 = vmatpush.bf16.msra.mxu0 %v6159
    %6180 = vmatpush.bf16.msra.mxu0 %v6158
    %6181 = vmatpush.bf16.msra.mxu0 %v6157
    %6182 = vmatpush.bf16.msra.mxu0 %v6156
    %6183 = vmatpush.bf16.msra.mxu0 %v6155
    %6184 = vmatpush.bf16.msra.mxu0 %v6154
    %6185 = vmatpush.bf16.msra.mxu0 %v6153
    %6186 = vmatpush.bf16.msra.mxu0 %v6152
    %6187 = vmatmul.bf16.gmra.mxu0 %v5919
    %v6188 = vpop.f32.mrf.mxu0
    %v6189 = vadd.f32 %v6101, %v6188
    %v6190 = vpop.f32.mrf.mxu0
    %6191 = vdwg.mxu0
    %6192 = vmatpush.bf16.msra.mxu0 0
    %6193 = vmatpush.bf16.msra.mxu0 0
    %6194 = vmatpush.bf16.msra.mxu0 0
    %6195 = vmatpush.bf16.msra.mxu0 0
    %6196 = vmatpush.bf16.msra.mxu0 %v6163
    %6197 = vmatpush.bf16.msra.mxu0 %v6162
    %6198 = vmatpush.bf16.msra.mxu0 %v6161
    %6199 = vmatpush.bf16.msra.mxu0 %v6160
    %6200 = vmatmul.bf16.gmra.mxu0 %v6177
    %v6201 = vpop.f32.mrf.mxu0
    %v6202 = vadd.f32 %v6189, %v6201
    %v6203 = vpop.f32.mrf.mxu0
    %6204 = vdwg.mxu0
    %s6205 = scalar_lea.vmem %s10, 2
    %v6206 = vld [vmem:[%s6205] sm:$0x1]
    %v6208 = vsel %vm5882, %v6206, 0
    %6210 = vmatpush.bf16.msra.mxu0 0
    %6211 = vmatpush.bf16.msra.mxu0 0
    %6212 = vmatpush.bf16.msra.mxu0 0
    %6213 = vmatpush.bf16.msra.mxu0 0
    %6214 = vmatpush.bf16.msra.mxu0 0
    %6215 = vmatpush.bf16.msra.mxu0 0
    %6216 = vmatpush.bf16.msra.mxu0 0
    %6217 = vmatpush.bf16.msra.mxu0 %v5888
    %6218 = vmatmul.bf16.gmra.mxu0 %v6208
    %v6219 = vpop.f32.mrf.mxu0
    %v6220 = vadd.f32 0.0, %v6219
    %v6221 = vpop.f32.mrf.mxu0
    %6222 = vdwg.mxu0
    %6223 = vmatpush.bf16.msra.mxu0 0
    %6224 = vmatpush.bf16.msra.mxu0 0
    %6225 = vmatpush.bf16.msra.mxu0 0
    %6226 = vmatpush.bf16.msra.mxu0 0
    %6227 = vmatpush.bf16.msra.mxu0 0
    %6228 = vmatpush.bf16.msra.mxu0 0
    %6229 = vmatpush.bf16.msra.mxu0 0
    %6230 = vmatpush.bf16.msra.mxu0 %v5891
    %6231 = vmatmul.bf16.gmra.mxu0 %v6208
    %v6232 = vpop.f32.mrf.mxu0
    %v6233 = vadd.f32 0.0, %v6232
    %v6234 = vpop.f32.mrf.mxu0
    %6235 = vdwg.mxu0
    %v6236 = vpack.c.bf16 %v6220, %v6220
    %v6237 = vpack.c.bf16 %v6233, %v6233
    %s6238 = scalar_lea.vmem %s11, 192
    %v6239 = vld [vmem:[%s6238] sm:$0xf]
    %v6240 = vld [vmem:[%s6238 + $0x4] sm:$0xf]
    %v6241 = vld [vmem:[%s6238 + $0x8] sm:$0xf]
    %v6242 = vld [vmem:[%s6238 + $0xc] sm:$0xf]
    %v6243 = vld [vmem:[%s6238 + $0x10] sm:$0xf]
    %v6244 = vld [vmem:[%s6238 + $0x14] sm:$0xf]
    %v6245 = vld [vmem:[%s6238 + $0x18] sm:$0xf]
    %v6246 = vld [vmem:[%s6238 + $0x1c] sm:$0xf]
    %v6247 = vld [vmem:[%s6238 + $0x20] sm:$0xf]
    %v6248 = vld [vmem:[%s6238 + $0x24] sm:$0xf]
    %v6249 = vld [vmem:[%s6238 + $0x28] sm:$0xf]
    %v6250 = vld [vmem:[%s6238 + $0x2c] sm:$0xf]
    %v6251 = vld [vmem:[%s6238 + $0x30] sm:$0xf]
    %v6252 = vld [vmem:[%s6238 + $0x34] sm:$0xf]
    %v6253 = vld [vmem:[%s6238 + $0x38] sm:$0xf]
    %v6254 = vld [vmem:[%s6238 + $0x3c] sm:$0xf]
    %v6255 = vld [vmem:[%s6238 + $0x40] sm:$0xf]
    %v6256 = vld [vmem:[%s6238 + $0x44] sm:$0xf]
    %v6257 = vld [vmem:[%s6238 + $0x48] sm:$0xf]
    %v6258 = vld [vmem:[%s6238 + $0x4c] sm:$0xf]
    %v6259 = vld [vmem:[%s6238 + $0x50] sm:$0xf]
    %v6260 = vld [vmem:[%s6238 + $0x54] sm:$0xf]
    %v6261 = vld [vmem:[%s6238 + $0x58] sm:$0xf]
    %v6262 = vld [vmem:[%s6238 + $0x5c] sm:$0xf]
    %v6287 = vunpack.c.l.b16 %v6239
    %v6288 = vunpack.c.l.b16 %v6240
    %v6289 = vunpack.c.l.b16 %v6241
    %v6290 = vunpack.c.l.b16 %v6242
    %v6291 = vunpack.c.l.b16 %v6243
    %v6292 = vunpack.c.l.b16 %v6244
    %v6293 = vunpack.c.l.b16 %v6245
    %v6294 = vunpack.c.l.b16 %v6246
    %v6295 = vunpack.c.l.b16 %v6247
    %v6296 = vunpack.c.l.b16 %v6248
    %v6297 = vunpack.c.l.b16 %v6249
    %v6298 = vunpack.c.l.b16 %v6250
    %v6299 = vunpack.c.l.b16 %v6251
    %v6300 = vunpack.c.l.b16 %v6252
    %v6301 = vunpack.c.l.b16 %v6253
    %v6302 = vunpack.c.l.b16 %v6254
    %v6303 = vunpack.c.l.b16 %v6255
    %v6304 = vunpack.c.l.b16 %v6256
    %v6305 = vunpack.c.l.b16 %v6257
    %v6306 = vunpack.c.l.b16 %v6258
    %v6307 = vunpack.c.l.b16 %v6259
    %v6308 = vunpack.c.l.b16 %v6260
    %v6309 = vunpack.c.l.b16 %v6261
    %v6310 = vunpack.c.l.b16 %v6262
    %v6311 = vpack.c.b16 %v6288, %v6287
    %v6312 = vpack.c.b16 %v6290, %v6289
    %v6313 = vpack.c.b16 %v6292, %v6291
    %v6314 = vpack.c.b16 %v6294, %v6293
    %v6315 = vpack.c.b16 %v6296, %v6295
    %v6316 = vpack.c.b16 %v6298, %v6297
    %v6317 = vpack.c.b16 %v6300, %v6299
    %v6318 = vpack.c.b16 %v6302, %v6301
    %v6319 = vpack.c.b16 %v6304, %v6303
    %v6320 = vpack.c.b16 %v6306, %v6305
    %v6321 = vpack.c.b16 %v6308, %v6307
    %v6322 = vpack.c.b16 %v6310, %v6309
    %v6336 = vsel %vm87, %v6237, 0
    %6338 = vmatpush.bf16.msra.mxu0 %v6318
    %6339 = vmatpush.bf16.msra.mxu0 %v6317
    %6340 = vmatpush.bf16.msra.mxu0 %v6316
    %6341 = vmatpush.bf16.msra.mxu0 %v6315
    %6342 = vmatpush.bf16.msra.mxu0 %v6314
    %6343 = vmatpush.bf16.msra.mxu0 %v6313
    %6344 = vmatpush.bf16.msra.mxu0 %v6312
    %6345 = vmatpush.bf16.msra.mxu0 %v6311
    %6346 = vmatmul.bf16.gmra.mxu0 %v6236
    %v6347 = vpop.f32.mrf.mxu0
    %v6348 = vadd.f32 0.0, %v6347
    %v6349 = vpop.f32.mrf.mxu0
    %6350 = vdwg.mxu0
    %6351 = vmatpush.bf16.msra.mxu0 0
    %6352 = vmatpush.bf16.msra.mxu0 0
    %6353 = vmatpush.bf16.msra.mxu0 0
    %6354 = vmatpush.bf16.msra.mxu0 0
    %6355 = vmatpush.bf16.msra.mxu0 %v6322
    %6356 = vmatpush.bf16.msra.mxu0 %v6321
    %6357 = vmatpush.bf16.msra.mxu0 %v6320
    %6358 = vmatpush.bf16.msra.mxu0 %v6319
    %6359 = vmatmul.bf16.gmra.mxu0 %v6336
    %v6360 = vpop.f32.mrf.mxu0
    %v6361 = vadd.f32 %v6348, %v6360
    %v6362 = vpop.f32.mrf.mxu0
    %6363 = vdwg.mxu0
    %v6364 = vadd.f32 %v6202, %v6361
    %v6365 = vld [vmem:[%s12] sm:$0x1]
    %v6367 = vperm.slane %v6365, 0
    %v6369 = vadd.f32 %v6364, %v6367
    %vm6370 = vcmp.ge.f32.partialorder %v6369, 0.0
    %v6371 = vmul.f32 %v6369, 0.1
    %v6372 = vsel %vm6370, %v6369, %v6371
    %s6373 = scalar_lea.vmem %s12, 1
    %v6374 = vld [vmem:[%s6373] sm:$0x1]
    %v6376 = vperm.slane %v6374, 0
    %v6378 = vmul.f32 %v6372, %v6376
    %s6379 = scalar_lea.vmem %s12, 2
    %v6380 = vld [vmem:[%s6379] sm:$0x1]
    %v6382 = vperm.slane %v6380, 0
    %v6384 = vadd.f32 %v6378, %v6382
    %v6385 = vpack.c.bf16 %v6384, %v6384
    %v6386 = vld [vmem:[%s13] sm:$0x1]
    %vm6387 = vcmask 15360
    %v6389 = vsel %vm6387, %v6386, 0
    %vm6391 = vcmask 1040384
    %v6393 = vsel %vm6391, %v6385, 0
    %6395 = vmatpush.bf16.msra.mxu0 0
    %6396 = vmatpush.bf16.msra.mxu0 0
    %6397 = vmatpush.bf16.msra.mxu0 0
    %6398 = vmatpush.bf16.msra.mxu0 0
    %6399 = vmatpush.bf16.msra.mxu0 0
    %6400 = vmatpush.bf16.msra.mxu0 0
    %6401 = vmatpush.bf16.msra.mxu0 0
    %6402 = vmatpush.bf16.msra.mxu0 %v6393
    %6403 = vmatmul.bf16.gmra.mxu0 %v6389
    %v6404 = vpop.f32.mrf.mxu0
    %v6405 = vadd.f32 0.0, %v6404
    %v6406 = vpop.f32.mrf.mxu0
    %6407 = vdwg.mxu0
    %v6408 = vpack.c.bf16 %v6405, %v6405
    %v6409 = vld [vmem:[%s14] sm:$0xff]
    %v6410 = vld [vmem:[%s14 + $0x8] sm:$0xff]
    %v6411 = vld [vmem:[%s14 + $0x10] sm:$0xff]
    %v6412 = vld [vmem:[%s14 + $0x18] sm:$0xff]
    %v6413 = vld [vmem:[%s14 + $0x20] sm:$0xff]
    %v6414 = vld [vmem:[%s14 + $0x28] sm:$0xff]
    %v6415 = vld [vmem:[%s14 + $0x30] sm:$0xff]
    %v6416 = vld [vmem:[%s14 + $0x38] sm:$0xff]
    %v6417 = vld [vmem:[%s14 + $0x40] sm:$0xff]
    %v6418 = vld [vmem:[%s14 + $0x48] sm:$0xff]
    %v6419 = vld [vmem:[%s14 + $0x50] sm:$0xff]
    %v6420 = vld [vmem:[%s14 + $0x58] sm:$0xff]
    %v6421 = vld [vmem:[%s14 + $0x60] sm:$0xff]
    %v6422 = vld [vmem:[%s14 + $0x68] sm:$0xff]
    %v6423 = vld [vmem:[%s14 + $0x70] sm:$0xff]
    %v6424 = vld [vmem:[%s14 + $0x78] sm:$0xff]
    %v6425 = vld [vmem:[%s15] sm:$0xf]
    %v6427 = vperm.slane %v6425, 0
    %v6428 = vperm.slane %v6425, 1
    %v6429 = vperm.slane %v6425, 2
    %v6430 = vperm.slane %v6425, 3
    %v6451 = vunpack.c.l.b16 %v6409
    %v6452 = vunpack.c.h.b16 %v6409
    %v6453 = vunpack.c.l.b16 %v6410
    %v6454 = vunpack.c.h.b16 %v6410
    %v6455 = vunpack.c.l.b16 %v6411
    %v6456 = vunpack.c.h.b16 %v6411
    %v6457 = vunpack.c.l.b16 %v6412
    %v6458 = vunpack.c.h.b16 %v6412
    %v6459 = vunpack.c.l.b16 %v6413
    %v6460 = vunpack.c.h.b16 %v6413
    %v6461 = vunpack.c.l.b16 %v6414
    %v6462 = vunpack.c.h.b16 %v6414
    %v6463 = vunpack.c.l.b16 %v6415
    %v6464 = vunpack.c.h.b16 %v6415
    %v6465 = vunpack.c.l.b16 %v6416
    %v6466 = vunpack.c.h.b16 %v6416
    %v6467 = vunpack.c.l.b16 %v6417
    %v6468 = vunpack.c.h.b16 %v6417
    %v6469 = vunpack.c.l.b16 %v6418
    %v6470 = vunpack.c.h.b16 %v6418
    %v6471 = vunpack.c.l.b16 %v6419
    %v6472 = vunpack.c.h.b16 %v6419
    %v6473 = vunpack.c.l.b16 %v6420
    %v6474 = vunpack.c.h.b16 %v6420
    %v6475 = vunpack.c.l.b16 %v6421
    %v6476 = vunpack.c.h.b16 %v6421
    %v6477 = vunpack.c.l.b16 %v6422
    %v6478 = vunpack.c.h.b16 %v6422
    %v6479 = vunpack.c.l.b16 %v6423
    %v6480 = vunpack.c.h.b16 %v6423
    %v6481 = vunpack.c.l.b16 %v6424
    %v6482 = vunpack.c.h.b16 %v6424
    %v6483 = vpack.c.b16 %v6455, %v6451
    %v6484 = vpack.c.b16 %v6456, %v6452
    %v6485 = vpack.c.b16 %v6457, %v6453
    %v6486 = vpack.c.b16 %v6458, %v6454
    %v6487 = vpack.c.b16 %v6463, %v6459
    %v6488 = vpack.c.b16 %v6464, %v6460
    %v6489 = vpack.c.b16 %v6465, %v6461
    %v6490 = vpack.c.b16 %v6466, %v6462
    %v6491 = vpack.c.b16 %v6471, %v6467
    %v6492 = vpack.c.b16 %v6472, %v6468
    %v6493 = vpack.c.b16 %v6473, %v6469
    %v6494 = vpack.c.b16 %v6474, %v6470
    %v6495 = vpack.c.b16 %v6479, %v6475
    %v6496 = vpack.c.b16 %v6480, %v6476
    %v6497 = vpack.c.b16 %v6481, %v6477
    %v6498 = vpack.c.b16 %v6482, %v6478
    %v6516 = vsel %vm87, %v6408, 0
    %6518 = vmatpush.bf16.msra.mxu0 0
    %6519 = vmatpush.bf16.msra.mxu0 0
    %6520 = vmatpush.bf16.msra.mxu0 0
    %6521 = vmatpush.bf16.msra.mxu0 0
    %6522 = vmatpush.bf16.msra.mxu0 %v6495
    %6523 = vmatpush.bf16.msra.mxu0 %v6491
    %6524 = vmatpush.bf16.msra.mxu0 %v6487
    %6525 = vmatpush.bf16.msra.mxu0 %v6483
    %6526 = vmatmul.bf16.gmra.mxu0 %v6516
    %v6527 = vpop.f32.mrf.mxu0
    %v6528 = vadd.f32 %v6427, %v6527
    %v6529 = vpop.f32.mrf.mxu0
    %6530 = vdwg.mxu0
    %6531 = vmatpush.bf16.msra.mxu0 0
    %6532 = vmatpush.bf16.msra.mxu0 0
    %6533 = vmatpush.bf16.msra.mxu0 0
    %6534 = vmatpush.bf16.msra.mxu0 0
    %6535 = vmatpush.bf16.msra.mxu0 %v6496
    %6536 = vmatpush.bf16.msra.mxu0 %v6492
    %6537 = vmatpush.bf16.msra.mxu0 %v6488
    %6538 = vmatpush.bf16.msra.mxu0 %v6484
    %6539 = vmatmul.bf16.gmra.mxu0 %v6516
    %v6540 = vpop.f32.mrf.mxu0
    %v6541 = vadd.f32 %v6428, %v6540
    %v6542 = vpop.f32.mrf.mxu0
    %6543 = vdwg.mxu0
    %6544 = vmatpush.bf16.msra.mxu0 0
    %6545 = vmatpush.bf16.msra.mxu0 0
    %6546 = vmatpush.bf16.msra.mxu0 0
    %6547 = vmatpush.bf16.msra.mxu0 0
    %6548 = vmatpush.bf16.msra.mxu0 %v6497
    %6549 = vmatpush.bf16.msra.mxu0 %v6493
    %6550 = vmatpush.bf16.msra.mxu0 %v6489
    %6551 = vmatpush.bf16.msra.mxu0 %v6485
    %6552 = vmatmul.bf16.gmra.mxu0 %v6516
    %v6553 = vpop.f32.mrf.mxu0
    %v6554 = vadd.f32 %v6429, %v6553
    %v6555 = vpop.f32.mrf.mxu0
    %6556 = vdwg.mxu0
    %6557 = vmatpush.bf16.msra.mxu0 0
    %6558 = vmatpush.bf16.msra.mxu0 0
    %6559 = vmatpush.bf16.msra.mxu0 0
    %6560 = vmatpush.bf16.msra.mxu0 0
    %6561 = vmatpush.bf16.msra.mxu0 %v6498
    %6562 = vmatpush.bf16.msra.mxu0 %v6494
    %6563 = vmatpush.bf16.msra.mxu0 %v6490
    %6564 = vmatpush.bf16.msra.mxu0 %v6486
    %6565 = vmatmul.bf16.gmra.mxu0 %v6516
    %v6566 = vpop.f32.mrf.mxu0
    %v6567 = vadd.f32 %v6430, %v6566
    %v6568 = vpop.f32.mrf.mxu0
    %6569 = vdwg.mxu0
    %vm6570 = vcmp.ge.f32.partialorder %v6528, 0.0
    %vm6571 = vcmp.ge.f32.partialorder %v6541, 0.0
    %vm6572 = vcmp.ge.f32.partialorder %v6554, 0.0
    %vm6573 = vcmp.ge.f32.partialorder %v6567, 0.0
    %v6574 = vmul.f32 %v6528, 0.1
    %v6575 = vmul.f32 %v6541, 0.1
    %v6576 = vmul.f32 %v6554, 0.1
    %v6577 = vmul.f32 %v6567, 0.1
    %v6578 = vsel %vm6570, %v6528, %v6574
    %v6579 = vsel %vm6571, %v6541, %v6575
    %v6580 = vsel %vm6572, %v6554, %v6576
    %v6581 = vsel %vm6573, %v6567, %v6577
    %v6582 = vpack.c.bf16 %v6578, %v6578
    %v6583 = vpack.c.bf16 %v6579, %v6579
    %v6584 = vpack.c.bf16 %v6580, %v6580
    %v6585 = vpack.c.bf16 %v6581, %v6581
    %v6586 = vld [vmem:[%s16] sm:$0xf]
    %v6587 = vld [vmem:[%s16 + $0x4] sm:$0xf]
    %v6588 = vld [vmem:[%s16 + $0x8] sm:$0xf]
    %v6589 = vld [vmem:[%s16 + $0xc] sm:$0xf]
    %v6590 = vld [vmem:[%s16 + $0x10] sm:$0xf]
    %v6591 = vld [vmem:[%s16 + $0x14] sm:$0xf]
    %v6592 = vld [vmem:[%s16 + $0x18] sm:$0xf]
    %v6593 = vld [vmem:[%s16 + $0x1c] sm:$0xf]
    %v6594 = vld [vmem:[%s16 + $0x20] sm:$0xf]
    %v6595 = vld [vmem:[%s16 + $0x24] sm:$0xf]
    %v6596 = vld [vmem:[%s16 + $0x28] sm:$0xf]
    %v6597 = vld [vmem:[%s16 + $0x2c] sm:$0xf]
    %v6598 = vld [vmem:[%s16 + $0x30] sm:$0xf]
    %v6599 = vld [vmem:[%s16 + $0x34] sm:$0xf]
    %v6600 = vld [vmem:[%s16 + $0x38] sm:$0xf]
    %v6601 = vld [vmem:[%s16 + $0x3c] sm:$0xf]
    %v6602 = vld [vmem:[%s16 + $0x40] sm:$0xf]
    %v6603 = vld [vmem:[%s16 + $0x44] sm:$0xf]
    %v6604 = vld [vmem:[%s16 + $0x48] sm:$0xf]
    %v6605 = vld [vmem:[%s16 + $0x4c] sm:$0xf]
    %v6606 = vld [vmem:[%s16 + $0x50] sm:$0xf]
    %v6607 = vld [vmem:[%s16 + $0x54] sm:$0xf]
    %v6608 = vld [vmem:[%s16 + $0x58] sm:$0xf]
    %v6609 = vld [vmem:[%s16 + $0x5c] sm:$0xf]
    %v6610 = vld [vmem:[%s16 + $0x60] sm:$0xf]
    %v6611 = vld [vmem:[%s16 + $0x64] sm:$0xf]
    %v6612 = vld [vmem:[%s16 + $0x68] sm:$0xf]
    %v6613 = vld [vmem:[%s16 + $0x6c] sm:$0xf]
    %v6614 = vld [vmem:[%s16 + $0x70] sm:$0xf]
    %v6615 = vld [vmem:[%s16 + $0x74] sm:$0xf]
    %v6616 = vld [vmem:[%s16 + $0x78] sm:$0xf]
    %v6617 = vld [vmem:[%s16 + $0x7c] sm:$0xf]
    %v6618 = vld [vmem:[%s16 + $0x80] sm:$0xf]
    %v6619 = vld [vmem:[%s16 + $0x84] sm:$0xf]
    %v6620 = vld [vmem:[%s16 + $0x88] sm:$0xf]
    %v6621 = vld [vmem:[%s16 + $0x8c] sm:$0xf]
    %v6622 = vld [vmem:[%s16 + $0x90] sm:$0xf]
    %v6623 = vld [vmem:[%s16 + $0x94] sm:$0xf]
    %v6624 = vld [vmem:[%s16 + $0x98] sm:$0xf]
    %v6625 = vld [vmem:[%s16 + $0x9c] sm:$0xf]
    %v6626 = vld [vmem:[%s16 + $0xa0] sm:$0xf]
    %v6627 = vld [vmem:[%s16 + $0xa4] sm:$0xf]
    %v6628 = vld [vmem:[%s16 + $0xa8] sm:$0xf]
    %v6629 = vld [vmem:[%s16 + $0xac] sm:$0xf]
    %v6630 = vld [vmem:[%s16 + $0xb0] sm:$0xf]
    %v6631 = vld [vmem:[%s16 + $0xb4] sm:$0xf]
    %v6632 = vld [vmem:[%s16 + $0xb8] sm:$0xf]
    %v6633 = vld [vmem:[%s16 + $0xbc] sm:$0xf]
    %v6634 = vld [vmem:[%s16 + $0xc0] sm:$0xf]
    %v6635 = vld [vmem:[%s16 + $0xc4] sm:$0xf]
    %v6636 = vld [vmem:[%s16 + $0xc8] sm:$0xf]
    %v6637 = vld [vmem:[%s16 + $0xcc] sm:$0xf]
    %v6638 = vld [vmem:[%s16 + $0xd0] sm:$0xf]
    %v6639 = vld [vmem:[%s16 + $0xd4] sm:$0xf]
    %v6640 = vld [vmem:[%s16 + $0xd8] sm:$0xf]
    %v6641 = vld [vmem:[%s16 + $0xdc] sm:$0xf]
    %v6642 = vld [vmem:[%s16 + $0xe0] sm:$0xf]
    %v6643 = vld [vmem:[%s16 + $0xe4] sm:$0xf]
    %v6644 = vld [vmem:[%s16 + $0xe8] sm:$0xf]
    %v6645 = vld [vmem:[%s16 + $0xec] sm:$0xf]
    %v6646 = vld [vmem:[%s16 + $0xf0] sm:$0xf]
    %v6647 = vld [vmem:[%s16 + $0xf4] sm:$0xf]
    %v6648 = vld [vmem:[%s16 + $0xf8] sm:$0xf]
    %v6649 = vld [vmem:[%s16 + $0xfc] sm:$0xf]
    %v6650 = vld [vmem:[%s17] sm:$0x1]
    %v6652 = vperm.slane %v6650, 0
    %v6718 = vunpack.c.l.b16 %v6586
    %v6719 = vunpack.c.l.b16 %v6587
    %v6720 = vunpack.c.l.b16 %v6588
    %v6721 = vunpack.c.l.b16 %v6589
    %v6722 = vunpack.c.l.b16 %v6590
    %v6723 = vunpack.c.l.b16 %v6591
    %v6724 = vunpack.c.l.b16 %v6592
    %v6725 = vunpack.c.l.b16 %v6593
    %v6726 = vunpack.c.l.b16 %v6594
    %v6727 = vunpack.c.l.b16 %v6595
    %v6728 = vunpack.c.l.b16 %v6596
    %v6729 = vunpack.c.l.b16 %v6597
    %v6730 = vunpack.c.l.b16 %v6598
    %v6731 = vunpack.c.l.b16 %v6599
    %v6732 = vunpack.c.l.b16 %v6600
    %v6733 = vunpack.c.l.b16 %v6601
    %v6734 = vunpack.c.l.b16 %v6602
    %v6735 = vunpack.c.l.b16 %v6603
    %v6736 = vunpack.c.l.b16 %v6604
    %v6737 = vunpack.c.l.b16 %v6605
    %v6738 = vunpack.c.l.b16 %v6606
    %v6739 = vunpack.c.l.b16 %v6607
    %v6740 = vunpack.c.l.b16 %v6608
    %v6741 = vunpack.c.l.b16 %v6609
    %v6742 = vunpack.c.l.b16 %v6610
    %v6743 = vunpack.c.l.b16 %v6611
    %v6744 = vunpack.c.l.b16 %v6612
    %v6745 = vunpack.c.l.b16 %v6613
    %v6746 = vunpack.c.l.b16 %v6614
    %v6747 = vunpack.c.l.b16 %v6615
    %v6748 = vunpack.c.l.b16 %v6616
    %v6749 = vunpack.c.l.b16 %v6617
    %v6750 = vunpack.c.l.b16 %v6618
    %v6751 = vunpack.c.l.b16 %v6619
    %v6752 = vunpack.c.l.b16 %v6620
    %v6753 = vunpack.c.l.b16 %v6621
    %v6754 = vunpack.c.l.b16 %v6622
    %v6755 = vunpack.c.l.b16 %v6623
    %v6756 = vunpack.c.l.b16 %v6624
    %v6757 = vunpack.c.l.b16 %v6625
    %v6758 = vunpack.c.l.b16 %v6626
    %v6759 = vunpack.c.l.b16 %v6627
    %v6760 = vunpack.c.l.b16 %v6628
    %v6761 = vunpack.c.l.b16 %v6629
    %v6762 = vunpack.c.l.b16 %v6630
    %v6763 = vunpack.c.l.b16 %v6631
    %v6764 = vunpack.c.l.b16 %v6632
    %v6765 = vunpack.c.l.b16 %v6633
    %v6766 = vunpack.c.l.b16 %v6634
    %v6767 = vunpack.c.l.b16 %v6635
    %v6768 = vunpack.c.l.b16 %v6636
    %v6769 = vunpack.c.l.b16 %v6637
    %v6770 = vunpack.c.l.b16 %v6638
    %v6771 = vunpack.c.l.b16 %v6639
    %v6772 = vunpack.c.l.b16 %v6640
    %v6773 = vunpack.c.l.b16 %v6641
    %v6774 = vunpack.c.l.b16 %v6642
    %v6775 = vunpack.c.l.b16 %v6643
    %v6776 = vunpack.c.l.b16 %v6644
    %v6777 = vunpack.c.l.b16 %v6645
    %v6778 = vunpack.c.l.b16 %v6646
    %v6779 = vunpack.c.l.b16 %v6647
    %v6780 = vunpack.c.l.b16 %v6648
    %v6781 = vunpack.c.l.b16 %v6649
    %v6782 = vpack.c.b16 %v6719, %v6718
    %v6783 = vpack.c.b16 %v6721, %v6720
    %v6784 = vpack.c.b16 %v6723, %v6722
    %v6785 = vpack.c.b16 %v6725, %v6724
    %v6786 = vpack.c.b16 %v6727, %v6726
    %v6787 = vpack.c.b16 %v6729, %v6728
    %v6788 = vpack.c.b16 %v6731, %v6730
    %v6789 = vpack.c.b16 %v6733, %v6732
    %v6790 = vpack.c.b16 %v6735, %v6734
    %v6791 = vpack.c.b16 %v6737, %v6736
    %v6792 = vpack.c.b16 %v6739, %v6738
    %v6793 = vpack.c.b16 %v6741, %v6740
    %v6794 = vpack.c.b16 %v6743, %v6742
    %v6795 = vpack.c.b16 %v6745, %v6744
    %v6796 = vpack.c.b16 %v6747, %v6746
    %v6797 = vpack.c.b16 %v6749, %v6748
    %v6798 = vpack.c.b16 %v6751, %v6750
    %v6799 = vpack.c.b16 %v6753, %v6752
    %v6800 = vpack.c.b16 %v6755, %v6754
    %v6801 = vpack.c.b16 %v6757, %v6756
    %v6802 = vpack.c.b16 %v6759, %v6758
    %v6803 = vpack.c.b16 %v6761, %v6760
    %v6804 = vpack.c.b16 %v6763, %v6762
    %v6805 = vpack.c.b16 %v6765, %v6764
    %v6806 = vpack.c.b16 %v6767, %v6766
    %v6807 = vpack.c.b16 %v6769, %v6768
    %v6808 = vpack.c.b16 %v6771, %v6770
    %v6809 = vpack.c.b16 %v6773, %v6772
    %v6810 = vpack.c.b16 %v6775, %v6774
    %v6811 = vpack.c.b16 %v6777, %v6776
    %v6812 = vpack.c.b16 %v6779, %v6778
    %v6813 = vpack.c.b16 %v6781, %v6780
    %6846 = vmatpush.bf16.msra.mxu0 %v6789
    %6847 = vmatpush.bf16.msra.mxu0 %v6788
    %6848 = vmatpush.bf16.msra.mxu0 %v6787
    %6849 = vmatpush.bf16.msra.mxu0 %v6786
    %6850 = vmatpush.bf16.msra.mxu0 %v6785
    %6851 = vmatpush.bf16.msra.mxu0 %v6784
    %6852 = vmatpush.bf16.msra.mxu0 %v6783
    %6853 = vmatpush.bf16.msra.mxu0 %v6782
    %6854 = vmatmul.bf16.gmra.mxu0 %v6582
    %v6855 = vpop.f32.mrf.mxu0
    %v6856 = vadd.f32 %v6652, %v6855
    %v6857 = vpop.f32.mrf.mxu0
    %6858 = vdwg.mxu0
    %6859 = vmatpush.bf16.msra.mxu0 %v6797
    %6860 = vmatpush.bf16.msra.mxu0 %v6796
    %6861 = vmatpush.bf16.msra.mxu0 %v6795
    %6862 = vmatpush.bf16.msra.mxu0 %v6794
    %6863 = vmatpush.bf16.msra.mxu0 %v6793
    %6864 = vmatpush.bf16.msra.mxu0 %v6792
    %6865 = vmatpush.bf16.msra.mxu0 %v6791
    %6866 = vmatpush.bf16.msra.mxu0 %v6790
    %6867 = vmatmul.bf16.gmra.mxu0 %v6583
    %v6868 = vpop.f32.mrf.mxu0
    %v6869 = vadd.f32 %v6856, %v6868
    %v6870 = vpop.f32.mrf.mxu0
    %6871 = vdwg.mxu0
    %6872 = vmatpush.bf16.msra.mxu0 %v6805
    %6873 = vmatpush.bf16.msra.mxu0 %v6804
    %6874 = vmatpush.bf16.msra.mxu0 %v6803
    %6875 = vmatpush.bf16.msra.mxu0 %v6802
    %6876 = vmatpush.bf16.msra.mxu0 %v6801
    %6877 = vmatpush.bf16.msra.mxu0 %v6800
    %6878 = vmatpush.bf16.msra.mxu0 %v6799
    %6879 = vmatpush.bf16.msra.mxu0 %v6798
    %6880 = vmatmul.bf16.gmra.mxu0 %v6584
    %v6881 = vpop.f32.mrf.mxu0
    %v6882 = vadd.f32 %v6869, %v6881
    %v6883 = vpop.f32.mrf.mxu0
    %6884 = vdwg.mxu0
    %6885 = vmatpush.bf16.msra.mxu0 %v6813
    %6886 = vmatpush.bf16.msra.mxu0 %v6812
    %6887 = vmatpush.bf16.msra.mxu0 %v6811
    %6888 = vmatpush.bf16.msra.mxu0 %v6810
    %6889 = vmatpush.bf16.msra.mxu0 %v6809
    %6890 = vmatpush.bf16.msra.mxu0 %v6808
    %6891 = vmatpush.bf16.msra.mxu0 %v6807
    %6892 = vmatpush.bf16.msra.mxu0 %v6806
    %6893 = vmatmul.bf16.gmra.mxu0 %v6585
    %v6894 = vpop.f32.mrf.mxu0
    %v6895 = vadd.f32 %v6882, %v6894
    %v6896 = vpop.f32.mrf.mxu0
    %6897 = vdwg.mxu0
    %vm6898 = vcmask 41984
    %6899 = vst.msk [vmem:[#allocation2] sm:$0x3] %vm6898, %v6895
    // Predicated region
    $region74: #{dqn_cnn_forward.1} parent=1 // pred_check
      _
    $region75: #{dqn_cnn_forward.1} parent=1 // pred_check_branch
      %6901 = sbr.rel (0) target = $region77
    $region76: #{dqn_cnn_forward.1} parent=1 // pred_region
      %6903 = vsyncadd [#allocation3], 0
      %s6905 = sshll.u32 [#allocation2], 4
      %s6906 = int_to_ptr.vmem [resolvable:$true] %s6905
      %s6907 = sshll.u32 %s18, 4
      %s6908 = int_to_ptr.hbm [resolvable:$true] %s6907
      %6910 = dma.vmem_to_hbm [thread:$0]  %s6906, 32, %s6908, [#allocation3]
    $region77: #{dqn_cnn_forward.1} parent=1 // pred_fallthru
      _
    // Predicated region
    $region78: #{dqn_cnn_forward.1} parent=1 // pred_check
      _
    $region79: #{dqn_cnn_forward.1} parent=1 // pred_check_branch
      %6912 = sbr.rel (0) target = $region81
    $region80: #{dqn_cnn_forward.1} parent=1 // pred_region
      %6914 = dma.done [#allocation3], 32
    $region81: #{dqn_cnn_forward.1} parent=1 // pred_fallthru
      _
    %6915 = vsyncpa [#allocation3], 1

</llo_original>
